<compile_context>
chip_gen: v5e
topology: v5e:2x2
jax: 0.10.0
libtpu: 0.0.40
codegen_flags: <defaults>
</compile_context>

<pallas_src>
import jax
import jax.numpy as jnp
from jax import lax
from jax.experimental import pallas as pl
from jax.experimental.pallas import tpu as pltpu


_VMEM_LIMIT_BYTES = 48 * 1024 * 1024   # explicit cap; fits v7x's 64 MiB physical VMEM
_NEG_BIG = -1e9                        # mask for padded logit lanes (exp underflows to 0)
_COMPUTE_DTYPE = jnp.bfloat16          # MXU-native operands; f32 accumulation kept
_N_CLASSES = 10                        # LeNet head width (fc2)


def _round_up(x, m):
    return (x + m - 1) // m * m


def _cparams():
    return pltpu.CompilerParams(
        dimension_semantics=("parallel",),
        vmem_limit_bytes=_VMEM_LIMIT_BYTES)


# ------------------------------ Pallas kernels ------------------------------

def _conv_relu_pool_kernel(p_ref, w_ref, b_ref, o_ref):
    """Fused conv (patch matmul) + bias + ReLU + 2x2/stride-2 max-pool.

    p_ref: (4, blk, Kp) -- the four pooling-quadrant im2col patch slabs,
    stacked so a single BlockSpec / DMA stream feeds each grid step.  Row r of
    every quadrant maps to the same pooled output position, so the pool is an
    elementwise max of the four conv results.  Bias-add and ReLU are hoisted
    after the max (max_q(x_q)+b == max_q(x_q+b); ReLU is monotone).
    """
    w = w_ref[...]
    m = jnp.dot(p_ref[0], w, preferred_element_type=jnp.float32)
    m = jnp.maximum(m, jnp.dot(p_ref[1], w, preferred_element_type=jnp.float32))
    m = jnp.maximum(m, jnp.dot(p_ref[2], w, preferred_element_type=jnp.float32))
    m = jnp.maximum(m, jnp.dot(p_ref[3], w, preferred_element_type=jnp.float32))
    o_ref[...] = jnp.maximum(m + b_ref[...], 0.0).astype(o_ref.dtype)


def _mlp_head_kernel(x_ref, w1_ref, b1_ref, w2_ref, b2_ref, o_ref):
    """Fused fc1 + ReLU + fc2 + LogSoftmax over a lane-dense padded head.

    Hidden dim padded 500->512, logits padded 10->128.  Padded logit lanes
    carry a -1e9 bias, so they vanish under exp() and the first 10 lanes of
    the (tb, 128) output hold the exact log-softmax.
    """
    h = jnp.dot(x_ref[...], w1_ref[...], preferred_element_type=jnp.float32)
    h = jnp.maximum(h + b1_ref[...], 0.0)
    z = jnp.dot(h.astype(w2_ref.dtype), w2_ref[...],
                preferred_element_type=jnp.float32) + b2_ref[...]
    m = jnp.max(z, axis=-1, keepdims=True)
    s = jnp.sum(jnp.exp(z - m), axis=-1, keepdims=True)
    o_ref[...] = ((z - m) - jnp.log(s)).astype(o_ref.dtype)


# ------------------------------ wrappers ------------------------------------

def _pooled_patches_stacked(x_nhwc, k, k_pad):
    """im2col for a valid kxk conv followed by a 2x2/stride-2 max pool.

    Returns a single stacked array of shape (4, N*OHP*OWP, k_pad): the four
    pooling-quadrant patch matrices, rows ordered (n, ohp, owp) and columns
    ordered (c, kh, kw) -- matching torch's weight.reshape(OC, -1) -- zero-
    padded to k_pad columns for lane-aligned loads.
    # TODO(synk): fold this extraction into the conv kernel to remove the
    # im2col HBM amplification; kept as XLA glue until value-level strided
    # slices inside the kernel are verified.
    """
    N, H, W, C = x_nhwc.shape
    OH, OW = H - k + 1, W - k + 1          # conv output
    OHP, OWP = OH // 2, OW // 2            # pooled output
    quads = []
    for dh in range(2):
        for dw in range(2):
            cols = []
            for kh in range(k):
                for kw in range(k):
                    cols.append(
                        x_nhwc[:,
                               dh + kh: dh + kh + 2 * OHP: 2,
                               dw + kw: dw + kw + 2 * OWP: 2,
                               :])                          # (N, OHP, OWP, C)
            p = jnp.stack(cols, axis=-1)                    # (N, OHP, OWP, C, k*k)
            quads.append(p.reshape(N * OHP * OWP, C * k * k))
    stacked = jnp.stack(quads, axis=0)                      # (4, N*OHP*OWP, C*k*k)
    K = C * k * k
    if k_pad > K:
        stacked = jnp.pad(stacked, ((0, 0), (0, 0), (0, k_pad - K)))
    return stacked, (N, OHP, OWP)


def conv_relu_pool(x_nhwc, w_mat, b_row, k, *, imgs_per_step):
    """nn.Conv2d(.., k, 1) + ReLU + nn.MaxPool2d(2, 2); NHWC in / NHWC out."""
    Kp, OC = w_mat.shape
    stacked, (N, OHP, OWP) = _pooled_patches_stacked(x_nhwc, k, Kp)
    rows_per_img = OHP * OWP               # 144 (conv1) / 16 (conv2): % 16 == 0
    # Large batch tile, but clamp so the grid keeps >= 4 steps when possible
    # (both v7x TensorCores get work and each can still double-buffer).
    ib = max(1, min(imgs_per_step, pl.cdiv(N, 4)))
    blk = ib * rows_per_img
    grid = (pl.cdiv(N, ib),)
    out = pl.pallas_call(
        _conv_relu_pool_kernel,
        out_shape=jax.ShapeDtypeStruct((N * rows_per_img, OC), _COMPUTE_DTYPE),
        grid=grid,
        in_specs=[pl.BlockSpec((4, blk, Kp), lambda i: (0, i, 0)),  # one DMA stream
                  pl.BlockSpec((Kp, OC), lambda i: (0, 0)),         # resident weights
                  pl.BlockSpec((1, OC), lambda i: (0, 0))],         # resident bias
        out_specs=pl.BlockSpec((blk, OC), lambda i: (i, 0)),
        compiler_params=_cparams(),
    )(stacked, w_mat, b_row)
    return out.reshape(N, OHP, OWP, OC)


def mlp_head(x2d, wfc1, bfc1, wfc2, bfc2, *, max_rows_per_step=1024):
    """Fused fc1+ReLU+fc2+LogSoftmax; grid over batch tiles; (N,128) output."""
    N, K = x2d.shape
    Hp = wfc1.shape[1]                      # 512
    Op = wfc2.shape[1]                      # 128 (lane-dense logits)
    if N <= 32:
        tb = N                              # full-array block for tiny batches
    else:
        tb = min(max_rows_per_step, _round_up(pl.cdiv(N, 4), 16))
    grid = (pl.cdiv(N, tb),)
    return pl.pallas_call(
        _mlp_head_kernel,
        out_shape=jax.ShapeDtypeStruct((N, Op), jnp.float32),
        grid=grid,
        in_specs=[pl.BlockSpec((tb, K), lambda i: (i, 0)),
                  pl.BlockSpec((K, Hp), lambda i: (0, 0)),
                  pl.BlockSpec((1, Hp), lambda i: (0, 0)),
                  pl.BlockSpec((Hp, Op), lambda i: (0, 0)),
                  pl.BlockSpec((1, Op), lambda i: (0, 0))],
        out_specs=pl.BlockSpec((tb, Op), lambda i: (i, 0)),
        compiler_params=_cparams(),
    )(x2d, wfc1, bfc1, wfc2, bfc2)


# ------------------------------ params & forward ----------------------------

def prepare_params(params):
    """One-time weight layout / padding / dtype prep (out of the hot path)."""
    oc1 = params['w1'].shape[0]
    oc2 = params['w2'].shape[0]
    hid = params['wfc1'].shape[1]                      # 500
    ncls = params['wfc2'].shape[1]                     # 10
    hid_p = _round_up(hid, 128)                        # 512: lane-dense hidden
    out_p = _round_up(ncls, 128)                       # 128: lane-dense logits

    # conv weights -> (IC*k*k, OC) matmul form; row order (c, kh, kw).
    w1m = params['w1'].reshape(oc1, -1).T              # (25, 20); K=25 left unpadded
    w2m = params['w2'].reshape(oc2, -1).T              # (500, 50)
    k2p = _round_up(w2m.shape[0], 128)                 # 512: aligned conv2 contraction
    w2m = jnp.pad(w2m, ((0, k2p - w2m.shape[0]), (0, 0)))

    # torch's fc1 consumes the NCHW flatten (c*16 + h*4 + w); our pooled
    # activation flattens NHWC (h*200 + w*50 + c): permute wfc1 rows once.
    wfc1 = params['wfc1'].reshape(oc2, 4, 4, hid)
    wfc1 = jnp.transpose(wfc1, (1, 2, 0, 3)).reshape(4 * 4 * oc2, hid)
    wfc1 = jnp.pad(wfc1, ((0, 0), (0, hid_p - hid)))
    wfc2 = jnp.pad(params['wfc2'], ((0, hid_p - hid), (0, out_p - ncls)))

    bfc1 = jnp.pad(params['bfc1'], (0, hid_p - hid)).reshape(1, -1)
    # Padded logit lanes get -1e9 bias -> exp() underflows to 0 exactly, so
    # the log-softmax over the first `ncls` lanes is unchanged.
    bfc2 = jnp.full((1, out_p), _NEG_BIG, jnp.float32).at[0, :ncls].set(params['bfc2'])

    cd = _COMPUTE_DTYPE
    return {
        'w1m': w1m.astype(cd), 'b1': params['b1'].reshape(1, -1).astype(jnp.float32),
        'w2m': w2m.astype(cd), 'b2': params['b2'].reshape(1, -1).astype(jnp.float32),
        'wfc1': wfc1.astype(cd), 'bfc1': bfc1.astype(jnp.float32),
        'wfc2': wfc2.astype(cd), 'bfc2': bfc2.astype(jnp.float32),
    }


def lenet_forward(x_nchw, prepared):
    N = x_nchw.shape[0]
    # NCHW -> NHWC (IC=1: free); cast matmul operands to bf16 (f32 accumulate).
    x = jnp.transpose(x_nchw, (0, 2, 3, 1)).astype(_COMPUTE_DTYPE)
    # Per-layer batch tiles sized against the 48 MiB VMEM cap (lane-padded,
    # double-buffered patch blocks): conv1 ~24 MiB @ 64 imgs/step, conv2
    # ~18 MiB @ 128 imgs/step.
    x = conv_relu_pool(x, prepared['w1m'], prepared['b1'], 5, imgs_per_step=64)   # (N,12,12,20)
    x = conv_relu_pool(x, prepared['w2m'], prepared['b2'], 5, imgs_per_step=128)  # (N, 4, 4,50)
    x = x.reshape(N, 4 * 4 * 50)           # NHWC flatten; wfc1 rows pre-permuted
    logp = mlp_head(x, prepared['wfc1'], prepared['bfc1'],
                    prepared['wfc2'], prepared['bfc2'])                           # (N, 128)
    return logp[:, :_N_CLASSES]            # drop the lane-padding logits


def init_params(key):
    """Deterministic synthetic params; uniform(-1/sqrt(fan_in), 1/sqrt(fan_in))."""
    def uinit(k, shape, fan_in):
        bound = 1.0 / (fan_in ** 0.5)
        return jax.random.uniform(k, shape, jnp.float32, -bound, bound)
    ks = jax.random.split(key, 8)
    return {
        'w1': uinit(ks[0], (20, 1, 5, 5), 1 * 5 * 5),
        'b1': uinit(ks[1], (20,), 1 * 5 * 5),
        'w2': uinit(ks[2], (50, 20, 5, 5), 20 * 5 * 5),
        'b2': uinit(ks[3], (50,), 20 * 5 * 5),
        'wfc1': uinit(ks[4], (800, 500), 800),
        'bfc1': uinit(ks[5], (500,), 800),
        'wfc2': uinit(ks[6], (500, 10), 500),
        'bfc2': uinit(ks[7], (10,), 500),
    }


def lenet_reference(x_nchw, params):
    """Pure-XLA f32 reference (same math as the PyTorch module)."""
    dn = ('NCHW', 'OIHW', 'NCHW')
    y = lax.conv_general_dilated(x_nchw, params['w1'], (1, 1), 'VALID',
                                 dimension_numbers=dn)
    y = jnp.maximum(y + params['b1'][None, :, None, None], 0.0)
    y = lax.reduce_window(y, -jnp.inf, lax.max, (1, 1, 2, 2), (1, 1, 2, 2), 'VALID')
    y = lax.conv_general_dilated(y, params['w2'], (1, 1), 'VALID',
                                 dimension_numbers=dn)
    y = jnp.maximum(y + params['b2'][None, :, None, None], 0.0)
    y = lax.reduce_window(y, -jnp.inf, lax.max, (1, 1, 2, 2), (1, 1, 2, 2), 'VALID')
    y = y.reshape(y.shape[0], -1)                           # torch NCHW flatten
    y = jnp.maximum(y @ params['wfc1'] + params['bfc1'], 0.0)
    y = y @ params['wfc2'] + params['bfc2']
    return jax.nn.log_softmax(y, axis=1)


if __name__ == "__main__":
    key = jax.random.PRNGKey(0)
    kx, kp = jax.random.split(key)
    # LeNet's 4*4*50 flatten implies 28x28 single-channel inputs; batch=2.
    x = jax.random.normal(kx, (2, 1, 28, 28), jnp.float32)
    params = init_params(kp)
    prepared = prepare_params(params)      # one-time weight layout prep

    out = jax.block_until_ready(jax.jit(lenet_forward)(x, prepared))

    assert out.shape == (2, _N_CLASSES), out.shape
    assert out.dtype == jnp.float32
    # log-softmax rows must sum to ~1 in prob space (padded lanes contribute 0)
    assert bool(jnp.all(jnp.abs(jnp.sum(jnp.exp(out), axis=1) - 1.0) < 1e-3))
    # match the pure-XLA f32 reference (tolerance covers the bf16 operand path)
    ref = jax.block_until_ready(jax.jit(lenet_reference)(x, params))
    err = float(jnp.max(jnp.abs(out - ref)))
    assert err < 1e-1, err
    print("KERNEL_OK")
</pallas_src>

<mosaic_0001>
module attributes {stable_mosaic.version = 11 : i64} {
  func.func @_conv_relu_pool_kernel(%arg0: i32, %arg1: memref<4x144x25xbf16, #tpu.memory_space<vmem>>, %arg2: memref<25x20xbf16, #tpu.memory_space<vmem>>, %arg3: memref<1x20xf32, #tpu.memory_space<vmem>>, %arg4: memref<144x20xbf16, #tpu.memory_space<vmem>>) attributes {dimension_semantics = [#tpu.dimension_semantics<parallel>], iteration_bounds = array<i64: 2>, scalar_prefetch = 0 : i64, scratch_operands = 0 : i64, tpu.core_type = #tpu.core_type<tc>, window_params = [{transform_indices = @transform_0, window_bounds = array<i64: 4, 144, 25>}, {pipeline_mode = #tpu.pipeline_mode<synchronous>, transform_indices = @transform_1, window_bounds = array<i64: 25, 20>}, {pipeline_mode = #tpu.pipeline_mode<synchronous>, transform_indices = @transform_2, window_bounds = array<i64: 1, 20>}, {transform_indices = @transform_3, window_bounds = array<i64: 144, 20>}]} {
    %c0 = arith.constant 0 : index
    %c0_0 = arith.constant 0 : index
    %0 = vector.load %arg2[%c0, %c0_0] : memref<25x20xbf16, #tpu.memory_space<vmem>>, vector<25x20xbf16>
    %c0_1 = arith.constant 0 : index
    %c0_2 = arith.constant 0 : index
    %c0_3 = arith.constant 0 : index
    %1 = vector.load %arg1[%c0_1, %c0_2, %c0_3] : memref<4x144x25xbf16, #tpu.memory_space<vmem>>, vector<1x144x25xbf16>
    %2 = vector.shape_cast %1 : vector<1x144x25xbf16> to vector<144x25xbf16>
    %cst = arith.constant dense<0.000000e+00> : vector<144x20xf32>
    %3 = tpu.matmul %2, %0, %cst {dimension_numbers = #tpu.dot_dimension_numbers<[1], [0], [0], [1], [0, 0, 1, 1], [], []>} : vector<144x25xbf16>, vector<25x20xbf16>, vector<144x20xf32> -> vector<144x20xf32>
    %c1 = arith.constant 1 : index
    %c0_4 = arith.constant 0 : index
    %c0_5 = arith.constant 0 : index
    %4 = vector.load %arg1[%c1, %c0_4, %c0_5] : memref<4x144x25xbf16, #tpu.memory_space<vmem>>, vector<1x144x25xbf16>
    %5 = vector.shape_cast %4 : vector<1x144x25xbf16> to vector<144x25xbf16>
    %cst_6 = arith.constant dense<0.000000e+00> : vector<144x20xf32>
    %6 = tpu.matmul %5, %0, %cst_6 {dimension_numbers = #tpu.dot_dimension_numbers<[1], [0], [0], [1], [0, 0, 1, 1], [], []>} : vector<144x25xbf16>, vector<25x20xbf16>, vector<144x20xf32> -> vector<144x20xf32>
    %7 = arith.maximumf %3, %6 : vector<144x20xf32>
    %c2 = arith.constant 2 : index
    %c0_7 = arith.constant 0 : index
    %c0_8 = arith.constant 0 : index
    %8 = vector.load %arg1[%c2, %c0_7, %c0_8] : memref<4x144x25xbf16, #tpu.memory_space<vmem>>, vector<1x144x25xbf16>
    %9 = vector.shape_cast %8 : vector<1x144x25xbf16> to vector<144x25xbf16>
    %cst_9 = arith.constant dense<0.000000e+00> : vector<144x20xf32>
    %10 = tpu.matmul %9, %0, %cst_9 {dimension_numbers = #tpu.dot_dimension_numbers<[1], [0], [0], [1], [0, 0, 1, 1], [], []>} : vector<144x25xbf16>, vector<25x20xbf16>, vector<144x20xf32> -> vector<144x20xf32>
    %11 = arith.maximumf %7, %10 : vector<144x20xf32>
    %c3 = arith.constant 3 : index
    %c0_10 = arith.constant 0 : index
    %c0_11 = arith.constant 0 : index
    %12 = vector.load %arg1[%c3, %c0_10, %c0_11] : memref<4x144x25xbf16, #tpu.memory_space<vmem>>, vector<1x144x25xbf16>
    %13 = vector.shape_cast %12 : vector<1x144x25xbf16> to vector<144x25xbf16>
    %cst_12 = arith.constant dense<0.000000e+00> : vector<144x20xf32>
    %14 = tpu.matmul %13, %0, %cst_12 {dimension_numbers = #tpu.dot_dimension_numbers<[1], [0], [0], [1], [0, 0, 1, 1], [], []>} : vector<144x25xbf16>, vector<25x20xbf16>, vector<144x20xf32> -> vector<144x20xf32>
    %15 = arith.maximumf %11, %14 : vector<144x20xf32>
    %c0_13 = arith.constant 0 : index
    %c0_14 = arith.constant 0 : index
    %16 = vector.load %arg3[%c0_13, %c0_14] : memref<1x20xf32, #tpu.memory_space<vmem>>, vector<1x20xf32>
    %17 = vector.broadcast %16 : vector<1x20xf32> to vector<144x20xf32>
    %18 = arith.addf %15, %17 : vector<144x20xf32>
    %cst_15 = arith.constant 0.000000e+00 : f32
    %19 = vector.broadcast %cst_15 : f32 to vector<144x20xf32>
    %20 = arith.maximumf %18, %19 : vector<144x20xf32>
    %21 = arith.truncf %20 : vector<144x20xf32> to vector<144x20xbf16>
    %c0_16 = arith.constant 0 : index
    %c0_17 = arith.constant 0 : index
    %22 = vector.load %arg4[%c0_16, %c0_17] : memref<144x20xbf16, #tpu.memory_space<vmem>>, vector<144x20xbf16>
    tpu.vector_store %arg4[%c0_16, %c0_17], %21 {strides = array<i32>} : memref<144x20xbf16, #tpu.memory_space<vmem>>, vector<144x20xbf16>,
    return
  }
  func.func @transform_0(%arg0: i32) -> (i32, i32, i32) {
    %c0_i32 = arith.constant 0 : i32
    %c0_i32_0 = arith.constant 0 : i32
    %c0_i32_1 = arith.constant 0 : i32
    return %c0_i32, %arg0, %c0_i32_0 : i32, i32, i32
  }
  func.func @transform_1(%arg0: i32) -> (i32, i32) {
    %c0_i32 = arith.constant 0 : i32
    %c0_i32_0 = arith.constant 0 : i32
    %c0_i32_1 = arith.constant 0 : i32
    return %c0_i32, %c0_i32_0 : i32, i32
  }
  func.func @transform_2(%arg0: i32) -> (i32, i32) {
    %c0_i32 = arith.constant 0 : i32
    %c0_i32_0 = arith.constant 0 : i32
    %c0_i32_1 = arith.constant 0 : i32
    return %c0_i32, %c0_i32_0 : i32, i32
  }
  func.func @transform_3(%arg0: i32) -> (i32, i32) {
    %c0_i32 = arith.constant 0 : i32
    %c0_i32_0 = arith.constant 0 : i32
    return %arg0, %c0_i32 : i32, i32
  }
}

module attributes {stable_mosaic.version = 11 : i64} {
  func.func @_conv_relu_pool_kernel(%arg0: i32, %arg1: memref<4x16x512xbf16, #tpu.memory_space<vmem>>, %arg2: memref<512x50xbf16, #tpu.memory_space<vmem>>, %arg3: memref<1x50xf32, #tpu.memory_space<vmem>>, %arg4: memref<16x50xbf16, #tpu.memory_space<vmem>>) attributes {dimension_semantics = [#tpu.dimension_semantics<parallel>], iteration_bounds = array<i64: 2>, scalar_prefetch = 0 : i64, scratch_operands = 0 : i64, tpu.core_type = #tpu.core_type<tc>, window_params = [{transform_indices = @transform_0, window_bounds = array<i64: 4, 16, 512>}, {pipeline_mode = #tpu.pipeline_mode<synchronous>, transform_indices = @transform_1, window_bounds = array<i64: 512, 50>}, {pipeline_mode = #tpu.pipeline_mode<synchronous>, transform_indices = @transform_2, window_bounds = array<i64: 1, 50>}, {transform_indices = @transform_3, window_bounds = array<i64: 16, 50>}]} {
    %c0 = arith.constant 0 : index
    %c0_0 = arith.constant 0 : index
    %0 = vector.load %arg2[%c0, %c0_0] : memref<512x50xbf16, #tpu.memory_space<vmem>>, vector<512x50xbf16>
    %c0_1 = arith.constant 0 : index
    %c0_2 = arith.constant 0 : index
    %c0_3 = arith.constant 0 : index
    %1 = vector.load %arg1[%c0_1, %c0_2, %c0_3] : memref<4x16x512xbf16, #tpu.memory_space<vmem>>, vector<1x16x512xbf16>
    %2 = vector.shape_cast %1 : vector<1x16x512xbf16> to vector<16x512xbf16>
    %cst = arith.constant dense<0.000000e+00> : vector<16x50xf32>
    %3 = tpu.matmul %2, %0, %cst {dimension_numbers = #tpu.dot_dimension_numbers<[1], [0], [0], [1], [0, 0, 1, 1], [], []>} : vector<16x512xbf16>, vector<512x50xbf16>, vector<16x50xf32> -> vector<16x50xf32>
    %c1 = arith.constant 1 : index
    %c0_4 = arith.constant 0 : index
    %c0_5 = arith.constant 0 : index
    %4 = vector.load %arg1[%c1, %c0_4, %c0_5] : memref<4x16x512xbf16, #tpu.memory_space<vmem>>, vector<1x16x512xbf16>
    %5 = vector.shape_cast %4 : vector<1x16x512xbf16> to vector<16x512xbf16>
    %cst_6 = arith.constant dense<0.000000e+00> : vector<16x50xf32>
    %6 = tpu.matmul %5, %0, %cst_6 {dimension_numbers = #tpu.dot_dimension_numbers<[1], [0], [0], [1], [0, 0, 1, 1], [], []>} : vector<16x512xbf16>, vector<512x50xbf16>, vector<16x50xf32> -> vector<16x50xf32>
    %7 = arith.maximumf %3, %6 : vector<16x50xf32>
    %c2 = arith.constant 2 : index
    %c0_7 = arith.constant 0 : index
    %c0_8 = arith.constant 0 : index
    %8 = vector.load %arg1[%c2, %c0_7, %c0_8] : memref<4x16x512xbf16, #tpu.memory_space<vmem>>, vector<1x16x512xbf16>
    %9 = vector.shape_cast %8 : vector<1x16x512xbf16> to vector<16x512xbf16>
    %cst_9 = arith.constant dense<0.000000e+00> : vector<16x50xf32>
    %10 = tpu.matmul %9, %0, %cst_9 {dimension_numbers = #tpu.dot_dimension_numbers<[1], [0], [0], [1], [0, 0, 1, 1], [], []>} : vector<16x512xbf16>, vector<512x50xbf16>, vector<16x50xf32> -> vector<16x50xf32>
    %11 = arith.maximumf %7, %10 : vector<16x50xf32>
    %c3 = arith.constant 3 : index
    %c0_10 = arith.constant 0 : index
    %c0_11 = arith.constant 0 : index
    %12 = vector.load %arg1[%c3, %c0_10, %c0_11] : memref<4x16x512xbf16, #tpu.memory_space<vmem>>, vector<1x16x512xbf16>
    %13 = vector.shape_cast %12 : vector<1x16x512xbf16> to vector<16x512xbf16>
    %cst_12 = arith.constant dense<0.000000e+00> : vector<16x50xf32>
    %14 = tpu.matmul %13, %0, %cst_12 {dimension_numbers = #tpu.dot_dimension_numbers<[1], [0], [0], [1], [0, 0, 1, 1], [], []>} : vector<16x512xbf16>, vector<512x50xbf16>, vector<16x50xf32> -> vector<16x50xf32>
    %15 = arith.maximumf %11, %14 : vector<16x50xf32>
    %c0_13 = arith.constant 0 : index
    %c0_14 = arith.constant 0 : index
    %16 = vector.load %arg3[%c0_13, %c0_14] : memref<1x50xf32, #tpu.memory_space<vmem>>, vector<1x50xf32>
    %17 = vector.broadcast %16 : vector<1x50xf32> to vector<16x50xf32>
    %18 = arith.addf %15, %17 : vector<16x50xf32>
    %cst_15 = arith.constant 0.000000e+00 : f32
    %19 = vector.broadcast %cst_15 : f32 to vector<16x50xf32>
    %20 = arith.maximumf %18, %19 : vector<16x50xf32>
    %21 = arith.truncf %20 : vector<16x50xf32> to vector<16x50xbf16>
    %c0_16 = arith.constant 0 : index
    %c0_17 = arith.constant 0 : index
    %22 = vector.load %arg4[%c0_16, %c0_17] : memref<16x50xbf16, #tpu.memory_space<vmem>>, vector<16x50xbf16>
    tpu.vector_store %arg4[%c0_16, %c0_17], %21 {strides = array<i32>} : memref<16x50xbf16, #tpu.memory_space<vmem>>, vector<16x50xbf16>,
    return
  }
  func.func @transform_0(%arg0: i32) -> (i32, i32, i32) {
    %c0_i32 = arith.constant 0 : i32
    %c0_i32_0 = arith.constant 0 : i32
    %c0_i32_1 = arith.constant 0 : i32
    return %c0_i32, %arg0, %c0_i32_0 : i32, i32, i32
  }
  func.func @transform_1(%arg0: i32) -> (i32, i32) {
    %c0_i32 = arith.constant 0 : i32
    %c0_i32_0 = arith.constant 0 : i32
    %c0_i32_1 = arith.constant 0 : i32
    return %c0_i32, %c0_i32_0 : i32, i32
  }
  func.func @transform_2(%arg0: i32) -> (i32, i32) {
    %c0_i32 = arith.constant 0 : i32
    %c0_i32_0 = arith.constant 0 : i32
    %c0_i32_1 = arith.constant 0 : i32
    return %c0_i32, %c0_i32_0 : i32, i32
  }
  func.func @transform_3(%arg0: i32) -> (i32, i32) {
    %c0_i32 = arith.constant 0 : i32
    %c0_i32_0 = arith.constant 0 : i32
    return %arg0, %c0_i32 : i32, i32
  }
}

module attributes {stable_mosaic.version = 11 : i64} {
  func.func @_mlp_head_kernel(%arg0: i32, %arg1: memref<2x800xbf16, #tpu.memory_space<vmem>>, %arg2: memref<800x512xbf16, #tpu.memory_space<vmem>>, %arg3: memref<1x512xf32, #tpu.memory_space<vmem>>, %arg4: memref<512x128xbf16, #tpu.memory_space<vmem>>, %arg5: memref<1x128xf32, #tpu.memory_space<vmem>>, %arg6: memref<2x128xf32, #tpu.memory_space<vmem>>) attributes {dimension_semantics = [#tpu.dimension_semantics<parallel>], iteration_bounds = array<i64: 1>, scalar_prefetch = 0 : i64, scratch_operands = 0 : i64, tpu.core_type = #tpu.core_type<tc>, window_params = [{transform_indices = @transform_0, window_bounds = array<i64: 2, 800>}, {pipeline_mode = #tpu.pipeline_mode<synchronous>, transform_indices = @transform_1, window_bounds = array<i64: 800, 512>}, {pipeline_mode = #tpu.pipeline_mode<synchronous>, transform_indices = @transform_2, window_bounds = array<i64: 1, 512>}, {pipeline_mode = #tpu.pipeline_mode<synchronous>, transform_indices = @transform_3, window_bounds = array<i64: 512, 128>}, {pipeline_mode = #tpu.pipeline_mode<synchronous>, transform_indices = @transform_4, window_bounds = array<i64: 1, 128>}, {transform_indices = @transform_5, window_bounds = array<i64: 2, 128>}]} {
    %c0 = arith.constant 0 : index
    %c0_0 = arith.constant 0 : index
    %0 = vector.load %arg1[%c0, %c0_0] : memref<2x800xbf16, #tpu.memory_space<vmem>>, vector<2x800xbf16>
    %c0_1 = arith.constant 0 : index
    %c0_2 = arith.constant 0 : index
    %1 = vector.load %arg2[%c0_1, %c0_2] : memref<800x512xbf16, #tpu.memory_space<vmem>>, vector<800x512xbf16>
    %cst = arith.constant dense<0.000000e+00> : vector<2x512xf32>
    %2 = tpu.matmul %0, %1, %cst {dimension_numbers = #tpu.dot_dimension_numbers<[1], [0], [0], [1], [0, 0, 1, 1], [], []>} : vector<2x800xbf16>, vector<800x512xbf16>, vector<2x512xf32> -> vector<2x512xf32>
    %c0_3 = arith.constant 0 : index
    %c0_4 = arith.constant 0 : index
    %3 = vector.load %arg3[%c0_3, %c0_4] : memref<1x512xf32, #tpu.memory_space<vmem>>, vector<1x512xf32>
    %4 = vector.broadcast %3 : vector<1x512xf32> to vector<2x512xf32>
    %5 = arith.addf %2, %4 : vector<2x512xf32>
    %cst_5 = arith.constant 0.000000e+00 : f32
    %6 = vector.broadcast %cst_5 : f32 to vector<2x512xf32>
    %7 = arith.maximumf %5, %6 : vector<2x512xf32>
    %8 = arith.truncf %7 : vector<2x512xf32> to vector<2x512xbf16>
    %c0_6 = arith.constant 0 : index
    %c0_7 = arith.constant 0 : index
    %9 = vector.load %arg4[%c0_6, %c0_7] : memref<512x128xbf16, #tpu.memory_space<vmem>>, vector<512x128xbf16>
    %cst_8 = arith.constant dense<0.000000e+00> : vector<2x128xf32>
    %10 = tpu.matmul %8, %9, %cst_8 {dimension_numbers = #tpu.dot_dimension_numbers<[1], [0], [0], [1], [0, 0, 1, 1], [], []>} : vector<2x512xbf16>, vector<512x128xbf16>, vector<2x128xf32> -> vector<2x128xf32>
    %c0_9 = arith.constant 0 : index
    %c0_10 = arith.constant 0 : index
    %11 = vector.load %arg5[%c0_9, %c0_10] : memref<1x128xf32, #tpu.memory_space<vmem>>, vector<1x128xf32>
    %12 = vector.broadcast %11 : vector<1x128xf32> to vector<2x128xf32>
    %13 = arith.addf %10, %12 : vector<2x128xf32>
    %cst_11 = arith.constant dense<0xFF800000> : vector<2xf32>
    %14 = vector.multi_reduction <maximumf>, %13, %cst_11 [1] : vector<2x128xf32> to vector<2xf32>
    %15 = vector.shape_cast %14 : vector<2xf32> to vector<2x1xf32>
    %16 = vector.broadcast %15 : vector<2x1xf32> to vector<2x128xf32>
    %17 = arith.subf %13, %16 : vector<2x128xf32>
    %18 = math.exp %17 : vector<2x128xf32>
    %cst_12 = arith.constant dense<0.000000e+00> : vector<2xf32>
    %19 = vector.multi_reduction <add>, %18, %cst_12 [1] : vector<2x128xf32> to vector<2xf32>
    %20 = vector.shape_cast %19 : vector<2xf32> to vector<2x1xf32>
    %21 = vector.broadcast %15 : vector<2x1xf32> to vector<2x128xf32>
    %22 = arith.subf %13, %21 : vector<2x128xf32>
    %23 = math.log %20 : vector<2x1xf32>
    %24 = vector.broadcast %23 : vector<2x1xf32> to vector<2x128xf32>
    %25 = arith.subf %22, %24 : vector<2x128xf32>
    %c0_13 = arith.constant 0 : index
    %c0_14 = arith.constant 0 : index
    %26 = vector.load %arg6[%c0_13, %c0_14] : memref<2x128xf32, #tpu.memory_space<vmem>>, vector<2x128xf32>
    tpu.vector_store %arg6[%c0_13, %c0_14], %25 {strides = array<i32>} : memref<2x128xf32, #tpu.memory_space<vmem>>, vector<2x128xf32>,
    return
  }
  func.func @transform_0(%arg0: i32) -> (i32, i32) {
    %c0_i32 = arith.constant 0 : i32
    %c0_i32_0 = arith.constant 0 : i32
    return %arg0, %c0_i32 : i32, i32
  }
  func.func @transform_1(%arg0: i32) -> (i32, i32) {
    %c0_i32 = arith.constant 0 : i32
    %c0_i32_0 = arith.constant 0 : i32
    %c0_i32_1 = arith.constant 0 : i32
    return %c0_i32, %c0_i32_0 : i32, i32
  }
  func.func @transform_2(%arg0: i32) -> (i32, i32) {
    %c0_i32 = arith.constant 0 : i32
    %c0_i32_0 = arith.constant 0 : i32
    %c0_i32_1 = arith.constant 0 : i32
    return %c0_i32, %c0_i32_0 : i32, i32
  }
  func.func @transform_3(%arg0: i32) -> (i32, i32) {
    %c0_i32 = arith.constant 0 : i32
    %c0_i32_0 = arith.constant 0 : i32
    %c0_i32_1 = arith.constant 0 : i32
    return %c0_i32, %c0_i32_0 : i32, i32
  }
  func.func @transform_4(%arg0: i32) -> (i32, i32) {
    %c0_i32 = arith.constant 0 : i32
    %c0_i32_0 = arith.constant 0 : i32
    %c0_i32_1 = arith.constant 0 : i32
    return %c0_i32, %c0_i32_0 : i32, i32
  }
  func.func @transform_5(%arg0: i32) -> (i32, i32) {
    %c0_i32 = arith.constant 0 : i32
    %c0_i32_0 = arith.constant 0 : i32
    return %arg0, %c0_i32 : i32, i32
  }
}

</mosaic_0001>

<llo_original>
// kernel: lenet_forward.3
$region0: #{lenet_forward.3}
  #allocation0 [shape = 'u32[]', space=smem, size = 0x4, offset = 0x4, fixed_abs, tag = 'smem constant byte address 0x4 - core index']
  #allocation1 [shape = 'u32[72,128]{1,0:T(1,128)}', space=vmem, size = 0x9000, scoped, tag = 'internal scratch']
  %s0 = inlined_call_operand.vmem [shape: bf16[4,288,25], index: 0, kind: input, shape index: {}]
  %s1 = inlined_call_operand.vmem [shape: bf16[25,20], index: 1, kind: input, shape index: {}]
  %s2 = inlined_call_operand.vmem [shape: f32[1,20], index: 2, kind: input, shape index: {}]
  %s3 = inlined_call_operand.vmem [shape: bf16[288,20], index: 3, kind: output, shape index: {}]
  %s4 = sld [smem:[#allocation0]]
  $region86: #{lenet_forward.3} parent=0
    _
  %s6 = ssub.s32 1, %s4
  %s7 = scalar_select 0, %s6, %s4
  $region1: #{lenet_forward.3} parent=0
    #allocation2 [shape = 'u8[294912]{0}', space=vmem, size = 0x48000, scoped, tag = 'input window, operand 0']
    loop: start=0, step=1, limit=4
    $region2: #{lenet_forward.3} parent=1 // loop_pre_header
      _
    $region3: #{lenet_forward.3} parent=1 // loop_header
      %s9 = sphi 0, %s13
      %p10 = scmp.ge.s32.totalorder %s9, 4
      %s19 = sphi 0, %s21
      %s22 = sphi 0, %s19
      %s23 = sphi 0, %s22
      %s39 = sphi 0, %s23
      %s43 = sphi 0, %s43
      %s45 = sphi 0, %s43
      %s46 = sphi 0, %s45
      %s60 = sphi 0, %s46
      %s64 = sphi 0, %s64
      %s66 = sphi 0, %s64
      %s67 = sphi 0, %s66
      %s81 = sphi 0, %s67
      %s87 = sphi 0, %s89
      %s90 = sphi 0, %s87
      %s91 = sphi 0, %s90
      %s107 = sphi 0, %s91
    $region4: #{lenet_forward.3} parent=1 // loop_header_branch
      %12 = sbr.rel (%p10) target = $region8
    $region5: #{lenet_forward.3} parent=1 // loop_body
      %s14 = ssub.s32 %s9, 1
      %s15 = ssub.s32 %s9, 2
      %s16 = sadd.s32 %s9, 1
      %s17 = ssub.s32 %s9, %s16
      %p18 = scmp.eq.s32.totalorder %s17, 0
      %s20 = sadd.s32 %s19, 1
      %s21 = scalar_select %p18, %s19, %s20
      %p24 = pneg %p18
      %p25 = scmp.eq.s32.totalorder %s9, 1
      %p26 = por %p24, %p25
      %p27 = scmp.ne.s32.totalorder %s19, %s22
      %p28 = scmp.eq.s32.totalorder %s9, 0
      %p29 = por %p27, %p28
      %p30 = scmp.ne.s32.totalorder %s19, %s22
      %p31 = scmp.eq.s32.totalorder %s14, 1
      %p32 = por %p30, %p31
      %p33 = scmp.ne.s32.totalorder %s22, %s23
      %p34 = scmp.eq.s32.totalorder %s14, 0
      %p35 = por %p33, %p34
      %p36 = scmp.ne.s32.totalorder %s22, %s23
      %p37 = scmp.eq.s32.totalorder %s15, 1
      %p38 = por %p36, %p37
      %p40 = scmp.ne.s32.totalorder %s23, %s39
      %p41 = scmp.eq.s32.totalorder %s15, 0
      %p42 = por %p40, %p41
      %s44 = sadd.s32 %s43, 1
      %p47 = scmp.eq.s32.totalorder %s9, 1
      %p48 = scmp.ne.s32.totalorder %s43, %s45
      %p49 = scmp.eq.s32.totalorder %s9, 0
      %p50 = por %p48, %p49
      %p51 = scmp.ne.s32.totalorder %s43, %s45
      %p52 = scmp.eq.s32.totalorder %s14, 1
      %p53 = por %p51, %p52
      %p54 = scmp.ne.s32.totalorder %s45, %s46
      %p55 = scmp.eq.s32.totalorder %s14, 0
      %p56 = por %p54, %p55
      %p57 = scmp.ne.s32.totalorder %s45, %s46
      %p58 = scmp.eq.s32.totalorder %s15, 1
      %p59 = por %p57, %p58
      %p61 = scmp.ne.s32.totalorder %s46, %s60
      %p62 = scmp.eq.s32.totalorder %s15, 0
      %p63 = por %p61, %p62
      %s65 = sadd.s32 %s64, 1
      %p68 = scmp.eq.s32.totalorder %s9, 1
      %p69 = scmp.ne.s32.totalorder %s64, %s66
      %p70 = scmp.eq.s32.totalorder %s9, 0
      %p71 = por %p69, %p70
      %p72 = scmp.ne.s32.totalorder %s64, %s66
      %p73 = scmp.eq.s32.totalorder %s14, 1
      %p74 = por %p72, %p73
      %p75 = scmp.ne.s32.totalorder %s66, %s67
      %p76 = scmp.eq.s32.totalorder %s14, 0
      %p77 = por %p75, %p76
      %p78 = scmp.ne.s32.totalorder %s66, %s67
      %p79 = scmp.eq.s32.totalorder %s15, 1
      %p80 = por %p78, %p79
      %p82 = scmp.ne.s32.totalorder %s67, %s81
      %p83 = scmp.eq.s32.totalorder %s15, 0
      %p84 = por %p82, %p83
      %s85 = ssub.s32 %s9, %s16
      %p86 = scmp.eq.s32.totalorder %s85, 0
      %s88 = sadd.s32 %s87, 1
      %s89 = scalar_select %p86, %s87, %s88
      %p92 = pneg %p86
      %p93 = scmp.eq.s32.totalorder %s9, 1
      %p94 = por %p92, %p93
      %p95 = scmp.ne.s32.totalorder %s87, %s90
      %p96 = scmp.eq.s32.totalorder %s9, 0
      %p97 = por %p95, %p96
      %p98 = scmp.ne.s32.totalorder %s87, %s90
      %p99 = scmp.eq.s32.totalorder %s14, 1
      %p100 = por %p98, %p99
      %p101 = scmp.ne.s32.totalorder %s90, %s91
      %p102 = scmp.eq.s32.totalorder %s14, 0
      %p103 = por %p101, %p102
      %p104 = scmp.ne.s32.totalorder %s90, %s91
      %p105 = scmp.eq.s32.totalorder %s15, 1
      %p106 = por %p104, %p105
      %p108 = scmp.ne.s32.totalorder %s91, %s107
      %p109 = scmp.eq.s32.totalorder %s15, 0
      %p110 = por %p108, %p109
      %p111 = scmp.le.s32.totalorder 1, %s9
      %p112 = scmp.lt.s32.totalorder %s9, 3
      %p113 = pnand %p111, %p112
      %p114 = pneg %p113
      // Predicated region
      $region9: #{lenet_forward.3} parent=5 // pred_check
        _
      $region10: #{lenet_forward.3} parent=5 // pred_check_branch
        %116 = sbr.rel (%p113) target = $region12
      $region11: #{lenet_forward.3} parent=5 // pred_region
        %s117 = ssub.s32 %s9, 1
        // Predicated region
        $region13: #{lenet_forward.3} parent=11 // pred_check
          %p118 = pneg %p56
        $region14: #{lenet_forward.3} parent=11 // pred_check_branch
          %120 = sbr.rel (%p118) target = $region16
        $region15: #{lenet_forward.3} parent=11 // pred_region
          _
        $region16: #{lenet_forward.3} parent=11 // pred_fallthru
          _
        // Predicated region
        $region17: #{lenet_forward.3} parent=11 // pred_check
          %p121 = pneg %p77
        $region18: #{lenet_forward.3} parent=11 // pred_check_branch
          %123 = sbr.rel (%p121) target = $region20
        $region19: #{lenet_forward.3} parent=11 // pred_region
          _
        $region20: #{lenet_forward.3} parent=11 // pred_fallthru
          _
      $region12: #{lenet_forward.3} parent=5 // pred_fallthru
        _
      %p124 = scmp.lt.s32.totalorder %s9, 2
      // Predicated region
      $region21: #{lenet_forward.3} parent=5 // pred_check
        %p125 = pneg %p124
      $region22: #{lenet_forward.3} parent=5 // pred_check_branch
        %127 = sbr.rel (%p125) target = $region24
      $region23: #{lenet_forward.3} parent=5 // pred_region
        // Predicated region
        $region25: #{lenet_forward.3} parent=23 // pred_check
          %p128 = pneg %p29
        $region26: #{lenet_forward.3} parent=23 // pred_check_branch
          %130 = sbr.rel (%p128) target = $region28
        $region27: #{lenet_forward.3} parent=23 // pred_region
          %s131 = sand.u32 %s19, 1
          %s132 = sand.u32 %s19, 1
          %s133 = smul.addr %s132, 288
          %s134 = scalar_lea.vmem [#allocation2], %s133
          %s135 = smul.u32 18, %s9
          %s136 = smul.addr %s135, 4
          %s137 = scalar_lea.vmem %s0, %s136
          // Predicated region
          $region29: #{lenet_forward.3} parent=27 // pred_check
            _
          $region30: #{lenet_forward.3} parent=27 // pred_check_branch
            %139 = sbr.rel (0) target = $region32
          $region31: #{lenet_forward.3} parent=27 // pred_region
            // Predicated region
            $region33: #{lenet_forward.3} parent=31 // pred_check
              _
            $region34: #{lenet_forward.3} parent=31 // pred_check_branch
              %141 = sbr.rel target = $region36
            $region35: #{lenet_forward.3} parent=31 // pred_region
              // Predicated region
              $region48: #{lenet_forward.3} parent=35 // pred_check
                _
              $region49: #{lenet_forward.3} parent=35 // pred_check_branch
                %299 = sbr.rel (0) target = $region51
              $region50: #{lenet_forward.3} parent=35 // pred_region
                loop: start=0, step=1, limit=1
                $region52: #{lenet_forward.3} parent=50 // loop_pre_header
                  _
                $region53: #{lenet_forward.3} parent=50 // loop_header
                  %s301 = sphi 0, %s305
                  %p302 = scmp.ge.s32.totalorder %s301, 1
                  %s306 = sphi %s137, %s137
                  %s307 = sphi %s134, %s134
                $region54: #{lenet_forward.3} parent=50 // loop_header_branch
                  %304 = sbr.rel (%p302) target = $region58
                $region55: #{lenet_forward.3} parent=50 // loop_body
                  _
                $region56: #{lenet_forward.3} parent=50 // loop_footer
                  %s305 = sadd.s32 1, %s301
                $region57: #{lenet_forward.3} parent=50 // loop_footer_branch
                  %300 = sbr.rel target = $region53
                $region58: #{lenet_forward.3} parent=50 // loop_exit
                  _
                %s309 = ssub.s32 16, 1
                loop: start=0, step=1, limit=1
                $region59: #{lenet_forward.3} parent=50 // loop_pre_header
                  _
                $region60: #{lenet_forward.3} parent=50 // loop_header
                  %s311 = sphi 0, %s315
                  %p312 = scmp.ge.s32.totalorder %s311, 1
                  %s316 = sphi %s137, %s137
                  %s317 = sphi %s134, %s134
                $region61: #{lenet_forward.3} parent=50 // loop_header_branch
                  %314 = sbr.rel (%p312) target = $region65
                $region62: #{lenet_forward.3} parent=50 // loop_body
                  %v318 = vld [vmem:[%s316] sm:%s309]
                  %319 = vst [vmem:[%s317] sm:%s309] %v318
                  %v320 = vld [vmem:[%s316 + $0x4] sm:%s309]
                  %321 = vst [vmem:[%s317 + $0x4] sm:%s309] %v320
                  %v322 = vld [vmem:[%s316 + $0x8] sm:%s309]
                  %323 = vst [vmem:[%s317 + $0x8] sm:%s309] %v322
                  %v324 = vld [vmem:[%s316 + $0xc] sm:%s309]
                  %325 = vst [vmem:[%s317 + $0xc] sm:%s309] %v324
                  %v326 = vld [vmem:[%s316 + $0x10] sm:%s309]
                  %327 = vst [vmem:[%s317 + $0x10] sm:%s309] %v326
                  %v328 = vld [vmem:[%s316 + $0x14] sm:%s309]
                  %329 = vst [vmem:[%s317 + $0x14] sm:%s309] %v328
                  %v330 = vld [vmem:[%s316 + $0x18] sm:%s309]
                  %331 = vst [vmem:[%s317 + $0x18] sm:%s309] %v330
                  %v332 = vld [vmem:[%s316 + $0x1c] sm:%s309]
                  %333 = vst [vmem:[%s317 + $0x1c] sm:%s309] %v332
                  %v334 = vld [vmem:[%s316 + $0x20] sm:%s309]
                  %335 = vst [vmem:[%s317 + $0x20] sm:%s309] %v334
                  %v336 = vld [vmem:[%s316 + $0x24] sm:%s309]
                  %337 = vst [vmem:[%s317 + $0x24] sm:%s309] %v336
                  %v338 = vld [vmem:[%s316 + $0x28] sm:%s309]
                  %339 = vst [vmem:[%s317 + $0x28] sm:%s309] %v338
                  %v340 = vld [vmem:[%s316 + $0x2c] sm:%s309]
                  %341 = vst [vmem:[%s317 + $0x2c] sm:%s309] %v340
                  %v342 = vld [vmem:[%s316 + $0x30] sm:%s309]
                  %343 = vst [vmem:[%s317 + $0x30] sm:%s309] %v342
                  %v344 = vld [vmem:[%s316 + $0x34] sm:%s309]
                  %345 = vst [vmem:[%s317 + $0x34] sm:%s309] %v344
                  %v346 = vld [vmem:[%s316 + $0x38] sm:%s309]
                  %347 = vst [vmem:[%s317 + $0x38] sm:%s309] %v346
                  %v348 = vld [vmem:[%s316 + $0x3c] sm:%s309]
                  %349 = vst [vmem:[%s317 + $0x3c] sm:%s309] %v348
                  %v350 = vld [vmem:[%s316 + $0x40] sm:%s309]
                  %351 = vst [vmem:[%s317 + $0x40] sm:%s309] %v350
                  %v352 = vld [vmem:[%s316 + $0x44] sm:%s309]
                  %353 = vst [vmem:[%s317 + $0x44] sm:%s309] %v352
                  %v354 = vld [vmem:[%s316 + $0x90] sm:%s309]
                  %355 = vst [vmem:[%s317 + $0x48] sm:%s309] %v354
                  %v356 = vld [vmem:[%s316 + $0x94] sm:%s309]
                  %357 = vst [vmem:[%s317 + $0x4c] sm:%s309] %v356
                  %v358 = vld [vmem:[%s316 + $0x98] sm:%s309]
                  %359 = vst [vmem:[%s317 + $0x50] sm:%s309] %v358
                  %v360 = vld [vmem:[%s316 + $0x9c] sm:%s309]
                  %361 = vst [vmem:[%s317 + $0x54] sm:%s309] %v360
                  %v362 = vld [vmem:[%s316 + $0xa0] sm:%s309]
                  %363 = vst [vmem:[%s317 + $0x58] sm:%s309] %v362
                  %v364 = vld [vmem:[%s316 + $0xa4] sm:%s309]
                  %365 = vst [vmem:[%s317 + $0x5c] sm:%s309] %v364
                  %v366 = vld [vmem:[%s316 + $0xa8] sm:%s309]
                  %367 = vst [vmem:[%s317 + $0x60] sm:%s309] %v366
                  %v368 = vld [vmem:[%s316 + $0xac] sm:%s309]
                  %369 = vst [vmem:[%s317 + $0x64] sm:%s309] %v368
                  %v370 = vld [vmem:[%s316 + $0xb0] sm:%s309]
                  %371 = vst [vmem:[%s317 + $0x68] sm:%s309] %v370
                  %v372 = vld [vmem:[%s316 + $0xb4] sm:%s309]
                  %373 = vst [vmem:[%s317 + $0x6c] sm:%s309] %v372
                  %v374 = vld [vmem:[%s316 + $0xb8] sm:%s309]
                  %375 = vst [vmem:[%s317 + $0x70] sm:%s309] %v374
                  %v376 = vld [vmem:[%s316 + $0xbc] sm:%s309]
                  %377 = vst [vmem:[%s317 + $0x74] sm:%s309] %v376
                  %v378 = vld [vmem:[%s316 + $0xc0] sm:%s309]
                  %379 = vst [vmem:[%s317 + $0x78] sm:%s309] %v378
                  %v380 = vld [vmem:[%s316 + $0xc4] sm:%s309]
                  %381 = vst [vmem:[%s317 + $0x7c] sm:%s309] %v380
                  %v382 = vld [vmem:[%s316 + $0xc8] sm:%s309]
                  %383 = vst [vmem:[%s317 + $0x80] sm:%s309] %v382
                  %v384 = vld [vmem:[%s316 + $0xcc] sm:%s309]
                  %385 = vst [vmem:[%s317 + $0x84] sm:%s309] %v384
                  %v386 = vld [vmem:[%s316 + $0xd0] sm:%s309]
                  %387 = vst [vmem:[%s317 + $0x88] sm:%s309] %v386
                  %v388 = vld [vmem:[%s316 + $0xd4] sm:%s309]
                  %389 = vst [vmem:[%s317 + $0x8c] sm:%s309] %v388
                  %v390 = vld [vmem:[%s316 + $0x120] sm:%s309]
                  %391 = vst [vmem:[%s317 + $0x90] sm:%s309] %v390
                  %v392 = vld [vmem:[%s316 + $0x124] sm:%s309]
                  %393 = vst [vmem:[%s317 + $0x94] sm:%s309] %v392
                  %v394 = vld [vmem:[%s316 + $0x128] sm:%s309]
                  %395 = vst [vmem:[%s317 + $0x98] sm:%s309] %v394
                  %v396 = vld [vmem:[%s316 + $0x12c] sm:%s309]
                  %397 = vst [vmem:[%s317 + $0x9c] sm:%s309] %v396
                  %v398 = vld [vmem:[%s316 + $0x130] sm:%s309]
                  %399 = vst [vmem:[%s317 + $0xa0] sm:%s309] %v398
                  %v400 = vld [vmem:[%s316 + $0x134] sm:%s309]
                  %401 = vst [vmem:[%s317 + $0xa4] sm:%s309] %v400
                  %v402 = vld [vmem:[%s316 + $0x138] sm:%s309]
                  %403 = vst [vmem:[%s317 + $0xa8] sm:%s309] %v402
                  %v404 = vld [vmem:[%s316 + $0x13c] sm:%s309]
                  %405 = vst [vmem:[%s317 + $0xac] sm:%s309] %v404
                  %v406 = vld [vmem:[%s316 + $0x140] sm:%s309]
                  %407 = vst [vmem:[%s317 + $0xb0] sm:%s309] %v406
                  %v408 = vld [vmem:[%s316 + $0x144] sm:%s309]
                  %409 = vst [vmem:[%s317 + $0xb4] sm:%s309] %v408
                  %v410 = vld [vmem:[%s316 + $0x148] sm:%s309]
                  %411 = vst [vmem:[%s317 + $0xb8] sm:%s309] %v410
                  %v412 = vld [vmem:[%s316 + $0x14c] sm:%s309]
                  %413 = vst [vmem:[%s317 + $0xbc] sm:%s309] %v412
                  %v414 = vld [vmem:[%s316 + $0x150] sm:%s309]
                  %415 = vst [vmem:[%s317 + $0xc0] sm:%s309] %v414
                  %v416 = vld [vmem:[%s316 + $0x154] sm:%s309]
                  %417 = vst [vmem:[%s317 + $0xc4] sm:%s309] %v416
                  %v418 = vld [vmem:[%s316 + $0x158] sm:%s309]
                  %419 = vst [vmem:[%s317 + $0xc8] sm:%s309] %v418
                  %v420 = vld [vmem:[%s316 + $0x15c] sm:%s309]
                  %421 = vst [vmem:[%s317 + $0xcc] sm:%s309] %v420
                  %v422 = vld [vmem:[%s316 + $0x160] sm:%s309]
                  %423 = vst [vmem:[%s317 + $0xd0] sm:%s309] %v422
                  %v424 = vld [vmem:[%s316 + $0x164] sm:%s309]
                  %425 = vst [vmem:[%s317 + $0xd4] sm:%s309] %v424
                  %v426 = vld [vmem:[%s316 + $0x1b0] sm:%s309]
                  %427 = vst [vmem:[%s317 + $0xd8] sm:%s309] %v426
                  %v428 = vld [vmem:[%s316 + $0x1b4] sm:%s309]
                  %429 = vst [vmem:[%s317 + $0xdc] sm:%s309] %v428
                  %v430 = vld [vmem:[%s316 + $0x1b8] sm:%s309]
                  %431 = vst [vmem:[%s317 + $0xe0] sm:%s309] %v430
                  %v432 = vld [vmem:[%s316 + $0x1bc] sm:%s309]
                  %433 = vst [vmem:[%s317 + $0xe4] sm:%s309] %v432
                  %v434 = vld [vmem:[%s316 + $0x1c0] sm:%s309]
                  %435 = vst [vmem:[%s317 + $0xe8] sm:%s309] %v434
                  %v436 = vld [vmem:[%s316 + $0x1c4] sm:%s309]
                  %437 = vst [vmem:[%s317 + $0xec] sm:%s309] %v436
                  %v438 = vld [vmem:[%s316 + $0x1c8] sm:%s309]
                  %439 = vst [vmem:[%s317 + $0xf0] sm:%s309] %v438
                  %v440 = vld [vmem:[%s316 + $0x1cc] sm:%s309]
                  %441 = vst [vmem:[%s317 + $0xf4] sm:%s309] %v440
                  %v442 = vld [vmem:[%s316 + $0x1d0] sm:%s309]
                  %443 = vst [vmem:[%s317 + $0xf8] sm:%s309] %v442
                  %v444 = vld [vmem:[%s316 + $0x1d4] sm:%s309]
                  %445 = vst [vmem:[%s317 + $0xfc] sm:%s309] %v444
                  %v446 = vld [vmem:[%s316 + $0x1d8] sm:%s309]
                  %447 = vst [vmem:[%s317 + $0x100] sm:%s309] %v446
                  %v448 = vld [vmem:[%s316 + $0x1dc] sm:%s309]
                  %449 = vst [vmem:[%s317 + $0x104] sm:%s309] %v448
                  %v450 = vld [vmem:[%s316 + $0x1e0] sm:%s309]
                  %451 = vst [vmem:[%s317 + $0x108] sm:%s309] %v450
                  %v452 = vld [vmem:[%s316 + $0x1e4] sm:%s309]
                  %453 = vst [vmem:[%s317 + $0x10c] sm:%s309] %v452
                  %v454 = vld [vmem:[%s316 + $0x1e8] sm:%s309]
                  %455 = vst [vmem:[%s317 + $0x110] sm:%s309] %v454
                  %v456 = vld [vmem:[%s316 + $0x1ec] sm:%s309]
                  %457 = vst [vmem:[%s317 + $0x114] sm:%s309] %v456
                  %v458 = vld [vmem:[%s316 + $0x1f0] sm:%s309]
                  %459 = vst [vmem:[%s317 + $0x118] sm:%s309] %v458
                  %v460 = vld [vmem:[%s316 + $0x1f4] sm:%s309]
                  %461 = vst [vmem:[%s317 + $0x11c] sm:%s309] %v460
                $region63: #{lenet_forward.3} parent=50 // loop_footer
                  %s315 = sadd.s32 1, %s311
                $region64: #{lenet_forward.3} parent=50 // loop_footer_branch
                  %310 = sbr.rel target = $region60
                $region65: #{lenet_forward.3} parent=50 // loop_exit
                  _
              $region51: #{lenet_forward.3} parent=35 // pred_fallthru
                _
            $region36: #{lenet_forward.3} parent=31 // pred_fallthru
              _
            // Predicated region
            $region37: #{lenet_forward.3} parent=31 // pred_check
              _
            $region38: #{lenet_forward.3} parent=31 // pred_check_branch
              %143 = sbr.rel (0) target = $region40
            $region39: #{lenet_forward.3} parent=31 // pred_region
              %s145 = ssub.s32 16, 1
              loop: start=0, step=1, limit=1
              $region41: #{lenet_forward.3} parent=39 // loop_pre_header
                _
              $region42: #{lenet_forward.3} parent=39 // loop_header
                %s147 = sphi 0, %s151
                %p148 = scmp.ge.s32.totalorder %s147, 1
                %s152 = sphi %s137, %s137
                %s153 = sphi %s134, %s134
              $region43: #{lenet_forward.3} parent=39 // loop_header_branch
                %150 = sbr.rel (%p148) target = $region47
              $region44: #{lenet_forward.3} parent=39 // loop_body
                %v154 = vld [vmem:[%s152] sm:%s145]
                %155 = vst [vmem:[%s153] sm:%s145] %v154
                %v156 = vld [vmem:[%s152 + $0x4] sm:%s145]
                %157 = vst [vmem:[%s153 + $0x4] sm:%s145] %v156
                %v158 = vld [vmem:[%s152 + $0x8] sm:%s145]
                %159 = vst [vmem:[%s153 + $0x8] sm:%s145] %v158
                %v160 = vld [vmem:[%s152 + $0xc] sm:%s145]
                %161 = vst [vmem:[%s153 + $0xc] sm:%s145] %v160
                %v162 = vld [vmem:[%s152 + $0x10] sm:%s145]
                %163 = vst [vmem:[%s153 + $0x10] sm:%s145] %v162
                %v164 = vld [vmem:[%s152 + $0x14] sm:%s145]
                %165 = vst [vmem:[%s153 + $0x14] sm:%s145] %v164
                %v166 = vld [vmem:[%s152 + $0x18] sm:%s145]
                %167 = vst [vmem:[%s153 + $0x18] sm:%s145] %v166
                %v168 = vld [vmem:[%s152 + $0x1c] sm:%s145]
                %169 = vst [vmem:[%s153 + $0x1c] sm:%s145] %v168
                %v170 = vld [vmem:[%s152 + $0x20] sm:%s145]
                %171 = vst [vmem:[%s153 + $0x20] sm:%s145] %v170
                %v172 = vld [vmem:[%s152 + $0x24] sm:%s145]
                %173 = vst [vmem:[%s153 + $0x24] sm:%s145] %v172
                %v174 = vld [vmem:[%s152 + $0x28] sm:%s145]
                %175 = vst [vmem:[%s153 + $0x28] sm:%s145] %v174
                %v176 = vld [vmem:[%s152 + $0x2c] sm:%s145]
                %177 = vst [vmem:[%s153 + $0x2c] sm:%s145] %v176
                %v178 = vld [vmem:[%s152 + $0x30] sm:%s145]
                %179 = vst [vmem:[%s153 + $0x30] sm:%s145] %v178
                %v180 = vld [vmem:[%s152 + $0x34] sm:%s145]
                %181 = vst [vmem:[%s153 + $0x34] sm:%s145] %v180
                %v182 = vld [vmem:[%s152 + $0x38] sm:%s145]
                %183 = vst [vmem:[%s153 + $0x38] sm:%s145] %v182
                %v184 = vld [vmem:[%s152 + $0x3c] sm:%s145]
                %185 = vst [vmem:[%s153 + $0x3c] sm:%s145] %v184
                %v186 = vld [vmem:[%s152 + $0x40] sm:%s145]
                %187 = vst [vmem:[%s153 + $0x40] sm:%s145] %v186
                %v188 = vld [vmem:[%s152 + $0x44] sm:%s145]
                %189 = vst [vmem:[%s153 + $0x44] sm:%s145] %v188
                %v190 = vld [vmem:[%s152 + $0x90] sm:%s145]
                %191 = vst [vmem:[%s153 + $0x48] sm:%s145] %v190
                %v192 = vld [vmem:[%s152 + $0x94] sm:%s145]
                %193 = vst [vmem:[%s153 + $0x4c] sm:%s145] %v192
                %v194 = vld [vmem:[%s152 + $0x98] sm:%s145]
                %195 = vst [vmem:[%s153 + $0x50] sm:%s145] %v194
                %v196 = vld [vmem:[%s152 + $0x9c] sm:%s145]
                %197 = vst [vmem:[%s153 + $0x54] sm:%s145] %v196
                %v198 = vld [vmem:[%s152 + $0xa0] sm:%s145]
                %199 = vst [vmem:[%s153 + $0x58] sm:%s145] %v198
                %v200 = vld [vmem:[%s152 + $0xa4] sm:%s145]
                %201 = vst [vmem:[%s153 + $0x5c] sm:%s145] %v200
                %v202 = vld [vmem:[%s152 + $0xa8] sm:%s145]
                %203 = vst [vmem:[%s153 + $0x60] sm:%s145] %v202
                %v204 = vld [vmem:[%s152 + $0xac] sm:%s145]
                %205 = vst [vmem:[%s153 + $0x64] sm:%s145] %v204
                %v206 = vld [vmem:[%s152 + $0xb0] sm:%s145]
                %207 = vst [vmem:[%s153 + $0x68] sm:%s145] %v206
                %v208 = vld [vmem:[%s152 + $0xb4] sm:%s145]
                %209 = vst [vmem:[%s153 + $0x6c] sm:%s145] %v208
                %v210 = vld [vmem:[%s152 + $0xb8] sm:%s145]
                %211 = vst [vmem:[%s153 + $0x70] sm:%s145] %v210
                %v212 = vld [vmem:[%s152 + $0xbc] sm:%s145]
                %213 = vst [vmem:[%s153 + $0x74] sm:%s145] %v212
                %v214 = vld [vmem:[%s152 + $0xc0] sm:%s145]
                %215 = vst [vmem:[%s153 + $0x78] sm:%s145] %v214
                %v216 = vld [vmem:[%s152 + $0xc4] sm:%s145]
                %217 = vst [vmem:[%s153 + $0x7c] sm:%s145] %v216
                %v218 = vld [vmem:[%s152 + $0xc8] sm:%s145]
                %219 = vst [vmem:[%s153 + $0x80] sm:%s145] %v218
                %v220 = vld [vmem:[%s152 + $0xcc] sm:%s145]
                %221 = vst [vmem:[%s153 + $0x84] sm:%s145] %v220
                %v222 = vld [vmem:[%s152 + $0xd0] sm:%s145]
                %223 = vst [vmem:[%s153 + $0x88] sm:%s145] %v222
                %v224 = vld [vmem:[%s152 + $0xd4] sm:%s145]
                %225 = vst [vmem:[%s153 + $0x8c] sm:%s145] %v224
                %v226 = vld [vmem:[%s152 + $0x120] sm:%s145]
                %227 = vst [vmem:[%s153 + $0x90] sm:%s145] %v226
                %v228 = vld [vmem:[%s152 + $0x124] sm:%s145]
                %229 = vst [vmem:[%s153 + $0x94] sm:%s145] %v228
                %v230 = vld [vmem:[%s152 + $0x128] sm:%s145]
                %231 = vst [vmem:[%s153 + $0x98] sm:%s145] %v230
                %v232 = vld [vmem:[%s152 + $0x12c] sm:%s145]
                %233 = vst [vmem:[%s153 + $0x9c] sm:%s145] %v232
                %v234 = vld [vmem:[%s152 + $0x130] sm:%s145]
                %235 = vst [vmem:[%s153 + $0xa0] sm:%s145] %v234
                %v236 = vld [vmem:[%s152 + $0x134] sm:%s145]
                %237 = vst [vmem:[%s153 + $0xa4] sm:%s145] %v236
                %v238 = vld [vmem:[%s152 + $0x138] sm:%s145]
                %239 = vst [vmem:[%s153 + $0xa8] sm:%s145] %v238
                %v240 = vld [vmem:[%s152 + $0x13c] sm:%s145]
                %241 = vst [vmem:[%s153 + $0xac] sm:%s145] %v240
                %v242 = vld [vmem:[%s152 + $0x140] sm:%s145]
                %243 = vst [vmem:[%s153 + $0xb0] sm:%s145] %v242
                %v244 = vld [vmem:[%s152 + $0x144] sm:%s145]
                %245 = vst [vmem:[%s153 + $0xb4] sm:%s145] %v244
                %v246 = vld [vmem:[%s152 + $0x148] sm:%s145]
                %247 = vst [vmem:[%s153 + $0xb8] sm:%s145] %v246
                %v248 = vld [vmem:[%s152 + $0x14c] sm:%s145]
                %249 = vst [vmem:[%s153 + $0xbc] sm:%s145] %v248
                %v250 = vld [vmem:[%s152 + $0x150] sm:%s145]
                %251 = vst [vmem:[%s153 + $0xc0] sm:%s145] %v250
                %v252 = vld [vmem:[%s152 + $0x154] sm:%s145]
                %253 = vst [vmem:[%s153 + $0xc4] sm:%s145] %v252
                %v254 = vld [vmem:[%s152 + $0x158] sm:%s145]
                %255 = vst [vmem:[%s153 + $0xc8] sm:%s145] %v254
                %v256 = vld [vmem:[%s152 + $0x15c] sm:%s145]
                %257 = vst [vmem:[%s153 + $0xcc] sm:%s145] %v256
                %v258 = vld [vmem:[%s152 + $0x160] sm:%s145]
                %259 = vst [vmem:[%s153 + $0xd0] sm:%s145] %v258
                %v260 = vld [vmem:[%s152 + $0x164] sm:%s145]
                %261 = vst [vmem:[%s153 + $0xd4] sm:%s145] %v260
                %v262 = vld [vmem:[%s152 + $0x1b0] sm:%s145]
                %263 = vst [vmem:[%s153 + $0xd8] sm:%s145] %v262
                %v264 = vld [vmem:[%s152 + $0x1b4] sm:%s145]
                %265 = vst [vmem:[%s153 + $0xdc] sm:%s145] %v264
                %v266 = vld [vmem:[%s152 + $0x1b8] sm:%s145]
                %267 = vst [vmem:[%s153 + $0xe0] sm:%s145] %v266
                %v268 = vld [vmem:[%s152 + $0x1bc] sm:%s145]
                %269 = vst [vmem:[%s153 + $0xe4] sm:%s145] %v268
                %v270 = vld [vmem:[%s152 + $0x1c0] sm:%s145]
                %271 = vst [vmem:[%s153 + $0xe8] sm:%s145] %v270
                %v272 = vld [vmem:[%s152 + $0x1c4] sm:%s145]
                %273 = vst [vmem:[%s153 + $0xec] sm:%s145] %v272
                %v274 = vld [vmem:[%s152 + $0x1c8] sm:%s145]
                %275 = vst [vmem:[%s153 + $0xf0] sm:%s145] %v274
                %v276 = vld [vmem:[%s152 + $0x1cc] sm:%s145]
                %277 = vst [vmem:[%s153 + $0xf4] sm:%s145] %v276
                %v278 = vld [vmem:[%s152 + $0x1d0] sm:%s145]
                %279 = vst [vmem:[%s153 + $0xf8] sm:%s145] %v278
                %v280 = vld [vmem:[%s152 + $0x1d4] sm:%s145]
                %281 = vst [vmem:[%s153 + $0xfc] sm:%s145] %v280
                %v282 = vld [vmem:[%s152 + $0x1d8] sm:%s145]
                %283 = vst [vmem:[%s153 + $0x100] sm:%s145] %v282
                %v284 = vld [vmem:[%s152 + $0x1dc] sm:%s145]
                %285 = vst [vmem:[%s153 + $0x104] sm:%s145] %v284
                %v286 = vld [vmem:[%s152 + $0x1e0] sm:%s145]
                %287 = vst [vmem:[%s153 + $0x108] sm:%s145] %v286
                %v288 = vld [vmem:[%s152 + $0x1e4] sm:%s145]
                %289 = vst [vmem:[%s153 + $0x10c] sm:%s145] %v288
                %v290 = vld [vmem:[%s152 + $0x1e8] sm:%s145]
                %291 = vst [vmem:[%s153 + $0x110] sm:%s145] %v290
                %v292 = vld [vmem:[%s152 + $0x1ec] sm:%s145]
                %293 = vst [vmem:[%s153 + $0x114] sm:%s145] %v292
                %v294 = vld [vmem:[%s152 + $0x1f0] sm:%s145]
                %295 = vst [vmem:[%s153 + $0x118] sm:%s145] %v294
                %v296 = vld [vmem:[%s152 + $0x1f4] sm:%s145]
                %297 = vst [vmem:[%s153 + $0x11c] sm:%s145] %v296
              $region45: #{lenet_forward.3} parent=39 // loop_footer
                %s151 = sadd.s32 1, %s147
              $region46: #{lenet_forward.3} parent=39 // loop_footer_branch
                %146 = sbr.rel target = $region42
              $region47: #{lenet_forward.3} parent=39 // loop_exit
                _
            $region40: #{lenet_forward.3} parent=31 // pred_fallthru
              _
          $region32: #{lenet_forward.3} parent=27 // pred_fallthru
            _
          %462 = vnop
        $region28: #{lenet_forward.3} parent=23 // pred_fallthru
          _
      $region24: #{lenet_forward.3} parent=5 // pred_fallthru
        _
      %p463 = scmp.le.s32.totalorder 1, %s9
      %p464 = scmp.lt.s32.totalorder %s9, 3
      %p465 = pnand %p463, %p464
      %p466 = pneg %p465
      // Predicated region
      $region66: #{lenet_forward.3} parent=5 // pred_check
        _
      $region67: #{lenet_forward.3} parent=5 // pred_check_branch
        %468 = sbr.rel (%p465) target = $region69
      $region68: #{lenet_forward.3} parent=5 // pred_region
        %s469 = ssub.s32 %s9, 1
        %s470 = sand.u32 %s22, 1
        %s471 = sand.u32 %s22, 1
        %s472 = smul.addr %s471, 288
        %s473 = scalar_lea.vmem [#allocation2], %s472
        // Predicated region
        $region70: #{lenet_forward.3} parent=68 // pred_check
          %p474 = pneg %p35
        $region71: #{lenet_forward.3} parent=68 // pred_check_branch
          %476 = sbr.rel (%p474) target = $region73
        $region72: #{lenet_forward.3} parent=68 // pred_region
          _
        $region73: #{lenet_forward.3} parent=68 // pred_fallthru
          _
        %s477 = sand.u32 %s22, 1
        %s478 = sand.u32 %s22, 1
        %s479 = smul.addr %s478, 288
        %s480 = scalar_lea.vmem [#allocation2], %s479
        %p481 = pneg %p35
        %p482 = pneg %p32
        %p483 = pneg %p56
        %p484 = pneg %p53
        %p485 = pneg %p77
        %p486 = pneg %p74
        %p487 = pneg %p103
        %p488 = pneg %p100
        %s489 = smul.u32 18, %s14
        %p490 = scmp.lt.s32.totalorder %s489, 35
        %s491 = scalar_select %p490, %s489, 35
        %s492 = smul.addr %s491, 4
        %s493 = scalar_lea.vmem %s3, %s492
        %s494 = smul.u32 18, %s14
        %s495 = smul.u32 18, %s14
        %p496 = scmp.lt.s32.totalorder %s495, 35
        %s497 = scalar_select %p496, %s495, 35
        %s498 = smul.addr %s497, 4
        %s499 = scalar_lea.vmem %s3, %s498
        %s500 = smul.u32 18, %s14
        %v502 = vld [vmem:[%s1] sm:$0xf]
        %v503 = vld [vmem:[%s1 + $0x4] sm:$0xf]
        %v504 = vld [vmem:[%s1 + $0x8] sm:$0xf]
        %v505 = vld [vmem:[%s1 + $0xc] sm:$0x1]
        %v506 = vld [vmem:[%s473] sm:$0xf]
        %v507 = vld [vmem:[%s473 + $0x4] sm:$0xf]
        %v508 = vld [vmem:[%s473 + $0x8] sm:$0xf]
        %v509 = vld [vmem:[%s473 + $0xc] sm:$0xf]
        %v510 = vld [vmem:[%s473 + $0x10] sm:$0xf]
        %v511 = vld [vmem:[%s473 + $0x14] sm:$0xf]
        %v512 = vld [vmem:[%s473 + $0x18] sm:$0xf]
        %v513 = vld [vmem:[%s473 + $0x1c] sm:$0xf]
        %v514 = vld [vmem:[%s473 + $0x20] sm:$0xf]
        %v515 = vld [vmem:[%s473 + $0x24] sm:$0xf]
        %v516 = vld [vmem:[%s473 + $0x28] sm:$0xf]
        %v517 = vld [vmem:[%s473 + $0x2c] sm:$0xf]
        %v518 = vld [vmem:[%s473 + $0x30] sm:$0xf]
        %v519 = vld [vmem:[%s473 + $0x34] sm:$0xf]
        %v520 = vld [vmem:[%s473 + $0x38] sm:$0xf]
        %v521 = vld [vmem:[%s473 + $0x3c] sm:$0xf]
        %v522 = vld [vmem:[%s473 + $0x40] sm:$0xf]
        %v523 = vld [vmem:[%s473 + $0x44] sm:$0xf]
        %v542 = vunpack.c.l.b16 %v506
        %v543 = vunpack.c.l.b16 %v507
        %v544 = vunpack.c.l.b16 %v508
        %v545 = vunpack.c.l.b16 %v509
        %v546 = vunpack.c.l.b16 %v510
        %v547 = vunpack.c.l.b16 %v511
        %v548 = vunpack.c.l.b16 %v512
        %v549 = vunpack.c.l.b16 %v513
        %v550 = vunpack.c.l.b16 %v514
        %v551 = vunpack.c.l.b16 %v515
        %v552 = vunpack.c.l.b16 %v516
        %v553 = vunpack.c.l.b16 %v517
        %v554 = vunpack.c.l.b16 %v518
        %v555 = vunpack.c.l.b16 %v519
        %v556 = vunpack.c.l.b16 %v520
        %v557 = vunpack.c.l.b16 %v521
        %v558 = vunpack.c.l.b16 %v522
        %v559 = vunpack.c.l.b16 %v523
        %v560 = vpack.c.b16 %v543, %v542
        %v561 = vpack.c.b16 %v545, %v544
        %v562 = vpack.c.b16 %v547, %v546
        %v563 = vpack.c.b16 %v549, %v548
        %v564 = vpack.c.b16 %v551, %v550
        %v565 = vpack.c.b16 %v553, %v552
        %v566 = vpack.c.b16 %v555, %v554
        %v567 = vpack.c.b16 %v557, %v556
        %v568 = vpack.c.b16 %v559, %v558
        %v573 = vunpack.c.l.b16 %v502
        %v574 = vunpack.c.l.b16 %v503
        %v575 = vunpack.c.l.b16 %v504
        %v576 = vunpack.c.l.b16 %v505
        %v577 = vpack.c.b16 %v574, %v573
        %v578 = vpack.c.b16 %v576, %v575
        %vm580 = vcmask 203776
        %v582 = vsel %vm580, %v560, 0
        %v585 = vsel %vm580, %v561, 0
        %v588 = vsel %vm580, %v562, 0
        %v591 = vsel %vm580, %v563, 0
        %v594 = vsel %vm580, %v564, 0
        %v597 = vsel %vm580, %v565, 0
        %v600 = vsel %vm580, %v566, 0
        %v603 = vsel %vm580, %v567, 0
        %v606 = vsel %vm580, %v568, 0
        %vm608 = vcmask 1043456
        %vm609 = vcmask 1044480
        %v610 = vsel %vm608, 4294967295, 65535
        %v611 = vsel %vm609, %v610, 0
        %v613 = vand.u32 %v578, %v611
        %615 = vmatpush.bf16.msra.mxu0 0
        %616 = vmatpush.bf16.msra.mxu0 0
        %617 = vmatpush.bf16.msra.mxu0 0
        %618 = vmatpush.bf16.msra.mxu0 0
        %619 = vmatpush.bf16.msra.mxu0 0
        %620 = vmatpush.bf16.msra.mxu0 0
        %621 = vmatpush.bf16.msra.mxu0 %v613
        %622 = vmatpush.bf16.msra.mxu0 %v577
        %623 = vmatmul.bf16.gmra.mxu0 %v582
        %v624 = vpop.f32.mrf.mxu0
        %v625 = vadd.f32 0.0, %v624
        %v626 = vpop.f32.mrf.mxu0
        %v627 = vadd.f32 0.0, %v626
        %628 = vmatmul.bf16.gmra.mxu0 %v585
        %v629 = vpop.f32.mrf.mxu0
        %v630 = vadd.f32 0.0, %v629
        %v631 = vpop.f32.mrf.mxu0
        %v632 = vadd.f32 0.0, %v631
        %633 = vmatmul.bf16.gmra.mxu0 %v588
        %v634 = vpop.f32.mrf.mxu0
        %v635 = vadd.f32 0.0, %v634
        %v636 = vpop.f32.mrf.mxu0
        %v637 = vadd.f32 0.0, %v636
        %638 = vmatmul.bf16.gmra.mxu0 %v591
        %v639 = vpop.f32.mrf.mxu0
        %v640 = vadd.f32 0.0, %v639
        %v641 = vpop.f32.mrf.mxu0
        %v642 = vadd.f32 0.0, %v641
        %643 = vmatmul.bf16.gmra.mxu0 %v594
        %v644 = vpop.f32.mrf.mxu0
        %v645 = vadd.f32 0.0, %v644
        %v646 = vpop.f32.mrf.mxu0
        %v647 = vadd.f32 0.0, %v646
        %648 = vmatmul.bf16.gmra.mxu0 %v597
        %v649 = vpop.f32.mrf.mxu0
        %v650 = vadd.f32 0.0, %v649
        %v651 = vpop.f32.mrf.mxu0
        %v652 = vadd.f32 0.0, %v651
        %653 = vmatmul.bf16.gmra.mxu0 %v600
        %v654 = vpop.f32.mrf.mxu0
        %v655 = vadd.f32 0.0, %v654
        %v656 = vpop.f32.mrf.mxu0
        %v657 = vadd.f32 0.0, %v656
        %658 = vmatmul.bf16.gmra.mxu0 %v603
        %v659 = vpop.f32.mrf.mxu0
        %v660 = vadd.f32 0.0, %v659
        %v661 = vpop.f32.mrf.mxu0
        %v662 = vadd.f32 0.0, %v661
        %663 = vmatmul.bf16.gmra.mxu0 %v606
        %v664 = vpop.f32.mrf.mxu0
        %v665 = vadd.f32 0.0, %v664
        %v666 = vpop.f32.mrf.mxu0
        %v667 = vadd.f32 0.0, %v666
        %668 = vdwg.mxu0
        %s669 = scalar_lea.vmem %s473, 72 [#allocation2]
        %v670 = vld [vmem:[%s669] sm:$0xf]
        %v671 = vld [vmem:[%s669 + $0x4] sm:$0xf]
        %v672 = vld [vmem:[%s669 + $0x8] sm:$0xf]
        %v673 = vld [vmem:[%s669 + $0xc] sm:$0xf]
        %v674 = vld [vmem:[%s669 + $0x10] sm:$0xf]
        %v675 = vld [vmem:[%s669 + $0x14] sm:$0xf]
        %v676 = vld [vmem:[%s669 + $0x18] sm:$0xf]
        %v677 = vld [vmem:[%s669 + $0x1c] sm:$0xf]
        %v678 = vld [vmem:[%s669 + $0x20] sm:$0xf]
        %v679 = vld [vmem:[%s669 + $0x24] sm:$0xf]
        %v680 = vld [vmem:[%s669 + $0x28] sm:$0xf]
        %v681 = vld [vmem:[%s669 + $0x2c] sm:$0xf]
        %v682 = vld [vmem:[%s669 + $0x30] sm:$0xf]
        %v683 = vld [vmem:[%s669 + $0x34] sm:$0xf]
        %v684 = vld [vmem:[%s669 + $0x38] sm:$0xf]
        %v685 = vld [vmem:[%s669 + $0x3c] sm:$0xf]
        %v686 = vld [vmem:[%s669 + $0x40] sm:$0xf]
        %v687 = vld [vmem:[%s669 + $0x44] sm:$0xf]
        %v706 = vunpack.c.l.b16 %v670
        %v707 = vunpack.c.l.b16 %v671
        %v708 = vunpack.c.l.b16 %v672
        %v709 = vunpack.c.l.b16 %v673
        %v710 = vunpack.c.l.b16 %v674
        %v711 = vunpack.c.l.b16 %v675
        %v712 = vunpack.c.l.b16 %v676
        %v713 = vunpack.c.l.b16 %v677
        %v714 = vunpack.c.l.b16 %v678
        %v715 = vunpack.c.l.b16 %v679
        %v716 = vunpack.c.l.b16 %v680
        %v717 = vunpack.c.l.b16 %v681
        %v718 = vunpack.c.l.b16 %v682
        %v719 = vunpack.c.l.b16 %v683
        %v720 = vunpack.c.l.b16 %v684
        %v721 = vunpack.c.l.b16 %v685
        %v722 = vunpack.c.l.b16 %v686
        %v723 = vunpack.c.l.b16 %v687
        %v724 = vpack.c.b16 %v707, %v706
        %v725 = vpack.c.b16 %v709, %v708
        %v726 = vpack.c.b16 %v711, %v710
        %v727 = vpack.c.b16 %v713, %v712
        %v728 = vpack.c.b16 %v715, %v714
        %v729 = vpack.c.b16 %v717, %v716
        %v730 = vpack.c.b16 %v719, %v718
        %v731 = vpack.c.b16 %v721, %v720
        %v732 = vpack.c.b16 %v723, %v722
        %v734 = vsel %vm580, %v724, 0
        %v737 = vsel %vm580, %v725, 0
        %v740 = vsel %vm580, %v726, 0
        %v743 = vsel %vm580, %v727, 0
        %v746 = vsel %vm580, %v728, 0
        %v749 = vsel %vm580, %v729, 0
        %v752 = vsel %vm580, %v730, 0
        %v755 = vsel %vm580, %v731, 0
        %v758 = vsel %vm580, %v732, 0
        %760 = vmatpush.bf16.msra.mxu0 0
        %761 = vmatpush.bf16.msra.mxu0 0
        %762 = vmatpush.bf16.msra.mxu0 0
        %763 = vmatpush.bf16.msra.mxu0 0
        %764 = vmatpush.bf16.msra.mxu0 0
        %765 = vmatpush.bf16.msra.mxu0 0
        %766 = vmatpush.bf16.msra.mxu0 %v613
        %767 = vmatpush.bf16.msra.mxu0 %v577
        %768 = vmatmul.bf16.gmra.mxu0 %v734
        %v769 = vpop.f32.mrf.mxu0
        %v770 = vadd.f32 0.0, %v769
        %v771 = vpop.f32.mrf.mxu0
        %v772 = vadd.f32 0.0, %v771
        %773 = vmatmul.bf16.gmra.mxu0 %v737
        %v774 = vpop.f32.mrf.mxu0
        %v775 = vadd.f32 0.0, %v774
        %v776 = vpop.f32.mrf.mxu0
        %v777 = vadd.f32 0.0, %v776
        %778 = vmatmul.bf16.gmra.mxu0 %v740
        %v779 = vpop.f32.mrf.mxu0
        %v780 = vadd.f32 0.0, %v779
        %v781 = vpop.f32.mrf.mxu0
        %v782 = vadd.f32 0.0, %v781
        %783 = vmatmul.bf16.gmra.mxu0 %v743
        %v784 = vpop.f32.mrf.mxu0
        %v785 = vadd.f32 0.0, %v784
        %v786 = vpop.f32.mrf.mxu0
        %v787 = vadd.f32 0.0, %v786
        %788 = vmatmul.bf16.gmra.mxu0 %v746
        %v789 = vpop.f32.mrf.mxu0
        %v790 = vadd.f32 0.0, %v789
        %v791 = vpop.f32.mrf.mxu0
        %v792 = vadd.f32 0.0, %v791
        %793 = vmatmul.bf16.gmra.mxu0 %v749
        %v794 = vpop.f32.mrf.mxu0
        %v795 = vadd.f32 0.0, %v794
        %v796 = vpop.f32.mrf.mxu0
        %v797 = vadd.f32 0.0, %v796
        %798 = vmatmul.bf16.gmra.mxu0 %v752
        %v799 = vpop.f32.mrf.mxu0
        %v800 = vadd.f32 0.0, %v799
        %v801 = vpop.f32.mrf.mxu0
        %v802 = vadd.f32 0.0, %v801
        %803 = vmatmul.bf16.gmra.mxu0 %v755
        %v804 = vpop.f32.mrf.mxu0
        %v805 = vadd.f32 0.0, %v804
        %v806 = vpop.f32.mrf.mxu0
        %v807 = vadd.f32 0.0, %v806
        %808 = vmatmul.bf16.gmra.mxu0 %v758
        %v809 = vpop.f32.mrf.mxu0
        %v810 = vadd.f32 0.0, %v809
        %v811 = vpop.f32.mrf.mxu0
        %v812 = vadd.f32 0.0, %v811
        %813 = vdwg.mxu0
        %v814 = vmax.f32 %v625, %v770
        %v815 = vmax.f32 %v627, %v772
        %v816 = vmax.f32 %v630, %v775
        %v817 = vmax.f32 %v632, %v777
        %v818 = vmax.f32 %v635, %v780
        %v819 = vmax.f32 %v637, %v782
        %v820 = vmax.f32 %v640, %v785
        %v821 = vmax.f32 %v642, %v787
        %v822 = vmax.f32 %v645, %v790
        %v823 = vmax.f32 %v647, %v792
        %v824 = vmax.f32 %v650, %v795
        %v825 = vmax.f32 %v652, %v797
        %v826 = vmax.f32 %v655, %v800
        %v827 = vmax.f32 %v657, %v802
        %v828 = vmax.f32 %v660, %v805
        %v829 = vmax.f32 %v662, %v807
        %v830 = vmax.f32 %v665, %v810
        %v831 = vmax.f32 %v667, %v812
        %s832 = scalar_lea.vmem %s473, 144 [#allocation2]
        %v833 = vld [vmem:[%s832] sm:$0xf]
        %v834 = vld [vmem:[%s832 + $0x4] sm:$0xf]
        %v835 = vld [vmem:[%s832 + $0x8] sm:$0xf]
        %v836 = vld [vmem:[%s832 + $0xc] sm:$0xf]
        %v837 = vld [vmem:[%s832 + $0x10] sm:$0xf]
        %v838 = vld [vmem:[%s832 + $0x14] sm:$0xf]
        %v839 = vld [vmem:[%s832 + $0x18] sm:$0xf]
        %v840 = vld [vmem:[%s832 + $0x1c] sm:$0xf]
        %v841 = vld [vmem:[%s832 + $0x20] sm:$0xf]
        %v842 = vld [vmem:[%s832 + $0x24] sm:$0xf]
        %v843 = vld [vmem:[%s832 + $0x28] sm:$0xf]
        %v844 = vld [vmem:[%s832 + $0x2c] sm:$0xf]
        %v845 = vld [vmem:[%s832 + $0x30] sm:$0xf]
        %v846 = vld [vmem:[%s832 + $0x34] sm:$0xf]
        %v847 = vld [vmem:[%s832 + $0x38] sm:$0xf]
        %v848 = vld [vmem:[%s832 + $0x3c] sm:$0xf]
        %v849 = vld [vmem:[%s832 + $0x40] sm:$0xf]
        %v850 = vld [vmem:[%s832 + $0x44] sm:$0xf]
        %v869 = vunpack.c.l.b16 %v833
        %v870 = vunpack.c.l.b16 %v834
        %v871 = vunpack.c.l.b16 %v835
        %v872 = vunpack.c.l.b16 %v836
        %v873 = vunpack.c.l.b16 %v837
        %v874 = vunpack.c.l.b16 %v838
        %v875 = vunpack.c.l.b16 %v839
        %v876 = vunpack.c.l.b16 %v840
        %v877 = vunpack.c.l.b16 %v841
        %v878 = vunpack.c.l.b16 %v842
        %v879 = vunpack.c.l.b16 %v843
        %v880 = vunpack.c.l.b16 %v844
        %v881 = vunpack.c.l.b16 %v845
        %v882 = vunpack.c.l.b16 %v846
        %v883 = vunpack.c.l.b16 %v847
        %v884 = vunpack.c.l.b16 %v848
        %v885 = vunpack.c.l.b16 %v849
        %v886 = vunpack.c.l.b16 %v850
        %v887 = vpack.c.b16 %v870, %v869
        %v888 = vpack.c.b16 %v872, %v871
        %v889 = vpack.c.b16 %v874, %v873
        %v890 = vpack.c.b16 %v876, %v875
        %v891 = vpack.c.b16 %v878, %v877
        %v892 = vpack.c.b16 %v880, %v879
        %v893 = vpack.c.b16 %v882, %v881
        %v894 = vpack.c.b16 %v884, %v883
        %v895 = vpack.c.b16 %v886, %v885
        %v897 = vsel %vm580, %v887, 0
        %v900 = vsel %vm580, %v888, 0
        %v903 = vsel %vm580, %v889, 0
        %v906 = vsel %vm580, %v890, 0
        %v909 = vsel %vm580, %v891, 0
        %v912 = vsel %vm580, %v892, 0
        %v915 = vsel %vm580, %v893, 0
        %v918 = vsel %vm580, %v894, 0
        %v921 = vsel %vm580, %v895, 0
        %923 = vmatpush.bf16.msra.mxu0 0
        %924 = vmatpush.bf16.msra.mxu0 0
        %925 = vmatpush.bf16.msra.mxu0 0
        %926 = vmatpush.bf16.msra.mxu0 0
        %927 = vmatpush.bf16.msra.mxu0 0
        %928 = vmatpush.bf16.msra.mxu0 0
        %929 = vmatpush.bf16.msra.mxu0 %v613
        %930 = vmatpush.bf16.msra.mxu0 %v577
        %931 = vmatmul.bf16.gmra.mxu0 %v897
        %v932 = vpop.f32.mrf.mxu0
        %v933 = vadd.f32 0.0, %v932
        %v934 = vpop.f32.mrf.mxu0
        %v935 = vadd.f32 0.0, %v934
        %936 = vmatmul.bf16.gmra.mxu0 %v900
        %v937 = vpop.f32.mrf.mxu0
        %v938 = vadd.f32 0.0, %v937
        %v939 = vpop.f32.mrf.mxu0
        %v940 = vadd.f32 0.0, %v939
        %941 = vmatmul.bf16.gmra.mxu0 %v903
        %v942 = vpop.f32.mrf.mxu0
        %v943 = vadd.f32 0.0, %v942
        %v944 = vpop.f32.mrf.mxu0
        %v945 = vadd.f32 0.0, %v944
        %946 = vmatmul.bf16.gmra.mxu0 %v906
        %v947 = vpop.f32.mrf.mxu0
        %v948 = vadd.f32 0.0, %v947
        %v949 = vpop.f32.mrf.mxu0
        %v950 = vadd.f32 0.0, %v949
        %951 = vmatmul.bf16.gmra.mxu0 %v909
        %v952 = vpop.f32.mrf.mxu0
        %v953 = vadd.f32 0.0, %v952
        %v954 = vpop.f32.mrf.mxu0
        %v955 = vadd.f32 0.0, %v954
        %956 = vmatmul.bf16.gmra.mxu0 %v912
        %v957 = vpop.f32.mrf.mxu0
        %v958 = vadd.f32 0.0, %v957
        %v959 = vpop.f32.mrf.mxu0
        %v960 = vadd.f32 0.0, %v959
        %961 = vmatmul.bf16.gmra.mxu0 %v915
        %v962 = vpop.f32.mrf.mxu0
        %v963 = vadd.f32 0.0, %v962
        %v964 = vpop.f32.mrf.mxu0
        %v965 = vadd.f32 0.0, %v964
        %966 = vmatmul.bf16.gmra.mxu0 %v918
        %v967 = vpop.f32.mrf.mxu0
        %v968 = vadd.f32 0.0, %v967
        %v969 = vpop.f32.mrf.mxu0
        %v970 = vadd.f32 0.0, %v969
        %971 = vmatmul.bf16.gmra.mxu0 %v921
        %v972 = vpop.f32.mrf.mxu0
        %v973 = vadd.f32 0.0, %v972
        %v974 = vpop.f32.mrf.mxu0
        %v975 = vadd.f32 0.0, %v974
        %976 = vdwg.mxu0
        %v977 = vmax.f32 %v814, %v933
        %v978 = vmax.f32 %v815, %v935
        %v979 = vmax.f32 %v816, %v938
        %v980 = vmax.f32 %v817, %v940
        %v981 = vmax.f32 %v818, %v943
        %v982 = vmax.f32 %v819, %v945
        %v983 = vmax.f32 %v820, %v948
        %v984 = vmax.f32 %v821, %v950
        %v985 = vmax.f32 %v822, %v953
        %v986 = vmax.f32 %v823, %v955
        %v987 = vmax.f32 %v824, %v958
        %v988 = vmax.f32 %v825, %v960
        %v989 = vmax.f32 %v826, %v963
        %v990 = vmax.f32 %v827, %v965
        %v991 = vmax.f32 %v828, %v968
        %v992 = vmax.f32 %v829, %v970
        %v993 = vmax.f32 %v830, %v973
        %v994 = vmax.f32 %v831, %v975
        %s995 = scalar_lea.vmem %s473, 216 [#allocation2]
        %v996 = vld [vmem:[%s995] sm:$0xf]
        %v997 = vld [vmem:[%s995 + $0x4] sm:$0xf]
        %v998 = vld [vmem:[%s995 + $0x8] sm:$0xf]
        %v999 = vld [vmem:[%s995 + $0xc] sm:$0xf]
        %v1000 = vld [vmem:[%s995 + $0x10] sm:$0xf]
        %v1001 = vld [vmem:[%s995 + $0x14] sm:$0xf]
        %v1002 = vld [vmem:[%s995 + $0x18] sm:$0xf]
        %v1003 = vld [vmem:[%s995 + $0x1c] sm:$0xf]
        %v1004 = vld [vmem:[%s995 + $0x20] sm:$0xf]
        %v1005 = vld [vmem:[%s995 + $0x24] sm:$0xf]
        %v1006 = vld [vmem:[%s995 + $0x28] sm:$0xf]
        %v1007 = vld [vmem:[%s995 + $0x2c] sm:$0xf]
        %v1008 = vld [vmem:[%s995 + $0x30] sm:$0xf]
        %v1009 = vld [vmem:[%s995 + $0x34] sm:$0xf]
        %v1010 = vld [vmem:[%s995 + $0x38] sm:$0xf]
        %v1011 = vld [vmem:[%s995 + $0x3c] sm:$0xf]
        %v1012 = vld [vmem:[%s995 + $0x40] sm:$0xf]
        %v1013 = vld [vmem:[%s995 + $0x44] sm:$0xf]
        %v1032 = vunpack.c.l.b16 %v996
        %v1033 = vunpack.c.l.b16 %v997
        %v1034 = vunpack.c.l.b16 %v998
        %v1035 = vunpack.c.l.b16 %v999
        %v1036 = vunpack.c.l.b16 %v1000
        %v1037 = vunpack.c.l.b16 %v1001
        %v1038 = vunpack.c.l.b16 %v1002
        %v1039 = vunpack.c.l.b16 %v1003
        %v1040 = vunpack.c.l.b16 %v1004
        %v1041 = vunpack.c.l.b16 %v1005
        %v1042 = vunpack.c.l.b16 %v1006
        %v1043 = vunpack.c.l.b16 %v1007
        %v1044 = vunpack.c.l.b16 %v1008
        %v1045 = vunpack.c.l.b16 %v1009
        %v1046 = vunpack.c.l.b16 %v1010
        %v1047 = vunpack.c.l.b16 %v1011
        %v1048 = vunpack.c.l.b16 %v1012
        %v1049 = vunpack.c.l.b16 %v1013
        %v1050 = vpack.c.b16 %v1033, %v1032
        %v1051 = vpack.c.b16 %v1035, %v1034
        %v1052 = vpack.c.b16 %v1037, %v1036
        %v1053 = vpack.c.b16 %v1039, %v1038
        %v1054 = vpack.c.b16 %v1041, %v1040
        %v1055 = vpack.c.b16 %v1043, %v1042
        %v1056 = vpack.c.b16 %v1045, %v1044
        %v1057 = vpack.c.b16 %v1047, %v1046
        %v1058 = vpack.c.b16 %v1049, %v1048
        %v1060 = vsel %vm580, %v1050, 0
        %v1063 = vsel %vm580, %v1051, 0
        %v1066 = vsel %vm580, %v1052, 0
        %v1069 = vsel %vm580, %v1053, 0
        %v1072 = vsel %vm580, %v1054, 0
        %v1075 = vsel %vm580, %v1055, 0
        %v1078 = vsel %vm580, %v1056, 0
        %v1081 = vsel %vm580, %v1057, 0
        %v1084 = vsel %vm580, %v1058, 0
        %1086 = vmatpush.bf16.msra.mxu0 0
        %1087 = vmatpush.bf16.msra.mxu0 0
        %1088 = vmatpush.bf16.msra.mxu0 0
        %1089 = vmatpush.bf16.msra.mxu0 0
        %1090 = vmatpush.bf16.msra.mxu0 0
        %1091 = vmatpush.bf16.msra.mxu0 0
        %1092 = vmatpush.bf16.msra.mxu0 %v613
        %1093 = vmatpush.bf16.msra.mxu0 %v577
        %1094 = vmatmul.bf16.gmra.mxu0 %v1060
        %v1095 = vpop.f32.mrf.mxu0
        %v1096 = vadd.f32 0.0, %v1095
        %v1097 = vpop.f32.mrf.mxu0
        %v1098 = vadd.f32 0.0, %v1097
        %1099 = vmatmul.bf16.gmra.mxu0 %v1063
        %v1100 = vpop.f32.mrf.mxu0
        %v1101 = vadd.f32 0.0, %v1100
        %v1102 = vpop.f32.mrf.mxu0
        %v1103 = vadd.f32 0.0, %v1102
        %1104 = vmatmul.bf16.gmra.mxu0 %v1066
        %v1105 = vpop.f32.mrf.mxu0
        %v1106 = vadd.f32 0.0, %v1105
        %v1107 = vpop.f32.mrf.mxu0
        %v1108 = vadd.f32 0.0, %v1107
        %1109 = vmatmul.bf16.gmra.mxu0 %v1069
        %v1110 = vpop.f32.mrf.mxu0
        %v1111 = vadd.f32 0.0, %v1110
        %v1112 = vpop.f32.mrf.mxu0
        %v1113 = vadd.f32 0.0, %v1112
        %1114 = vmatmul.bf16.gmra.mxu0 %v1072
        %v1115 = vpop.f32.mrf.mxu0
        %v1116 = vadd.f32 0.0, %v1115
        %v1117 = vpop.f32.mrf.mxu0
        %v1118 = vadd.f32 0.0, %v1117
        %1119 = vmatmul.bf16.gmra.mxu0 %v1075
        %v1120 = vpop.f32.mrf.mxu0
        %v1121 = vadd.f32 0.0, %v1120
        %v1122 = vpop.f32.mrf.mxu0
        %v1123 = vadd.f32 0.0, %v1122
        %1124 = vmatmul.bf16.gmra.mxu0 %v1078
        %v1125 = vpop.f32.mrf.mxu0
        %v1126 = vadd.f32 0.0, %v1125
        %v1127 = vpop.f32.mrf.mxu0
        %v1128 = vadd.f32 0.0, %v1127
        %1129 = vmatmul.bf16.gmra.mxu0 %v1081
        %v1130 = vpop.f32.mrf.mxu0
        %v1131 = vadd.f32 0.0, %v1130
        %v1132 = vpop.f32.mrf.mxu0
        %v1133 = vadd.f32 0.0, %v1132
        %1134 = vmatmul.bf16.gmra.mxu0 %v1084
        %v1135 = vpop.f32.mrf.mxu0
        %v1136 = vadd.f32 0.0, %v1135
        %v1137 = vpop.f32.mrf.mxu0
        %v1138 = vadd.f32 0.0, %v1137
        %1139 = vdwg.mxu0
        %v1140 = vmax.f32 %v977, %v1096
        %v1141 = vmax.f32 %v978, %v1098
        %v1142 = vmax.f32 %v979, %v1101
        %v1143 = vmax.f32 %v980, %v1103
        %v1144 = vmax.f32 %v981, %v1106
        %v1145 = vmax.f32 %v982, %v1108
        %v1146 = vmax.f32 %v983, %v1111
        %v1147 = vmax.f32 %v984, %v1113
        %v1148 = vmax.f32 %v985, %v1116
        %v1149 = vmax.f32 %v986, %v1118
        %v1150 = vmax.f32 %v987, %v1121
        %v1151 = vmax.f32 %v988, %v1123
        %v1152 = vmax.f32 %v989, %v1126
        %v1153 = vmax.f32 %v990, %v1128
        %v1154 = vmax.f32 %v991, %v1131
        %v1155 = vmax.f32 %v992, %v1133
        %v1156 = vmax.f32 %v993, %v1136
        %v1157 = vmax.f32 %v994, %v1138
        %v1158 = vld [vmem:[%s2] sm:$0x1]
        %v1160 = vperm.slane %v1158, 0
        %v1162 = vadd.f32 %v1140, %v1160
        %v1163 = vadd.f32 %v1141, %v1160
        %v1164 = vadd.f32 %v1142, %v1160
        %v1165 = vadd.f32 %v1143, %v1160
        %v1166 = vadd.f32 %v1144, %v1160
        %v1167 = vadd.f32 %v1145, %v1160
        %v1168 = vadd.f32 %v1146, %v1160
        %v1169 = vadd.f32 %v1147, %v1160
        %v1170 = vadd.f32 %v1148, %v1160
        %v1171 = vadd.f32 %v1149, %v1160
        %v1172 = vadd.f32 %v1150, %v1160
        %v1173 = vadd.f32 %v1151, %v1160
        %v1174 = vadd.f32 %v1152, %v1160
        %v1175 = vadd.f32 %v1153, %v1160
        %v1176 = vadd.f32 %v1154, %v1160
        %v1177 = vadd.f32 %v1155, %v1160
        %v1178 = vadd.f32 %v1156, %v1160
        %v1179 = vadd.f32 %v1157, %v1160
        %v1180 = vmax.f32 %v1162, 0.0
        %v1181 = vmax.f32 %v1163, 0.0
        %v1182 = vmax.f32 %v1164, 0.0
        %v1183 = vmax.f32 %v1165, 0.0
        %v1184 = vmax.f32 %v1166, 0.0
        %v1185 = vmax.f32 %v1167, 0.0
        %v1186 = vmax.f32 %v1168, 0.0
        %v1187 = vmax.f32 %v1169, 0.0
        %v1188 = vmax.f32 %v1170, 0.0
        %v1189 = vmax.f32 %v1171, 0.0
        %v1190 = vmax.f32 %v1172, 0.0
        %v1191 = vmax.f32 %v1173, 0.0
        %v1192 = vmax.f32 %v1174, 0.0
        %v1193 = vmax.f32 %v1175, 0.0
        %v1194 = vmax.f32 %v1176, 0.0
        %v1195 = vmax.f32 %v1177, 0.0
        %v1196 = vmax.f32 %v1178, 0.0
        %v1197 = vmax.f32 %v1179, 0.0
        %v1198 = vpack.c.bf16 %v1180, %v1180
        %v1199 = vpack.c.bf16 %v1181, %v1181
        %v1200 = vpack.c.bf16 %v1182, %v1182
        %v1201 = vpack.c.bf16 %v1183, %v1183
        %v1202 = vpack.c.bf16 %v1184, %v1184
        %v1203 = vpack.c.bf16 %v1185, %v1185
        %v1204 = vpack.c.bf16 %v1186, %v1186
        %v1205 = vpack.c.bf16 %v1187, %v1187
        %v1206 = vpack.c.bf16 %v1188, %v1188
        %v1207 = vpack.c.bf16 %v1189, %v1189
        %v1208 = vpack.c.bf16 %v1190, %v1190
        %v1209 = vpack.c.bf16 %v1191, %v1191
        %v1210 = vpack.c.bf16 %v1192, %v1192
        %v1211 = vpack.c.bf16 %v1193, %v1193
        %v1212 = vpack.c.bf16 %v1194, %v1194
        %v1213 = vpack.c.bf16 %v1195, %v1195
        %v1214 = vpack.c.bf16 %v1196, %v1196
        %v1215 = vpack.c.bf16 %v1197, %v1197
        %vm1216 = vcmask 158720
        %1217 = vst.msk [vmem:[%s499] sm:$0xf] %vm1216, %v1198
        %1218 = vst.msk [vmem:[%s499 + $0x4] sm:$0xf] %vm1216, %v1199
        %1219 = vst.msk [vmem:[%s499 + $0x8] sm:$0xf] %vm1216, %v1200
        %1220 = vst.msk [vmem:[%s499 + $0xc] sm:$0xf] %vm1216, %v1201
        %1221 = vst.msk [vmem:[%s499 + $0x10] sm:$0xf] %vm1216, %v1202
        %1222 = vst.msk [vmem:[%s499 + $0x14] sm:$0xf] %vm1216, %v1203
        %1223 = vst.msk [vmem:[%s499 + $0x18] sm:$0xf] %vm1216, %v1204
        %1224 = vst.msk [vmem:[%s499 + $0x1c] sm:$0xf] %vm1216, %v1205
        %1225 = vst.msk [vmem:[%s499 + $0x20] sm:$0xf] %vm1216, %v1206
        %1226 = vst.msk [vmem:[%s499 + $0x24] sm:$0xf] %vm1216, %v1207
        %1227 = vst.msk [vmem:[%s499 + $0x28] sm:$0xf] %vm1216, %v1208
        %1228 = vst.msk [vmem:[%s499 + $0x2c] sm:$0xf] %vm1216, %v1209
        %1229 = vst.msk [vmem:[%s499 + $0x30] sm:$0xf] %vm1216, %v1210
        %1230 = vst.msk [vmem:[%s499 + $0x34] sm:$0xf] %vm1216, %v1211
        %1231 = vst.msk [vmem:[%s499 + $0x38] sm:$0xf] %vm1216, %v1212
        %1232 = vst.msk [vmem:[%s499 + $0x3c] sm:$0xf] %vm1216, %v1213
        %1233 = vst.msk [vmem:[%s499 + $0x40] sm:$0xf] %vm1216, %v1214
        %1234 = vst.msk [vmem:[%s499 + $0x44] sm:$0xf] %vm1216, %v1215
        %s1235 = smul.u32 18, %s14
        %p1236 = scmp.lt.s32.totalorder %s1235, 35
        %s1237 = scalar_select %p1236, %s1235, 35
        %s1238 = smul.addr %s1237, 4
        %s1239 = scalar_lea.vmem %s3, %s1238
        // Predicated region
        $region74: #{lenet_forward.3} parent=68 // pred_check
          %p1240 = pneg %p100
        $region75: #{lenet_forward.3} parent=68 // pred_check_branch
          %1242 = sbr.rel (%p1240) target = $region77
        $region76: #{lenet_forward.3} parent=68 // pred_region
          %s1243 = smul.u32 18, %s14
        $region77: #{lenet_forward.3} parent=68 // pred_fallthru
          _
      $region69: #{lenet_forward.3} parent=5 // pred_fallthru
        _
      %p1244 = scmp.le.s32.totalorder 2, %s9
      // Predicated region
      $region78: #{lenet_forward.3} parent=5 // pred_check
        %p1245 = pneg %p1244
      $region79: #{lenet_forward.3} parent=5 // pred_check_branch
        %1247 = sbr.rel (%p1245) target = $region81
      $region80: #{lenet_forward.3} parent=5 // pred_region
        %s1248 = ssub.s32 %s9, 2
        // Predicated region
        $region82: #{lenet_forward.3} parent=80 // pred_check
          %p1249 = pneg %p106
        $region83: #{lenet_forward.3} parent=80 // pred_check_branch
          %1251 = sbr.rel (%p1249) target = $region85
        $region84: #{lenet_forward.3} parent=80 // pred_region
          %s1252 = smul.u32 18, %s15
          %p1253 = scmp.lt.s32.totalorder %s1252, 35
          %s1254 = scalar_select %p1253, %s1252, 35
          %s1255 = smul.addr %s1254, 4
          %s1256 = scalar_lea.vmem %s3, %s1255
        $region85: #{lenet_forward.3} parent=80 // pred_fallthru
          _
      $region81: #{lenet_forward.3} parent=5 // pred_fallthru
        _
    $region6: #{lenet_forward.3} parent=1 // loop_footer
      %s13 = sadd.s32 1, %s9
    $region7: #{lenet_forward.3} parent=1 // loop_footer_branch
      %8 = sbr.rel target = $region3
    $region8: #{lenet_forward.3} parent=1 // loop_exit
      _

// kernel: lenet_forward.4
$region0: #{lenet_forward.4}
  #allocation0 [shape = 'u32[]', space=smem, size = 0x4, offset = 0x4, fixed_abs, tag = 'smem constant byte address 0x4 - core index']
  #allocation1 [shape = 'u32[72,128]{1,0:T(1,128)}', space=vmem, size = 0x9000, scoped, tag = 'internal scratch']
  %s0 = inlined_call_operand.vmem [shape: bf16[4,32,512], index: 0, kind: input, shape index: {}]
  %s1 = inlined_call_operand.vmem [shape: bf16[512,50], index: 1, kind: input, shape index: {}]
  %s2 = inlined_call_operand.vmem [shape: f32[1,50], index: 2, kind: input, shape index: {}]
  %s3 = inlined_call_operand.vmem [shape: bf16[32,50], index: 3, kind: output, shape index: {}]
  %s4 = sld [smem:[#allocation0]]
  $region68: #{lenet_forward.4} parent=0
    _
  %s6 = ssub.s32 1, %s4
  %s7 = scalar_select 0, %s6, %s4
  $region1: #{lenet_forward.4} parent=0
    #allocation2 [shape = 'u8[131072]{0}', space=vmem, size = 0x20000, scoped, tag = 'input window, operand 0']
    loop: start=0, step=1, limit=4
    $region2: #{lenet_forward.4} parent=1 // loop_pre_header
      _
    $region3: #{lenet_forward.4} parent=1 // loop_header
      %s9 = sphi 0, %s13
      %p10 = scmp.ge.s32.totalorder %s9, 4
      %s19 = sphi 0, %s21
      %s22 = sphi 0, %s19
      %s23 = sphi 0, %s22
      %s39 = sphi 0, %s23
      %s43 = sphi 0, %s43
      %s45 = sphi 0, %s43
      %s46 = sphi 0, %s45
      %s60 = sphi 0, %s46
      %s64 = sphi 0, %s64
      %s66 = sphi 0, %s64
      %s67 = sphi 0, %s66
      %s81 = sphi 0, %s67
      %s87 = sphi 0, %s89
      %s90 = sphi 0, %s87
      %s91 = sphi 0, %s90
      %s107 = sphi 0, %s91
    $region4: #{lenet_forward.4} parent=1 // loop_header_branch
      %12 = sbr.rel (%p10) target = $region8
    $region5: #{lenet_forward.4} parent=1 // loop_body
      %s14 = ssub.s32 %s9, 1
      %s15 = ssub.s32 %s9, 2
      %s16 = sadd.s32 %s9, 1
      %s17 = ssub.s32 %s9, %s16
      %p18 = scmp.eq.s32.totalorder %s17, 0
      %s20 = sadd.s32 %s19, 1
      %s21 = scalar_select %p18, %s19, %s20
      %p24 = pneg %p18
      %p25 = scmp.eq.s32.totalorder %s9, 1
      %p26 = por %p24, %p25
      %p27 = scmp.ne.s32.totalorder %s19, %s22
      %p28 = scmp.eq.s32.totalorder %s9, 0
      %p29 = por %p27, %p28
      %p30 = scmp.ne.s32.totalorder %s19, %s22
      %p31 = scmp.eq.s32.totalorder %s14, 1
      %p32 = por %p30, %p31
      %p33 = scmp.ne.s32.totalorder %s22, %s23
      %p34 = scmp.eq.s32.totalorder %s14, 0
      %p35 = por %p33, %p34
      %p36 = scmp.ne.s32.totalorder %s22, %s23
      %p37 = scmp.eq.s32.totalorder %s15, 1
      %p38 = por %p36, %p37
      %p40 = scmp.ne.s32.totalorder %s23, %s39
      %p41 = scmp.eq.s32.totalorder %s15, 0
      %p42 = por %p40, %p41
      %s44 = sadd.s32 %s43, 1
      %p47 = scmp.eq.s32.totalorder %s9, 1
      %p48 = scmp.ne.s32.totalorder %s43, %s45
      %p49 = scmp.eq.s32.totalorder %s9, 0
      %p50 = por %p48, %p49
      %p51 = scmp.ne.s32.totalorder %s43, %s45
      %p52 = scmp.eq.s32.totalorder %s14, 1
      %p53 = por %p51, %p52
      %p54 = scmp.ne.s32.totalorder %s45, %s46
      %p55 = scmp.eq.s32.totalorder %s14, 0
      %p56 = por %p54, %p55
      %p57 = scmp.ne.s32.totalorder %s45, %s46
      %p58 = scmp.eq.s32.totalorder %s15, 1
      %p59 = por %p57, %p58
      %p61 = scmp.ne.s32.totalorder %s46, %s60
      %p62 = scmp.eq.s32.totalorder %s15, 0
      %p63 = por %p61, %p62
      %s65 = sadd.s32 %s64, 1
      %p68 = scmp.eq.s32.totalorder %s9, 1
      %p69 = scmp.ne.s32.totalorder %s64, %s66
      %p70 = scmp.eq.s32.totalorder %s9, 0
      %p71 = por %p69, %p70
      %p72 = scmp.ne.s32.totalorder %s64, %s66
      %p73 = scmp.eq.s32.totalorder %s14, 1
      %p74 = por %p72, %p73
      %p75 = scmp.ne.s32.totalorder %s66, %s67
      %p76 = scmp.eq.s32.totalorder %s14, 0
      %p77 = por %p75, %p76
      %p78 = scmp.ne.s32.totalorder %s66, %s67
      %p79 = scmp.eq.s32.totalorder %s15, 1
      %p80 = por %p78, %p79
      %p82 = scmp.ne.s32.totalorder %s67, %s81
      %p83 = scmp.eq.s32.totalorder %s15, 0
      %p84 = por %p82, %p83
      %s85 = ssub.s32 %s9, %s16
      %p86 = scmp.eq.s32.totalorder %s85, 0
      %s88 = sadd.s32 %s87, 1
      %s89 = scalar_select %p86, %s87, %s88
      %p92 = pneg %p86
      %p93 = scmp.eq.s32.totalorder %s9, 1
      %p94 = por %p92, %p93
      %p95 = scmp.ne.s32.totalorder %s87, %s90
      %p96 = scmp.eq.s32.totalorder %s9, 0
      %p97 = por %p95, %p96
      %p98 = scmp.ne.s32.totalorder %s87, %s90
      %p99 = scmp.eq.s32.totalorder %s14, 1
      %p100 = por %p98, %p99
      %p101 = scmp.ne.s32.totalorder %s90, %s91
      %p102 = scmp.eq.s32.totalorder %s14, 0
      %p103 = por %p101, %p102
      %p104 = scmp.ne.s32.totalorder %s90, %s91
      %p105 = scmp.eq.s32.totalorder %s15, 1
      %p106 = por %p104, %p105
      %p108 = scmp.ne.s32.totalorder %s91, %s107
      %p109 = scmp.eq.s32.totalorder %s15, 0
      %p110 = por %p108, %p109
      %p111 = scmp.le.s32.totalorder 1, %s9
      %p112 = scmp.lt.s32.totalorder %s9, 3
      %p113 = pnand %p111, %p112
      %p114 = pneg %p113
      // Predicated region
      $region9: #{lenet_forward.4} parent=5 // pred_check
        _
      $region10: #{lenet_forward.4} parent=5 // pred_check_branch
        %116 = sbr.rel (%p113) target = $region12
      $region11: #{lenet_forward.4} parent=5 // pred_region
        %s117 = ssub.s32 %s9, 1
        // Predicated region
        $region13: #{lenet_forward.4} parent=11 // pred_check
          %p118 = pneg %p56
        $region14: #{lenet_forward.4} parent=11 // pred_check_branch
          %120 = sbr.rel (%p118) target = $region16
        $region15: #{lenet_forward.4} parent=11 // pred_region
          _
        $region16: #{lenet_forward.4} parent=11 // pred_fallthru
          _
        // Predicated region
        $region17: #{lenet_forward.4} parent=11 // pred_check
          %p121 = pneg %p77
        $region18: #{lenet_forward.4} parent=11 // pred_check_branch
          %123 = sbr.rel (%p121) target = $region20
        $region19: #{lenet_forward.4} parent=11 // pred_region
          _
        $region20: #{lenet_forward.4} parent=11 // pred_fallthru
          _
      $region12: #{lenet_forward.4} parent=5 // pred_fallthru
        _
      %p124 = scmp.lt.s32.totalorder %s9, 2
      // Predicated region
      $region21: #{lenet_forward.4} parent=5 // pred_check
        %p125 = pneg %p124
      $region22: #{lenet_forward.4} parent=5 // pred_check_branch
        %127 = sbr.rel (%p125) target = $region24
      $region23: #{lenet_forward.4} parent=5 // pred_region
        // Predicated region
        $region25: #{lenet_forward.4} parent=23 // pred_check
          %p128 = pneg %p29
        $region26: #{lenet_forward.4} parent=23 // pred_check_branch
          %130 = sbr.rel (%p128) target = $region28
        $region27: #{lenet_forward.4} parent=23 // pred_region
          %s131 = sand.u32 %s19, 1
          %s132 = sand.u32 %s19, 1
          %s133 = smul.addr %s132, 128
          %s134 = scalar_lea.vmem [#allocation2], %s133
          %s135 = smul.u32 2, %s9
          %s136 = smul.addr %s135, 4
          %s137 = smul.addr %s136, 4
          %s138 = scalar_lea.vmem %s0, %s137
          // Predicated region
          $region29: #{lenet_forward.4} parent=27 // pred_check
            _
          $region30: #{lenet_forward.4} parent=27 // pred_check_branch
            %140 = sbr.rel (0) target = $region32
          $region31: #{lenet_forward.4} parent=27 // pred_region
            // Predicated region
            $region33: #{lenet_forward.4} parent=31 // pred_check
              _
            $region34: #{lenet_forward.4} parent=31 // pred_check_branch
              %142 = sbr.rel (0) target = $region36
            $region35: #{lenet_forward.4} parent=31 // pred_region
              loop: start=0, step=1, limit=1
              $region37: #{lenet_forward.4} parent=35 // loop_pre_header
                _
              $region38: #{lenet_forward.4} parent=35 // loop_header
                %s144 = sphi 0, %s148
                %p145 = scmp.ge.s32.totalorder %s144, 1
                %s149 = sphi %s138, %s138
                %s150 = sphi %s134, %s134
              $region39: #{lenet_forward.4} parent=35 // loop_header_branch
                %147 = sbr.rel (%p145) target = $region43
              $region40: #{lenet_forward.4} parent=35 // loop_body
                %v151 = vld [vmem:[%s149] sm:$0xff]
                %152 = vst [vmem:[%s150] sm:$0xff] %v151
                %v153 = vld [vmem:[%s149 + $0x8] sm:$0xff]
                %154 = vst [vmem:[%s150 + $0x8] sm:$0xff] %v153
                %v155 = vld [vmem:[%s149 + $0x10] sm:$0xff]
                %156 = vst [vmem:[%s150 + $0x10] sm:$0xff] %v155
                %v157 = vld [vmem:[%s149 + $0x18] sm:$0xff]
                %158 = vst [vmem:[%s150 + $0x18] sm:$0xff] %v157
                %v159 = vld [vmem:[%s149 + $0x40] sm:$0xff]
                %160 = vst [vmem:[%s150 + $0x20] sm:$0xff] %v159
                %v161 = vld [vmem:[%s149 + $0x48] sm:$0xff]
                %162 = vst [vmem:[%s150 + $0x28] sm:$0xff] %v161
                %v163 = vld [vmem:[%s149 + $0x50] sm:$0xff]
                %164 = vst [vmem:[%s150 + $0x30] sm:$0xff] %v163
                %v165 = vld [vmem:[%s149 + $0x58] sm:$0xff]
                %166 = vst [vmem:[%s150 + $0x38] sm:$0xff] %v165
                %v167 = vld [vmem:[%s149 + $0x80] sm:$0xff]
                %168 = vst [vmem:[%s150 + $0x40] sm:$0xff] %v167
                %v169 = vld [vmem:[%s149 + $0x88] sm:$0xff]
                %170 = vst [vmem:[%s150 + $0x48] sm:$0xff] %v169
                %v171 = vld [vmem:[%s149 + $0x90] sm:$0xff]
                %172 = vst [vmem:[%s150 + $0x50] sm:$0xff] %v171
                %v173 = vld [vmem:[%s149 + $0x98] sm:$0xff]
                %174 = vst [vmem:[%s150 + $0x58] sm:$0xff] %v173
                %v175 = vld [vmem:[%s149 + $0xc0] sm:$0xff]
                %176 = vst [vmem:[%s150 + $0x60] sm:$0xff] %v175
                %v177 = vld [vmem:[%s149 + $0xc8] sm:$0xff]
                %178 = vst [vmem:[%s150 + $0x68] sm:$0xff] %v177
                %v179 = vld [vmem:[%s149 + $0xd0] sm:$0xff]
                %180 = vst [vmem:[%s150 + $0x70] sm:$0xff] %v179
                %v181 = vld [vmem:[%s149 + $0xd8] sm:$0xff]
                %182 = vst [vmem:[%s150 + $0x78] sm:$0xff] %v181
              $region41: #{lenet_forward.4} parent=35 // loop_footer
                %s148 = sadd.s32 1, %s144
              $region42: #{lenet_forward.4} parent=35 // loop_footer_branch
                %143 = sbr.rel target = $region38
              $region43: #{lenet_forward.4} parent=35 // loop_exit
                _
            $region36: #{lenet_forward.4} parent=31 // pred_fallthru
              _
            // Predicated region
            $region44: #{lenet_forward.4} parent=31 // pred_check
              _
            $region45: #{lenet_forward.4} parent=31 // pred_check_branch
              %184 = sbr.rel target = $region47
            $region46: #{lenet_forward.4} parent=31 // pred_region
              _
            $region47: #{lenet_forward.4} parent=31 // pred_fallthru
              _
          $region32: #{lenet_forward.4} parent=27 // pred_fallthru
            _
          %185 = vnop
        $region28: #{lenet_forward.4} parent=23 // pred_fallthru
          _
      $region24: #{lenet_forward.4} parent=5 // pred_fallthru
        _
      %p186 = scmp.le.s32.totalorder 1, %s9
      %p187 = scmp.lt.s32.totalorder %s9, 3
      %p188 = pnand %p186, %p187
      %p189 = pneg %p188
      // Predicated region
      $region48: #{lenet_forward.4} parent=5 // pred_check
        _
      $region49: #{lenet_forward.4} parent=5 // pred_check_branch
        %191 = sbr.rel (%p188) target = $region51
      $region50: #{lenet_forward.4} parent=5 // pred_region
        %s192 = ssub.s32 %s9, 1
        %s193 = sand.u32 %s22, 1
        %s194 = sand.u32 %s22, 1
        %s195 = smul.addr %s194, 128
        %s196 = scalar_lea.vmem [#allocation2], %s195
        // Predicated region
        $region52: #{lenet_forward.4} parent=50 // pred_check
          %p197 = pneg %p35
        $region53: #{lenet_forward.4} parent=50 // pred_check_branch
          %199 = sbr.rel (%p197) target = $region55
        $region54: #{lenet_forward.4} parent=50 // pred_region
          _
        $region55: #{lenet_forward.4} parent=50 // pred_fallthru
          _
        %s200 = sand.u32 %s22, 1
        %s201 = sand.u32 %s22, 1
        %s202 = smul.addr %s201, 128
        %s203 = scalar_lea.vmem [#allocation2], %s202
        %p204 = pneg %p35
        %p205 = pneg %p32
        %p206 = pneg %p56
        %p207 = pneg %p53
        %p208 = pneg %p77
        %p209 = pneg %p74
        %p210 = pneg %p103
        %p211 = pneg %p100
        %s212 = smul.u32 2, %s14
        %p213 = scmp.lt.s32.totalorder %s212, 3
        %s214 = scalar_select %p213, %s212, 3
        %s215 = smul.addr %s214, 4
        %s216 = scalar_lea.vmem %s3, %s215
        %s217 = smul.u32 2, %s14
        %s218 = smul.u32 2, %s14
        %p219 = scmp.lt.s32.totalorder %s218, 3
        %s220 = scalar_select %p219, %s218, 3
        %s221 = smul.addr %s220, 4
        %s222 = scalar_lea.vmem %s3, %s221
        %s223 = smul.u32 2, %s14
        %v224 = vld [vmem:[%s1] sm:$0xf]
        %v225 = vld [vmem:[%s1 + $0x4] sm:$0xf]
        %v226 = vld [vmem:[%s1 + $0x8] sm:$0xf]
        %v227 = vld [vmem:[%s1 + $0xc] sm:$0xf]
        %v228 = vld [vmem:[%s1 + $0x10] sm:$0xf]
        %v229 = vld [vmem:[%s1 + $0x14] sm:$0xf]
        %v230 = vld [vmem:[%s1 + $0x18] sm:$0xf]
        %v231 = vld [vmem:[%s1 + $0x1c] sm:$0xf]
        %v232 = vld [vmem:[%s1 + $0x20] sm:$0xf]
        %v233 = vld [vmem:[%s1 + $0x24] sm:$0xf]
        %v234 = vld [vmem:[%s1 + $0x28] sm:$0xf]
        %v235 = vld [vmem:[%s1 + $0x2c] sm:$0xf]
        %v236 = vld [vmem:[%s1 + $0x30] sm:$0xf]
        %v237 = vld [vmem:[%s1 + $0x34] sm:$0xf]
        %v238 = vld [vmem:[%s1 + $0x38] sm:$0xf]
        %v239 = vld [vmem:[%s1 + $0x3c] sm:$0xf]
        %v240 = vld [vmem:[%s1 + $0x40] sm:$0xf]
        %v241 = vld [vmem:[%s1 + $0x44] sm:$0xf]
        %v242 = vld [vmem:[%s1 + $0x48] sm:$0xf]
        %v243 = vld [vmem:[%s1 + $0x4c] sm:$0xf]
        %v244 = vld [vmem:[%s1 + $0x50] sm:$0xf]
        %v245 = vld [vmem:[%s1 + $0x54] sm:$0xf]
        %v246 = vld [vmem:[%s1 + $0x58] sm:$0xf]
        %v247 = vld [vmem:[%s1 + $0x5c] sm:$0xf]
        %v248 = vld [vmem:[%s1 + $0x60] sm:$0xf]
        %v249 = vld [vmem:[%s1 + $0x64] sm:$0xf]
        %v250 = vld [vmem:[%s1 + $0x68] sm:$0xf]
        %v251 = vld [vmem:[%s1 + $0x6c] sm:$0xf]
        %v252 = vld [vmem:[%s1 + $0x70] sm:$0xf]
        %v253 = vld [vmem:[%s1 + $0x74] sm:$0xf]
        %v254 = vld [vmem:[%s1 + $0x78] sm:$0xf]
        %v255 = vld [vmem:[%s1 + $0x7c] sm:$0xf]
        %v256 = vld [vmem:[%s1 + $0x80] sm:$0xf]
        %v257 = vld [vmem:[%s1 + $0x84] sm:$0xf]
        %v258 = vld [vmem:[%s1 + $0x88] sm:$0xf]
        %v259 = vld [vmem:[%s1 + $0x8c] sm:$0xf]
        %v260 = vld [vmem:[%s1 + $0x90] sm:$0xf]
        %v261 = vld [vmem:[%s1 + $0x94] sm:$0xf]
        %v262 = vld [vmem:[%s1 + $0x98] sm:$0xf]
        %v263 = vld [vmem:[%s1 + $0x9c] sm:$0xf]
        %v264 = vld [vmem:[%s1 + $0xa0] sm:$0xf]
        %v265 = vld [vmem:[%s1 + $0xa4] sm:$0xf]
        %v266 = vld [vmem:[%s1 + $0xa8] sm:$0xf]
        %v267 = vld [vmem:[%s1 + $0xac] sm:$0xf]
        %v268 = vld [vmem:[%s1 + $0xb0] sm:$0xf]
        %v269 = vld [vmem:[%s1 + $0xb4] sm:$0xf]
        %v270 = vld [vmem:[%s1 + $0xb8] sm:$0xf]
        %v271 = vld [vmem:[%s1 + $0xbc] sm:$0xf]
        %v272 = vld [vmem:[%s1 + $0xc0] sm:$0xf]
        %v273 = vld [vmem:[%s1 + $0xc4] sm:$0xf]
        %v274 = vld [vmem:[%s1 + $0xc8] sm:$0xf]
        %v275 = vld [vmem:[%s1 + $0xcc] sm:$0xf]
        %v276 = vld [vmem:[%s1 + $0xd0] sm:$0xf]
        %v277 = vld [vmem:[%s1 + $0xd4] sm:$0xf]
        %v278 = vld [vmem:[%s1 + $0xd8] sm:$0xf]
        %v279 = vld [vmem:[%s1 + $0xdc] sm:$0xf]
        %v280 = vld [vmem:[%s1 + $0xe0] sm:$0xf]
        %v281 = vld [vmem:[%s1 + $0xe4] sm:$0xf]
        %v282 = vld [vmem:[%s1 + $0xe8] sm:$0xf]
        %v283 = vld [vmem:[%s1 + $0xec] sm:$0xf]
        %v284 = vld [vmem:[%s1 + $0xf0] sm:$0xf]
        %v285 = vld [vmem:[%s1 + $0xf4] sm:$0xf]
        %v286 = vld [vmem:[%s1 + $0xf8] sm:$0xf]
        %v287 = vld [vmem:[%s1 + $0xfc] sm:$0xf]
        %v288 = vld [vmem:[%s196] sm:$0xff]
        %v289 = vld [vmem:[%s196 + $0x8] sm:$0xff]
        %v290 = vld [vmem:[%s196 + $0x10] sm:$0xff]
        %v291 = vld [vmem:[%s196 + $0x18] sm:$0xff]
        %v296 = vunpack.c.l.b16 %v288
        %v297 = vunpack.c.h.b16 %v288
        %v298 = vunpack.c.l.b16 %v289
        %v299 = vunpack.c.h.b16 %v289
        %v300 = vunpack.c.l.b16 %v290
        %v301 = vunpack.c.h.b16 %v290
        %v302 = vunpack.c.l.b16 %v291
        %v303 = vunpack.c.h.b16 %v291
        %v304 = vpack.c.b16 %v300, %v296
        %v305 = vpack.c.b16 %v301, %v297
        %v306 = vpack.c.b16 %v302, %v298
        %v307 = vpack.c.b16 %v303, %v299
        %v376 = vunpack.c.l.b16 %v224
        %v377 = vunpack.c.l.b16 %v225
        %v378 = vunpack.c.l.b16 %v226
        %v379 = vunpack.c.l.b16 %v227
        %v380 = vunpack.c.l.b16 %v228
        %v381 = vunpack.c.l.b16 %v229
        %v382 = vunpack.c.l.b16 %v230
        %v383 = vunpack.c.l.b16 %v231
        %v384 = vunpack.c.l.b16 %v232
        %v385 = vunpack.c.l.b16 %v233
        %v386 = vunpack.c.l.b16 %v234
        %v387 = vunpack.c.l.b16 %v235
        %v388 = vunpack.c.l.b16 %v236
        %v389 = vunpack.c.l.b16 %v237
        %v390 = vunpack.c.l.b16 %v238
        %v391 = vunpack.c.l.b16 %v239
        %v392 = vunpack.c.l.b16 %v240
        %v393 = vunpack.c.l.b16 %v241
        %v394 = vunpack.c.l.b16 %v242
        %v395 = vunpack.c.l.b16 %v243
        %v396 = vunpack.c.l.b16 %v244
        %v397 = vunpack.c.l.b16 %v245
        %v398 = vunpack.c.l.b16 %v246
        %v399 = vunpack.c.l.b16 %v247
        %v400 = vunpack.c.l.b16 %v248
        %v401 = vunpack.c.l.b16 %v249
        %v402 = vunpack.c.l.b16 %v250
        %v403 = vunpack.c.l.b16 %v251
        %v404 = vunpack.c.l.b16 %v252
        %v405 = vunpack.c.l.b16 %v253
        %v406 = vunpack.c.l.b16 %v254
        %v407 = vunpack.c.l.b16 %v255
        %v408 = vunpack.c.l.b16 %v256
        %v409 = vunpack.c.l.b16 %v257
        %v410 = vunpack.c.l.b16 %v258
        %v411 = vunpack.c.l.b16 %v259
        %v412 = vunpack.c.l.b16 %v260
        %v413 = vunpack.c.l.b16 %v261
        %v414 = vunpack.c.l.b16 %v262
        %v415 = vunpack.c.l.b16 %v263
        %v416 = vunpack.c.l.b16 %v264
        %v417 = vunpack.c.l.b16 %v265
        %v418 = vunpack.c.l.b16 %v266
        %v419 = vunpack.c.l.b16 %v267
        %v420 = vunpack.c.l.b16 %v268
        %v421 = vunpack.c.l.b16 %v269
        %v422 = vunpack.c.l.b16 %v270
        %v423 = vunpack.c.l.b16 %v271
        %v424 = vunpack.c.l.b16 %v272
        %v425 = vunpack.c.l.b16 %v273
        %v426 = vunpack.c.l.b16 %v274
        %v427 = vunpack.c.l.b16 %v275
        %v428 = vunpack.c.l.b16 %v276
        %v429 = vunpack.c.l.b16 %v277
        %v430 = vunpack.c.l.b16 %v278
        %v431 = vunpack.c.l.b16 %v279
        %v432 = vunpack.c.l.b16 %v280
        %v433 = vunpack.c.l.b16 %v281
        %v434 = vunpack.c.l.b16 %v282
        %v435 = vunpack.c.l.b16 %v283
        %v436 = vunpack.c.l.b16 %v284
        %v437 = vunpack.c.l.b16 %v285
        %v438 = vunpack.c.l.b16 %v286
        %v439 = vunpack.c.l.b16 %v287
        %v440 = vpack.c.b16 %v377, %v376
        %v441 = vpack.c.b16 %v379, %v378
        %v442 = vpack.c.b16 %v381, %v380
        %v443 = vpack.c.b16 %v383, %v382
        %v444 = vpack.c.b16 %v385, %v384
        %v445 = vpack.c.b16 %v387, %v386
        %v446 = vpack.c.b16 %v389, %v388
        %v447 = vpack.c.b16 %v391, %v390
        %v448 = vpack.c.b16 %v393, %v392
        %v449 = vpack.c.b16 %v395, %v394
        %v450 = vpack.c.b16 %v397, %v396
        %v451 = vpack.c.b16 %v399, %v398
        %v452 = vpack.c.b16 %v401, %v400
        %v453 = vpack.c.b16 %v403, %v402
        %v454 = vpack.c.b16 %v405, %v404
        %v455 = vpack.c.b16 %v407, %v406
        %v456 = vpack.c.b16 %v409, %v408
        %v457 = vpack.c.b16 %v411, %v410
        %v458 = vpack.c.b16 %v413, %v412
        %v459 = vpack.c.b16 %v415, %v414
        %v460 = vpack.c.b16 %v417, %v416
        %v461 = vpack.c.b16 %v419, %v418
        %v462 = vpack.c.b16 %v421, %v420
        %v463 = vpack.c.b16 %v423, %v422
        %v464 = vpack.c.b16 %v425, %v424
        %v465 = vpack.c.b16 %v427, %v426
        %v466 = vpack.c.b16 %v429, %v428
        %v467 = vpack.c.b16 %v431, %v430
        %v468 = vpack.c.b16 %v433, %v432
        %v469 = vpack.c.b16 %v435, %v434
        %v470 = vpack.c.b16 %v437, %v436
        %v471 = vpack.c.b16 %v439, %v438
        %504 = vmatpush.bf16.msra.mxu0 %v447
        %505 = vmatpush.bf16.msra.mxu0 %v446
        %506 = vmatpush.bf16.msra.mxu0 %v445
        %507 = vmatpush.bf16.msra.mxu0 %v444
        %508 = vmatpush.bf16.msra.mxu0 %v443
        %509 = vmatpush.bf16.msra.mxu0 %v442
        %510 = vmatpush.bf16.msra.mxu0 %v441
        %511 = vmatpush.bf16.msra.mxu0 %v440
        %512 = vmatmul.bf16.gmra.mxu0 %v304
        %v513 = vpop.f32.mrf.mxu0
        %v514 = vadd.f32 0.0, %v513
        %v515 = vpop.f32.mrf.mxu0
        %v516 = vadd.f32 0.0, %v515
        %517 = vdwg.mxu0
        %518 = vmatpush.bf16.msra.mxu0 %v455
        %519 = vmatpush.bf16.msra.mxu0 %v454
        %520 = vmatpush.bf16.msra.mxu0 %v453
        %521 = vmatpush.bf16.msra.mxu0 %v452
        %522 = vmatpush.bf16.msra.mxu0 %v451
        %523 = vmatpush.bf16.msra.mxu0 %v450
        %524 = vmatpush.bf16.msra.mxu0 %v449
        %525 = vmatpush.bf16.msra.mxu0 %v448
        %526 = vmatmul.bf16.gmra.mxu0 %v305
        %v527 = vpop.f32.mrf.mxu0
        %v528 = vadd.f32 %v514, %v527
        %v529 = vpop.f32.mrf.mxu0
        %v530 = vadd.f32 %v516, %v529
        %531 = vdwg.mxu0
        %532 = vmatpush.bf16.msra.mxu0 %v463
        %533 = vmatpush.bf16.msra.mxu0 %v462
        %534 = vmatpush.bf16.msra.mxu0 %v461
        %535 = vmatpush.bf16.msra.mxu0 %v460
        %536 = vmatpush.bf16.msra.mxu0 %v459
        %537 = vmatpush.bf16.msra.mxu0 %v458
        %538 = vmatpush.bf16.msra.mxu0 %v457
        %539 = vmatpush.bf16.msra.mxu0 %v456
        %540 = vmatmul.bf16.gmra.mxu0 %v306
        %v541 = vpop.f32.mrf.mxu0
        %v542 = vadd.f32 %v528, %v541
        %v543 = vpop.f32.mrf.mxu0
        %v544 = vadd.f32 %v530, %v543
        %545 = vdwg.mxu0
        %546 = vmatpush.bf16.msra.mxu0 %v471
        %547 = vmatpush.bf16.msra.mxu0 %v470
        %548 = vmatpush.bf16.msra.mxu0 %v469
        %549 = vmatpush.bf16.msra.mxu0 %v468
        %550 = vmatpush.bf16.msra.mxu0 %v467
        %551 = vmatpush.bf16.msra.mxu0 %v466
        %552 = vmatpush.bf16.msra.mxu0 %v465
        %553 = vmatpush.bf16.msra.mxu0 %v464
        %554 = vmatmul.bf16.gmra.mxu0 %v307
        %v555 = vpop.f32.mrf.mxu0
        %v556 = vadd.f32 %v542, %v555
        %v557 = vpop.f32.mrf.mxu0
        %v558 = vadd.f32 %v544, %v557
        %559 = vdwg.mxu0
        %s560 = scalar_lea.vmem %s196, 32 [#allocation2]
        %v561 = vld [vmem:[%s560] sm:$0xff]
        %v562 = vld [vmem:[%s560 + $0x8] sm:$0xff]
        %v563 = vld [vmem:[%s560 + $0x10] sm:$0xff]
        %v564 = vld [vmem:[%s560 + $0x18] sm:$0xff]
        %v569 = vunpack.c.l.b16 %v561
        %v570 = vunpack.c.h.b16 %v561
        %v571 = vunpack.c.l.b16 %v562
        %v572 = vunpack.c.h.b16 %v562
        %v573 = vunpack.c.l.b16 %v563
        %v574 = vunpack.c.h.b16 %v563
        %v575 = vunpack.c.l.b16 %v564
        %v576 = vunpack.c.h.b16 %v564
        %v577 = vpack.c.b16 %v573, %v569
        %v578 = vpack.c.b16 %v574, %v570
        %v579 = vpack.c.b16 %v575, %v571
        %v580 = vpack.c.b16 %v576, %v572
        %585 = vmatpush.bf16.msra.mxu0 %v447
        %586 = vmatpush.bf16.msra.mxu0 %v446
        %587 = vmatpush.bf16.msra.mxu0 %v445
        %588 = vmatpush.bf16.msra.mxu0 %v444
        %589 = vmatpush.bf16.msra.mxu0 %v443
        %590 = vmatpush.bf16.msra.mxu0 %v442
        %591 = vmatpush.bf16.msra.mxu0 %v441
        %592 = vmatpush.bf16.msra.mxu0 %v440
        %593 = vmatmul.bf16.gmra.mxu0 %v577
        %v594 = vpop.f32.mrf.mxu0
        %v595 = vadd.f32 0.0, %v594
        %v596 = vpop.f32.mrf.mxu0
        %v597 = vadd.f32 0.0, %v596
        %598 = vdwg.mxu0
        %599 = vmatpush.bf16.msra.mxu0 %v455
        %600 = vmatpush.bf16.msra.mxu0 %v454
        %601 = vmatpush.bf16.msra.mxu0 %v453
        %602 = vmatpush.bf16.msra.mxu0 %v452
        %603 = vmatpush.bf16.msra.mxu0 %v451
        %604 = vmatpush.bf16.msra.mxu0 %v450
        %605 = vmatpush.bf16.msra.mxu0 %v449
        %606 = vmatpush.bf16.msra.mxu0 %v448
        %607 = vmatmul.bf16.gmra.mxu0 %v578
        %v608 = vpop.f32.mrf.mxu0
        %v609 = vadd.f32 %v595, %v608
        %v610 = vpop.f32.mrf.mxu0
        %v611 = vadd.f32 %v597, %v610
        %612 = vdwg.mxu0
        %613 = vmatpush.bf16.msra.mxu0 %v463
        %614 = vmatpush.bf16.msra.mxu0 %v462
        %615 = vmatpush.bf16.msra.mxu0 %v461
        %616 = vmatpush.bf16.msra.mxu0 %v460
        %617 = vmatpush.bf16.msra.mxu0 %v459
        %618 = vmatpush.bf16.msra.mxu0 %v458
        %619 = vmatpush.bf16.msra.mxu0 %v457
        %620 = vmatpush.bf16.msra.mxu0 %v456
        %621 = vmatmul.bf16.gmra.mxu0 %v579
        %v622 = vpop.f32.mrf.mxu0
        %v623 = vadd.f32 %v609, %v622
        %v624 = vpop.f32.mrf.mxu0
        %v625 = vadd.f32 %v611, %v624
        %626 = vdwg.mxu0
        %627 = vmatpush.bf16.msra.mxu0 %v471
        %628 = vmatpush.bf16.msra.mxu0 %v470
        %629 = vmatpush.bf16.msra.mxu0 %v469
        %630 = vmatpush.bf16.msra.mxu0 %v468
        %631 = vmatpush.bf16.msra.mxu0 %v467
        %632 = vmatpush.bf16.msra.mxu0 %v466
        %633 = vmatpush.bf16.msra.mxu0 %v465
        %634 = vmatpush.bf16.msra.mxu0 %v464
        %635 = vmatmul.bf16.gmra.mxu0 %v580
        %v636 = vpop.f32.mrf.mxu0
        %v637 = vadd.f32 %v623, %v636
        %v638 = vpop.f32.mrf.mxu0
        %v639 = vadd.f32 %v625, %v638
        %640 = vdwg.mxu0
        %v641 = vmax.f32 %v556, %v637
        %v642 = vmax.f32 %v558, %v639
        %s643 = scalar_lea.vmem %s196, 64 [#allocation2]
        %v644 = vld [vmem:[%s643] sm:$0xff]
        %v645 = vld [vmem:[%s643 + $0x8] sm:$0xff]
        %v646 = vld [vmem:[%s643 + $0x10] sm:$0xff]
        %v647 = vld [vmem:[%s643 + $0x18] sm:$0xff]
        %v652 = vunpack.c.l.b16 %v644
        %v653 = vunpack.c.h.b16 %v644
        %v654 = vunpack.c.l.b16 %v645
        %v655 = vunpack.c.h.b16 %v645
        %v656 = vunpack.c.l.b16 %v646
        %v657 = vunpack.c.h.b16 %v646
        %v658 = vunpack.c.l.b16 %v647
        %v659 = vunpack.c.h.b16 %v647
        %v660 = vpack.c.b16 %v656, %v652
        %v661 = vpack.c.b16 %v657, %v653
        %v662 = vpack.c.b16 %v658, %v654
        %v663 = vpack.c.b16 %v659, %v655
        %668 = vmatpush.bf16.msra.mxu0 %v447
        %669 = vmatpush.bf16.msra.mxu0 %v446
        %670 = vmatpush.bf16.msra.mxu0 %v445
        %671 = vmatpush.bf16.msra.mxu0 %v444
        %672 = vmatpush.bf16.msra.mxu0 %v443
        %673 = vmatpush.bf16.msra.mxu0 %v442
        %674 = vmatpush.bf16.msra.mxu0 %v441
        %675 = vmatpush.bf16.msra.mxu0 %v440
        %676 = vmatmul.bf16.gmra.mxu0 %v660
        %v677 = vpop.f32.mrf.mxu0
        %v678 = vadd.f32 0.0, %v677
        %v679 = vpop.f32.mrf.mxu0
        %v680 = vadd.f32 0.0, %v679
        %681 = vdwg.mxu0
        %682 = vmatpush.bf16.msra.mxu0 %v455
        %683 = vmatpush.bf16.msra.mxu0 %v454
        %684 = vmatpush.bf16.msra.mxu0 %v453
        %685 = vmatpush.bf16.msra.mxu0 %v452
        %686 = vmatpush.bf16.msra.mxu0 %v451
        %687 = vmatpush.bf16.msra.mxu0 %v450
        %688 = vmatpush.bf16.msra.mxu0 %v449
        %689 = vmatpush.bf16.msra.mxu0 %v448
        %690 = vmatmul.bf16.gmra.mxu0 %v661
        %v691 = vpop.f32.mrf.mxu0
        %v692 = vadd.f32 %v678, %v691
        %v693 = vpop.f32.mrf.mxu0
        %v694 = vadd.f32 %v680, %v693
        %695 = vdwg.mxu0
        %696 = vmatpush.bf16.msra.mxu0 %v463
        %697 = vmatpush.bf16.msra.mxu0 %v462
        %698 = vmatpush.bf16.msra.mxu0 %v461
        %699 = vmatpush.bf16.msra.mxu0 %v460
        %700 = vmatpush.bf16.msra.mxu0 %v459
        %701 = vmatpush.bf16.msra.mxu0 %v458
        %702 = vmatpush.bf16.msra.mxu0 %v457
        %703 = vmatpush.bf16.msra.mxu0 %v456
        %704 = vmatmul.bf16.gmra.mxu0 %v662
        %v705 = vpop.f32.mrf.mxu0
        %v706 = vadd.f32 %v692, %v705
        %v707 = vpop.f32.mrf.mxu0
        %v708 = vadd.f32 %v694, %v707
        %709 = vdwg.mxu0
        %710 = vmatpush.bf16.msra.mxu0 %v471
        %711 = vmatpush.bf16.msra.mxu0 %v470
        %712 = vmatpush.bf16.msra.mxu0 %v469
        %713 = vmatpush.bf16.msra.mxu0 %v468
        %714 = vmatpush.bf16.msra.mxu0 %v467
        %715 = vmatpush.bf16.msra.mxu0 %v466
        %716 = vmatpush.bf16.msra.mxu0 %v465
        %717 = vmatpush.bf16.msra.mxu0 %v464
        %718 = vmatmul.bf16.gmra.mxu0 %v663
        %v719 = vpop.f32.mrf.mxu0
        %v720 = vadd.f32 %v706, %v719
        %v721 = vpop.f32.mrf.mxu0
        %v722 = vadd.f32 %v708, %v721
        %723 = vdwg.mxu0
        %v724 = vmax.f32 %v641, %v720
        %v725 = vmax.f32 %v642, %v722
        %s726 = scalar_lea.vmem %s196, 96 [#allocation2]
        %v727 = vld [vmem:[%s726] sm:$0xff]
        %v728 = vld [vmem:[%s726 + $0x8] sm:$0xff]
        %v729 = vld [vmem:[%s726 + $0x10] sm:$0xff]
        %v730 = vld [vmem:[%s726 + $0x18] sm:$0xff]
        %v735 = vunpack.c.l.b16 %v727
        %v736 = vunpack.c.h.b16 %v727
        %v737 = vunpack.c.l.b16 %v728
        %v738 = vunpack.c.h.b16 %v728
        %v739 = vunpack.c.l.b16 %v729
        %v740 = vunpack.c.h.b16 %v729
        %v741 = vunpack.c.l.b16 %v730
        %v742 = vunpack.c.h.b16 %v730
        %v743 = vpack.c.b16 %v739, %v735
        %v744 = vpack.c.b16 %v740, %v736
        %v745 = vpack.c.b16 %v741, %v737
        %v746 = vpack.c.b16 %v742, %v738
        %751 = vmatpush.bf16.msra.mxu0 %v447
        %752 = vmatpush.bf16.msra.mxu0 %v446
        %753 = vmatpush.bf16.msra.mxu0 %v445
        %754 = vmatpush.bf16.msra.mxu0 %v444
        %755 = vmatpush.bf16.msra.mxu0 %v443
        %756 = vmatpush.bf16.msra.mxu0 %v442
        %757 = vmatpush.bf16.msra.mxu0 %v441
        %758 = vmatpush.bf16.msra.mxu0 %v440
        %759 = vmatmul.bf16.gmra.mxu0 %v743
        %v760 = vpop.f32.mrf.mxu0
        %v761 = vadd.f32 0.0, %v760
        %v762 = vpop.f32.mrf.mxu0
        %v763 = vadd.f32 0.0, %v762
        %764 = vdwg.mxu0
        %765 = vmatpush.bf16.msra.mxu0 %v455
        %766 = vmatpush.bf16.msra.mxu0 %v454
        %767 = vmatpush.bf16.msra.mxu0 %v453
        %768 = vmatpush.bf16.msra.mxu0 %v452
        %769 = vmatpush.bf16.msra.mxu0 %v451
        %770 = vmatpush.bf16.msra.mxu0 %v450
        %771 = vmatpush.bf16.msra.mxu0 %v449
        %772 = vmatpush.bf16.msra.mxu0 %v448
        %773 = vmatmul.bf16.gmra.mxu0 %v744
        %v774 = vpop.f32.mrf.mxu0
        %v775 = vadd.f32 %v761, %v774
        %v776 = vpop.f32.mrf.mxu0
        %v777 = vadd.f32 %v763, %v776
        %778 = vdwg.mxu0
        %779 = vmatpush.bf16.msra.mxu0 %v463
        %780 = vmatpush.bf16.msra.mxu0 %v462
        %781 = vmatpush.bf16.msra.mxu0 %v461
        %782 = vmatpush.bf16.msra.mxu0 %v460
        %783 = vmatpush.bf16.msra.mxu0 %v459
        %784 = vmatpush.bf16.msra.mxu0 %v458
        %785 = vmatpush.bf16.msra.mxu0 %v457
        %786 = vmatpush.bf16.msra.mxu0 %v456
        %787 = vmatmul.bf16.gmra.mxu0 %v745
        %v788 = vpop.f32.mrf.mxu0
        %v789 = vadd.f32 %v775, %v788
        %v790 = vpop.f32.mrf.mxu0
        %v791 = vadd.f32 %v777, %v790
        %792 = vdwg.mxu0
        %793 = vmatpush.bf16.msra.mxu0 %v471
        %794 = vmatpush.bf16.msra.mxu0 %v470
        %795 = vmatpush.bf16.msra.mxu0 %v469
        %796 = vmatpush.bf16.msra.mxu0 %v468
        %797 = vmatpush.bf16.msra.mxu0 %v467
        %798 = vmatpush.bf16.msra.mxu0 %v466
        %799 = vmatpush.bf16.msra.mxu0 %v465
        %800 = vmatpush.bf16.msra.mxu0 %v464
        %801 = vmatmul.bf16.gmra.mxu0 %v746
        %v802 = vpop.f32.mrf.mxu0
        %v803 = vadd.f32 %v789, %v802
        %v804 = vpop.f32.mrf.mxu0
        %v805 = vadd.f32 %v791, %v804
        %806 = vdwg.mxu0
        %v807 = vmax.f32 %v724, %v803
        %v808 = vmax.f32 %v725, %v805
        %v809 = vld [vmem:[%s2] sm:$0x1]
        %v811 = vperm.slane %v809, 0
        %v813 = vadd.f32 %v807, %v811
        %v814 = vadd.f32 %v808, %v811
        %v815 = vmax.f32 %v813, 0.0
        %v816 = vmax.f32 %v814, 0.0
        %v817 = vpack.c.bf16 %v815, %v815
        %v818 = vpack.c.bf16 %v816, %v816
        %vm819 = vcmask 404480
        %820 = vst.msk [vmem:[%s222] sm:$0xf] %vm819, %v817
        %821 = vst.msk [vmem:[%s222 + $0x4] sm:$0xf] %vm819, %v818
        %s822 = smul.u32 2, %s14
        %p823 = scmp.lt.s32.totalorder %s822, 3
        %s824 = scalar_select %p823, %s822, 3
        %s825 = smul.addr %s824, 4
        %s826 = scalar_lea.vmem %s3, %s825
        // Predicated region
        $region56: #{lenet_forward.4} parent=50 // pred_check
          %p827 = pneg %p100
        $region57: #{lenet_forward.4} parent=50 // pred_check_branch
          %829 = sbr.rel (%p827) target = $region59
        $region58: #{lenet_forward.4} parent=50 // pred_region
          %s830 = smul.u32 2, %s14
        $region59: #{lenet_forward.4} parent=50 // pred_fallthru
          _
      $region51: #{lenet_forward.4} parent=5 // pred_fallthru
        _
      %p831 = scmp.le.s32.totalorder 2, %s9
      // Predicated region
      $region60: #{lenet_forward.4} parent=5 // pred_check
        %p832 = pneg %p831
      $region61: #{lenet_forward.4} parent=5 // pred_check_branch
        %834 = sbr.rel (%p832) target = $region63
      $region62: #{lenet_forward.4} parent=5 // pred_region
        %s835 = ssub.s32 %s9, 2
        // Predicated region
        $region64: #{lenet_forward.4} parent=62 // pred_check
          %p836 = pneg %p106
        $region65: #{lenet_forward.4} parent=62 // pred_check_branch
          %838 = sbr.rel (%p836) target = $region67
        $region66: #{lenet_forward.4} parent=62 // pred_region
          %s839 = smul.u32 2, %s15
          %p840 = scmp.lt.s32.totalorder %s839, 3
          %s841 = scalar_select %p840, %s839, 3
          %s842 = smul.addr %s841, 4
          %s843 = scalar_lea.vmem %s3, %s842
        $region67: #{lenet_forward.4} parent=62 // pred_fallthru
          _
      $region63: #{lenet_forward.4} parent=5 // pred_fallthru
        _
    $region6: #{lenet_forward.4} parent=1 // loop_footer
      %s13 = sadd.s32 1, %s9
    $region7: #{lenet_forward.4} parent=1 // loop_footer_branch
      %8 = sbr.rel target = $region3
    $region8: #{lenet_forward.4} parent=1 // loop_exit
      _

// kernel: lenet_forward.5
$region0: #{lenet_forward.5}
  #allocation0 [shape = 'u32[]', space=smem, size = 0x4, offset = 0x4, fixed_abs, tag = 'smem constant byte address 0x4 - core index']
  #allocation1 [shape = 'u32[72,128]{1,0:T(1,128)}', space=vmem, size = 0x9000, scoped, tag = 'internal scratch']
  %s0 = inlined_call_operand.vmem [shape: bf16[2,800], index: 0, kind: input, shape index: {}]
  %s1 = inlined_call_operand.vmem [shape: bf16[800,512], index: 1, kind: input, shape index: {}]
  %s2 = inlined_call_operand.vmem [shape: f32[1,512], index: 2, kind: input, shape index: {}]
  %s3 = inlined_call_operand.vmem [shape: bf16[512,128], index: 3, kind: input, shape index: {}]
  %s4 = inlined_call_operand.vmem [shape: f32[1,128], index: 4, kind: input, shape index: {}]
  %s5 = inlined_call_operand.hbm [shape: f32[2,128], index: 5, kind: output, shape index: {}]
  %s6 = sld [smem:[#allocation0]]
  $region30: #{lenet_forward.5} parent=0
    _
  %s8 = ssub.s32 1, %s6
  %s9 = scalar_select 0, %s8, %s6
  $region1: #{lenet_forward.5} parent=0
    #allocation2 [shape = 'u8[1024]{0}', space=vmem, size = 0x400, scoped, tag = 'output window, operand 0, single buffered']
    #allocation3 [shape = 's32[1]{0}', space=sflag, size = 0x4, scoped, tag = 'scoped memory for lenet_forward.5']
    %10 = vsyncpa [#allocation3], 0
    // Predicated region
    $region2: #{lenet_forward.5} parent=1 // pred_check
      _
    $region3: #{lenet_forward.5} parent=1 // pred_check_branch
      %12 = sbr.rel (0) target = $region5
    $region4: #{lenet_forward.5} parent=1 // pred_region
      _
    $region5: #{lenet_forward.5} parent=1 // pred_fallthru
      _
    // Predicated region
    $region6: #{lenet_forward.5} parent=1 // pred_check
      _
    $region7: #{lenet_forward.5} parent=1 // pred_check_branch
      %14 = sbr.rel (0) target = $region9
    $region8: #{lenet_forward.5} parent=1 // pred_region
      _
    $region9: #{lenet_forward.5} parent=1 // pred_fallthru
      _
    // Predicated region
    $region10: #{lenet_forward.5} parent=1 // pred_check
      _
    $region11: #{lenet_forward.5} parent=1 // pred_check_branch
      %16 = sbr.rel (0) target = $region13
    $region12: #{lenet_forward.5} parent=1 // pred_region
      _
    $region13: #{lenet_forward.5} parent=1 // pred_fallthru
      _
    // Predicated region
    $region14: #{lenet_forward.5} parent=1 // pred_check
      _
    $region15: #{lenet_forward.5} parent=1 // pred_check_branch
      %18 = sbr.rel (0) target = $region17
    $region16: #{lenet_forward.5} parent=1 // pred_region
      _
    $region17: #{lenet_forward.5} parent=1 // pred_fallthru
      _
    // Predicated region
    $region18: #{lenet_forward.5} parent=1 // pred_check
      _
    $region19: #{lenet_forward.5} parent=1 // pred_check_branch
      %20 = sbr.rel (0) target = $region21
    $region20: #{lenet_forward.5} parent=1 // pred_region
      _
    $region21: #{lenet_forward.5} parent=1 // pred_fallthru
      _
    %v22 = vld [vmem:[%s0] sm:$0x7f]
    %v23 = vld [vmem:[%s1] sm:$0xff]
    %v24 = vld [vmem:[%s1 + $0x8] sm:$0xff]
    %v25 = vld [vmem:[%s1 + $0x10] sm:$0xff]
    %v26 = vld [vmem:[%s1 + $0x18] sm:$0xff]
    %v27 = vld [vmem:[%s1 + $0x20] sm:$0xff]
    %v28 = vld [vmem:[%s1 + $0x28] sm:$0xff]
    %v29 = vld [vmem:[%s1 + $0x30] sm:$0xff]
    %v30 = vld [vmem:[%s1 + $0x38] sm:$0xff]
    %v31 = vld [vmem:[%s1 + $0x40] sm:$0xff]
    %v32 = vld [vmem:[%s1 + $0x48] sm:$0xff]
    %v33 = vld [vmem:[%s1 + $0x50] sm:$0xff]
    %v34 = vld [vmem:[%s1 + $0x58] sm:$0xff]
    %v35 = vld [vmem:[%s1 + $0x60] sm:$0xff]
    %v36 = vld [vmem:[%s1 + $0x68] sm:$0xff]
    %v37 = vld [vmem:[%s1 + $0x70] sm:$0xff]
    %v38 = vld [vmem:[%s1 + $0x78] sm:$0xff]
    %v39 = vld [vmem:[%s1 + $0x80] sm:$0xff]
    %v40 = vld [vmem:[%s1 + $0x88] sm:$0xff]
    %v41 = vld [vmem:[%s1 + $0x90] sm:$0xff]
    %v42 = vld [vmem:[%s1 + $0x98] sm:$0xff]
    %v43 = vld [vmem:[%s1 + $0xa0] sm:$0xff]
    %v44 = vld [vmem:[%s1 + $0xa8] sm:$0xff]
    %v45 = vld [vmem:[%s1 + $0xb0] sm:$0xff]
    %v46 = vld [vmem:[%s1 + $0xb8] sm:$0xff]
    %v47 = vld [vmem:[%s1 + $0xc0] sm:$0xff]
    %v48 = vld [vmem:[%s1 + $0xc8] sm:$0xff]
    %v49 = vld [vmem:[%s1 + $0xd0] sm:$0xff]
    %v50 = vld [vmem:[%s1 + $0xd8] sm:$0xff]
    %v51 = vld [vmem:[%s1 + $0xe0] sm:$0xff]
    %v52 = vld [vmem:[%s1 + $0xe8] sm:$0xff]
    %v53 = vld [vmem:[%s1 + $0xf0] sm:$0xff]
    %v54 = vld [vmem:[%s1 + $0xf8] sm:$0xff]
    %v55 = vld [vmem:[%s1 + $0x100] sm:$0xff]
    %v56 = vld [vmem:[%s1 + $0x108] sm:$0xff]
    %v57 = vld [vmem:[%s1 + $0x110] sm:$0xff]
    %v58 = vld [vmem:[%s1 + $0x118] sm:$0xff]
    %v59 = vld [vmem:[%s1 + $0x120] sm:$0xff]
    %v60 = vld [vmem:[%s1 + $0x128] sm:$0xff]
    %v61 = vld [vmem:[%s1 + $0x130] sm:$0xff]
    %v62 = vld [vmem:[%s1 + $0x138] sm:$0xff]
    %v63 = vld [vmem:[%s1 + $0x140] sm:$0xff]
    %v64 = vld [vmem:[%s1 + $0x148] sm:$0xff]
    %v65 = vld [vmem:[%s1 + $0x150] sm:$0xff]
    %v66 = vld [vmem:[%s1 + $0x158] sm:$0xff]
    %v67 = vld [vmem:[%s1 + $0x160] sm:$0xff]
    %v68 = vld [vmem:[%s1 + $0x168] sm:$0xff]
    %v69 = vld [vmem:[%s1 + $0x170] sm:$0xff]
    %v70 = vld [vmem:[%s1 + $0x178] sm:$0xff]
    %v71 = vld [vmem:[%s1 + $0x180] sm:$0xff]
    %v72 = vld [vmem:[%s1 + $0x188] sm:$0xff]
    %v73 = vld [vmem:[%s1 + $0x190] sm:$0xff]
    %v74 = vld [vmem:[%s1 + $0x198] sm:$0xff]
    %v75 = vld [vmem:[%s1 + $0x1a0] sm:$0xff]
    %v76 = vld [vmem:[%s1 + $0x1a8] sm:$0xff]
    %v77 = vld [vmem:[%s1 + $0x1b0] sm:$0xff]
    %v78 = vld [vmem:[%s1 + $0x1b8] sm:$0xff]
    %v79 = vld [vmem:[%s1 + $0x1c0] sm:$0xff]
    %v80 = vld [vmem:[%s1 + $0x1c8] sm:$0xff]
    %v81 = vld [vmem:[%s1 + $0x1d0] sm:$0xff]
    %v82 = vld [vmem:[%s1 + $0x1d8] sm:$0xff]
    %v83 = vld [vmem:[%s1 + $0x1e0] sm:$0xff]
    %v84 = vld [vmem:[%s1 + $0x1e8] sm:$0xff]
    %v85 = vld [vmem:[%s1 + $0x1f0] sm:$0xff]
    %v86 = vld [vmem:[%s1 + $0x1f8] sm:$0xff]
    %v87 = vld [vmem:[%s1 + $0x200] sm:$0xff]
    %v88 = vld [vmem:[%s1 + $0x208] sm:$0xff]
    %v89 = vld [vmem:[%s1 + $0x210] sm:$0xff]
    %v90 = vld [vmem:[%s1 + $0x218] sm:$0xff]
    %v91 = vld [vmem:[%s1 + $0x220] sm:$0xff]
    %v92 = vld [vmem:[%s1 + $0x228] sm:$0xff]
    %v93 = vld [vmem:[%s1 + $0x230] sm:$0xff]
    %v94 = vld [vmem:[%s1 + $0x238] sm:$0xff]
    %v95 = vld [vmem:[%s1 + $0x240] sm:$0xff]
    %v96 = vld [vmem:[%s1 + $0x248] sm:$0xff]
    %v97 = vld [vmem:[%s1 + $0x250] sm:$0xff]
    %v98 = vld [vmem:[%s1 + $0x258] sm:$0xff]
    %v99 = vld [vmem:[%s1 + $0x260] sm:$0xff]
    %v100 = vld [vmem:[%s1 + $0x268] sm:$0xff]
    %v101 = vld [vmem:[%s1 + $0x270] sm:$0xff]
    %v102 = vld [vmem:[%s1 + $0x278] sm:$0xff]
    %v103 = vld [vmem:[%s1 + $0x280] sm:$0xff]
    %v104 = vld [vmem:[%s1 + $0x288] sm:$0xff]
    %v105 = vld [vmem:[%s1 + $0x290] sm:$0xff]
    %v106 = vld [vmem:[%s1 + $0x298] sm:$0xff]
    %v107 = vld [vmem:[%s1 + $0x2a0] sm:$0xff]
    %v108 = vld [vmem:[%s1 + $0x2a8] sm:$0xff]
    %v109 = vld [vmem:[%s1 + $0x2b0] sm:$0xff]
    %v110 = vld [vmem:[%s1 + $0x2b8] sm:$0xff]
    %v111 = vld [vmem:[%s1 + $0x2c0] sm:$0xff]
    %v112 = vld [vmem:[%s1 + $0x2c8] sm:$0xff]
    %v113 = vld [vmem:[%s1 + $0x2d0] sm:$0xff]
    %v114 = vld [vmem:[%s1 + $0x2d8] sm:$0xff]
    %v115 = vld [vmem:[%s1 + $0x2e0] sm:$0xff]
    %v116 = vld [vmem:[%s1 + $0x2e8] sm:$0xff]
    %v117 = vld [vmem:[%s1 + $0x2f0] sm:$0xff]
    %v118 = vld [vmem:[%s1 + $0x2f8] sm:$0xff]
    %v119 = vld [vmem:[%s1 + $0x300] sm:$0xff]
    %v120 = vld [vmem:[%s1 + $0x308] sm:$0xff]
    %v121 = vld [vmem:[%s1 + $0x310] sm:$0xff]
    %v122 = vld [vmem:[%s1 + $0x318] sm:$0xff]
    %v123 = vld [vmem:[%s1 + $0x320] sm:$0xff]
    %v124 = vld [vmem:[%s1 + $0x328] sm:$0xff]
    %v125 = vld [vmem:[%s1 + $0x330] sm:$0xff]
    %v126 = vld [vmem:[%s1 + $0x338] sm:$0xff]
    %v127 = vld [vmem:[%s1 + $0x340] sm:$0xff]
    %v128 = vld [vmem:[%s1 + $0x348] sm:$0xff]
    %v129 = vld [vmem:[%s1 + $0x350] sm:$0xff]
    %v130 = vld [vmem:[%s1 + $0x358] sm:$0xff]
    %v131 = vld [vmem:[%s1 + $0x360] sm:$0xff]
    %v132 = vld [vmem:[%s1 + $0x368] sm:$0xff]
    %v133 = vld [vmem:[%s1 + $0x370] sm:$0xff]
    %v134 = vld [vmem:[%s1 + $0x378] sm:$0xff]
    %v135 = vld [vmem:[%s1 + $0x380] sm:$0xff]
    %v136 = vld [vmem:[%s1 + $0x388] sm:$0xff]
    %v137 = vld [vmem:[%s1 + $0x390] sm:$0xff]
    %v138 = vld [vmem:[%s1 + $0x398] sm:$0xff]
    %v139 = vld [vmem:[%s1 + $0x3a0] sm:$0xff]
    %v140 = vld [vmem:[%s1 + $0x3a8] sm:$0xff]
    %v141 = vld [vmem:[%s1 + $0x3b0] sm:$0xff]
    %v142 = vld [vmem:[%s1 + $0x3b8] sm:$0xff]
    %v143 = vld [vmem:[%s1 + $0x3c0] sm:$0xff]
    %v144 = vld [vmem:[%s1 + $0x3c8] sm:$0xff]
    %v145 = vld [vmem:[%s1 + $0x3d0] sm:$0xff]
    %v146 = vld [vmem:[%s1 + $0x3d8] sm:$0xff]
    %v147 = vld [vmem:[%s1 + $0x3e0] sm:$0xff]
    %v148 = vld [vmem:[%s1 + $0x3e8] sm:$0xff]
    %v149 = vld [vmem:[%s1 + $0x3f0] sm:$0xff]
    %v150 = vld [vmem:[%s1 + $0x3f8] sm:$0xff]
    %v151 = vld [vmem:[%s1 + $0x400] sm:$0xff]
    %v152 = vld [vmem:[%s1 + $0x408] sm:$0xff]
    %v153 = vld [vmem:[%s1 + $0x410] sm:$0xff]
    %v154 = vld [vmem:[%s1 + $0x418] sm:$0xff]
    %v155 = vld [vmem:[%s1 + $0x420] sm:$0xff]
    %v156 = vld [vmem:[%s1 + $0x428] sm:$0xff]
    %v157 = vld [vmem:[%s1 + $0x430] sm:$0xff]
    %v158 = vld [vmem:[%s1 + $0x438] sm:$0xff]
    %v159 = vld [vmem:[%s1 + $0x440] sm:$0xff]
    %v160 = vld [vmem:[%s1 + $0x448] sm:$0xff]
    %v161 = vld [vmem:[%s1 + $0x450] sm:$0xff]
    %v162 = vld [vmem:[%s1 + $0x458] sm:$0xff]
    %v163 = vld [vmem:[%s1 + $0x460] sm:$0xff]
    %v164 = vld [vmem:[%s1 + $0x468] sm:$0xff]
    %v165 = vld [vmem:[%s1 + $0x470] sm:$0xff]
    %v166 = vld [vmem:[%s1 + $0x478] sm:$0xff]
    %v167 = vld [vmem:[%s1 + $0x480] sm:$0xff]
    %v168 = vld [vmem:[%s1 + $0x488] sm:$0xff]
    %v169 = vld [vmem:[%s1 + $0x490] sm:$0xff]
    %v170 = vld [vmem:[%s1 + $0x498] sm:$0xff]
    %v171 = vld [vmem:[%s1 + $0x4a0] sm:$0xff]
    %v172 = vld [vmem:[%s1 + $0x4a8] sm:$0xff]
    %v173 = vld [vmem:[%s1 + $0x4b0] sm:$0xff]
    %v174 = vld [vmem:[%s1 + $0x4b8] sm:$0xff]
    %v175 = vld [vmem:[%s1 + $0x4c0] sm:$0xff]
    %v176 = vld [vmem:[%s1 + $0x4c8] sm:$0xff]
    %v177 = vld [vmem:[%s1 + $0x4d0] sm:$0xff]
    %v178 = vld [vmem:[%s1 + $0x4d8] sm:$0xff]
    %v179 = vld [vmem:[%s1 + $0x4e0] sm:$0xff]
    %v180 = vld [vmem:[%s1 + $0x4e8] sm:$0xff]
    %v181 = vld [vmem:[%s1 + $0x4f0] sm:$0xff]
    %v182 = vld [vmem:[%s1 + $0x4f8] sm:$0xff]
    %v183 = vld [vmem:[%s1 + $0x500] sm:$0xff]
    %v184 = vld [vmem:[%s1 + $0x508] sm:$0xff]
    %v185 = vld [vmem:[%s1 + $0x510] sm:$0xff]
    %v186 = vld [vmem:[%s1 + $0x518] sm:$0xff]
    %v187 = vld [vmem:[%s1 + $0x520] sm:$0xff]
    %v188 = vld [vmem:[%s1 + $0x528] sm:$0xff]
    %v189 = vld [vmem:[%s1 + $0x530] sm:$0xff]
    %v190 = vld [vmem:[%s1 + $0x538] sm:$0xff]
    %v191 = vld [vmem:[%s1 + $0x540] sm:$0xff]
    %v192 = vld [vmem:[%s1 + $0x548] sm:$0xff]
    %v193 = vld [vmem:[%s1 + $0x550] sm:$0xff]
    %v194 = vld [vmem:[%s1 + $0x558] sm:$0xff]
    %v195 = vld [vmem:[%s1 + $0x560] sm:$0xff]
    %v196 = vld [vmem:[%s1 + $0x568] sm:$0xff]
    %v197 = vld [vmem:[%s1 + $0x570] sm:$0xff]
    %v198 = vld [vmem:[%s1 + $0x578] sm:$0xff]
    %v199 = vld [vmem:[%s1 + $0x580] sm:$0xff]
    %v200 = vld [vmem:[%s1 + $0x588] sm:$0xff]
    %v201 = vld [vmem:[%s1 + $0x590] sm:$0xff]
    %v202 = vld [vmem:[%s1 + $0x598] sm:$0xff]
    %v203 = vld [vmem:[%s1 + $0x5a0] sm:$0xff]
    %v204 = vld [vmem:[%s1 + $0x5a8] sm:$0xff]
    %v205 = vld [vmem:[%s1 + $0x5b0] sm:$0xff]
    %v206 = vld [vmem:[%s1 + $0x5b8] sm:$0xff]
    %v207 = vld [vmem:[%s1 + $0x5c0] sm:$0xff]
    %v208 = vld [vmem:[%s1 + $0x5c8] sm:$0xff]
    %v209 = vld [vmem:[%s1 + $0x5d0] sm:$0xff]
    %v210 = vld [vmem:[%s1 + $0x5d8] sm:$0xff]
    %v211 = vld [vmem:[%s1 + $0x5e0] sm:$0xff]
    %v212 = vld [vmem:[%s1 + $0x5e8] sm:$0xff]
    %v213 = vld [vmem:[%s1 + $0x5f0] sm:$0xff]
    %v214 = vld [vmem:[%s1 + $0x5f8] sm:$0xff]
    %v215 = vld [vmem:[%s1 + $0x600] sm:$0xff]
    %v216 = vld [vmem:[%s1 + $0x608] sm:$0xff]
    %v217 = vld [vmem:[%s1 + $0x610] sm:$0xff]
    %v218 = vld [vmem:[%s1 + $0x618] sm:$0xff]
    %v219 = vld [vmem:[%s1 + $0x620] sm:$0xff]
    %v220 = vld [vmem:[%s1 + $0x628] sm:$0xff]
    %v221 = vld [vmem:[%s1 + $0x630] sm:$0xff]
    %v222 = vld [vmem:[%s1 + $0x638] sm:$0xff]
    %v223 = vld [vmem:[%s2] sm:$0xf]
    %v225 = vperm.slane %v223, 0
    %v226 = vperm.slane %v223, 1
    %v227 = vperm.slane %v223, 2
    %v228 = vperm.slane %v223, 3
    %234 = vst [vmem:[#allocation1] ss:$9 sm:$0xff] %v22
    %v235 = vld [vmem:[#allocation1] sm:$0xff]
    %v236 = vld [vmem:[#allocation1 + $0x9] sm:$0xff]
    %v237 = vld [vmem:[#allocation1 + $0x12] sm:$0xff]
    %v238 = vld [vmem:[#allocation1 + $0x1b] sm:$0xff]
    %v239 = vld [vmem:[#allocation1 + $0x24] sm:$0xff]
    %v240 = vld [vmem:[#allocation1 + $0x2d] sm:$0xff]
    %v241 = vld [vmem:[#allocation1 + $0x36] sm:$0xff]
    %v448 = vunpack.c.l.b16 %v23
    %v449 = vunpack.c.h.b16 %v23
    %v450 = vunpack.c.l.b16 %v24
    %v451 = vunpack.c.h.b16 %v24
    %v452 = vunpack.c.l.b16 %v25
    %v453 = vunpack.c.h.b16 %v25
    %v454 = vunpack.c.l.b16 %v26
    %v455 = vunpack.c.h.b16 %v26
    %v456 = vunpack.c.l.b16 %v27
    %v457 = vunpack.c.h.b16 %v27
    %v458 = vunpack.c.l.b16 %v28
    %v459 = vunpack.c.h.b16 %v28
    %v460 = vunpack.c.l.b16 %v29
    %v461 = vunpack.c.h.b16 %v29
    %v462 = vunpack.c.l.b16 %v30
    %v463 = vunpack.c.h.b16 %v30
    %v464 = vunpack.c.l.b16 %v31
    %v465 = vunpack.c.h.b16 %v31
    %v466 = vunpack.c.l.b16 %v32
    %v467 = vunpack.c.h.b16 %v32
    %v468 = vunpack.c.l.b16 %v33
    %v469 = vunpack.c.h.b16 %v33
    %v470 = vunpack.c.l.b16 %v34
    %v471 = vunpack.c.h.b16 %v34
    %v472 = vunpack.c.l.b16 %v35
    %v473 = vunpack.c.h.b16 %v35
    %v474 = vunpack.c.l.b16 %v36
    %v475 = vunpack.c.h.b16 %v36
    %v476 = vunpack.c.l.b16 %v37
    %v477 = vunpack.c.h.b16 %v37
    %v478 = vunpack.c.l.b16 %v38
    %v479 = vunpack.c.h.b16 %v38
    %v480 = vunpack.c.l.b16 %v39
    %v481 = vunpack.c.h.b16 %v39
    %v482 = vunpack.c.l.b16 %v40
    %v483 = vunpack.c.h.b16 %v40
    %v484 = vunpack.c.l.b16 %v41
    %v485 = vunpack.c.h.b16 %v41
    %v486 = vunpack.c.l.b16 %v42
    %v487 = vunpack.c.h.b16 %v42
    %v488 = vunpack.c.l.b16 %v43
    %v489 = vunpack.c.h.b16 %v43
    %v490 = vunpack.c.l.b16 %v44
    %v491 = vunpack.c.h.b16 %v44
    %v492 = vunpack.c.l.b16 %v45
    %v493 = vunpack.c.h.b16 %v45
    %v494 = vunpack.c.l.b16 %v46
    %v495 = vunpack.c.h.b16 %v46
    %v496 = vunpack.c.l.b16 %v47
    %v497 = vunpack.c.h.b16 %v47
    %v498 = vunpack.c.l.b16 %v48
    %v499 = vunpack.c.h.b16 %v48
    %v500 = vunpack.c.l.b16 %v49
    %v501 = vunpack.c.h.b16 %v49
    %v502 = vunpack.c.l.b16 %v50
    %v503 = vunpack.c.h.b16 %v50
    %v504 = vunpack.c.l.b16 %v51
    %v505 = vunpack.c.h.b16 %v51
    %v506 = vunpack.c.l.b16 %v52
    %v507 = vunpack.c.h.b16 %v52
    %v508 = vunpack.c.l.b16 %v53
    %v509 = vunpack.c.h.b16 %v53
    %v510 = vunpack.c.l.b16 %v54
    %v511 = vunpack.c.h.b16 %v54
    %v512 = vunpack.c.l.b16 %v55
    %v513 = vunpack.c.h.b16 %v55
    %v514 = vunpack.c.l.b16 %v56
    %v515 = vunpack.c.h.b16 %v56
    %v516 = vunpack.c.l.b16 %v57
    %v517 = vunpack.c.h.b16 %v57
    %v518 = vunpack.c.l.b16 %v58
    %v519 = vunpack.c.h.b16 %v58
    %v520 = vunpack.c.l.b16 %v59
    %v521 = vunpack.c.h.b16 %v59
    %v522 = vunpack.c.l.b16 %v60
    %v523 = vunpack.c.h.b16 %v60
    %v524 = vunpack.c.l.b16 %v61
    %v525 = vunpack.c.h.b16 %v61
    %v526 = vunpack.c.l.b16 %v62
    %v527 = vunpack.c.h.b16 %v62
    %v528 = vunpack.c.l.b16 %v63
    %v529 = vunpack.c.h.b16 %v63
    %v530 = vunpack.c.l.b16 %v64
    %v531 = vunpack.c.h.b16 %v64
    %v532 = vunpack.c.l.b16 %v65
    %v533 = vunpack.c.h.b16 %v65
    %v534 = vunpack.c.l.b16 %v66
    %v535 = vunpack.c.h.b16 %v66
    %v536 = vunpack.c.l.b16 %v67
    %v537 = vunpack.c.h.b16 %v67
    %v538 = vunpack.c.l.b16 %v68
    %v539 = vunpack.c.h.b16 %v68
    %v540 = vunpack.c.l.b16 %v69
    %v541 = vunpack.c.h.b16 %v69
    %v542 = vunpack.c.l.b16 %v70
    %v543 = vunpack.c.h.b16 %v70
    %v544 = vunpack.c.l.b16 %v71
    %v545 = vunpack.c.h.b16 %v71
    %v546 = vunpack.c.l.b16 %v72
    %v547 = vunpack.c.h.b16 %v72
    %v548 = vunpack.c.l.b16 %v73
    %v549 = vunpack.c.h.b16 %v73
    %v550 = vunpack.c.l.b16 %v74
    %v551 = vunpack.c.h.b16 %v74
    %v552 = vunpack.c.l.b16 %v75
    %v553 = vunpack.c.h.b16 %v75
    %v554 = vunpack.c.l.b16 %v76
    %v555 = vunpack.c.h.b16 %v76
    %v556 = vunpack.c.l.b16 %v77
    %v557 = vunpack.c.h.b16 %v77
    %v558 = vunpack.c.l.b16 %v78
    %v559 = vunpack.c.h.b16 %v78
    %v560 = vunpack.c.l.b16 %v79
    %v561 = vunpack.c.h.b16 %v79
    %v562 = vunpack.c.l.b16 %v80
    %v563 = vunpack.c.h.b16 %v80
    %v564 = vunpack.c.l.b16 %v81
    %v565 = vunpack.c.h.b16 %v81
    %v566 = vunpack.c.l.b16 %v82
    %v567 = vunpack.c.h.b16 %v82
    %v568 = vunpack.c.l.b16 %v83
    %v569 = vunpack.c.h.b16 %v83
    %v570 = vunpack.c.l.b16 %v84
    %v571 = vunpack.c.h.b16 %v84
    %v572 = vunpack.c.l.b16 %v85
    %v573 = vunpack.c.h.b16 %v85
    %v574 = vunpack.c.l.b16 %v86
    %v575 = vunpack.c.h.b16 %v86
    %v576 = vunpack.c.l.b16 %v87
    %v577 = vunpack.c.h.b16 %v87
    %v578 = vunpack.c.l.b16 %v88
    %v579 = vunpack.c.h.b16 %v88
    %v580 = vunpack.c.l.b16 %v89
    %v581 = vunpack.c.h.b16 %v89
    %v582 = vunpack.c.l.b16 %v90
    %v583 = vunpack.c.h.b16 %v90
    %v584 = vunpack.c.l.b16 %v91
    %v585 = vunpack.c.h.b16 %v91
    %v586 = vunpack.c.l.b16 %v92
    %v587 = vunpack.c.h.b16 %v92
    %v588 = vunpack.c.l.b16 %v93
    %v589 = vunpack.c.h.b16 %v93
    %v590 = vunpack.c.l.b16 %v94
    %v591 = vunpack.c.h.b16 %v94
    %v592 = vunpack.c.l.b16 %v95
    %v593 = vunpack.c.h.b16 %v95
    %v594 = vunpack.c.l.b16 %v96
    %v595 = vunpack.c.h.b16 %v96
    %v596 = vunpack.c.l.b16 %v97
    %v597 = vunpack.c.h.b16 %v97
    %v598 = vunpack.c.l.b16 %v98
    %v599 = vunpack.c.h.b16 %v98
    %v600 = vunpack.c.l.b16 %v99
    %v601 = vunpack.c.h.b16 %v99
    %v602 = vunpack.c.l.b16 %v100
    %v603 = vunpack.c.h.b16 %v100
    %v604 = vunpack.c.l.b16 %v101
    %v605 = vunpack.c.h.b16 %v101
    %v606 = vunpack.c.l.b16 %v102
    %v607 = vunpack.c.h.b16 %v102
    %v608 = vunpack.c.l.b16 %v103
    %v609 = vunpack.c.h.b16 %v103
    %v610 = vunpack.c.l.b16 %v104
    %v611 = vunpack.c.h.b16 %v104
    %v612 = vunpack.c.l.b16 %v105
    %v613 = vunpack.c.h.b16 %v105
    %v614 = vunpack.c.l.b16 %v106
    %v615 = vunpack.c.h.b16 %v106
    %v616 = vunpack.c.l.b16 %v107
    %v617 = vunpack.c.h.b16 %v107
    %v618 = vunpack.c.l.b16 %v108
    %v619 = vunpack.c.h.b16 %v108
    %v620 = vunpack.c.l.b16 %v109
    %v621 = vunpack.c.h.b16 %v109
    %v622 = vunpack.c.l.b16 %v110
    %v623 = vunpack.c.h.b16 %v110
    %v624 = vunpack.c.l.b16 %v111
    %v625 = vunpack.c.h.b16 %v111
    %v626 = vunpack.c.l.b16 %v112
    %v627 = vunpack.c.h.b16 %v112
    %v628 = vunpack.c.l.b16 %v113
    %v629 = vunpack.c.h.b16 %v113
    %v630 = vunpack.c.l.b16 %v114
    %v631 = vunpack.c.h.b16 %v114
    %v632 = vunpack.c.l.b16 %v115
    %v633 = vunpack.c.h.b16 %v115
    %v634 = vunpack.c.l.b16 %v116
    %v635 = vunpack.c.h.b16 %v116
    %v636 = vunpack.c.l.b16 %v117
    %v637 = vunpack.c.h.b16 %v117
    %v638 = vunpack.c.l.b16 %v118
    %v639 = vunpack.c.h.b16 %v118
    %v640 = vunpack.c.l.b16 %v119
    %v641 = vunpack.c.h.b16 %v119
    %v642 = vunpack.c.l.b16 %v120
    %v643 = vunpack.c.h.b16 %v120
    %v644 = vunpack.c.l.b16 %v121
    %v645 = vunpack.c.h.b16 %v121
    %v646 = vunpack.c.l.b16 %v122
    %v647 = vunpack.c.h.b16 %v122
    %v648 = vunpack.c.l.b16 %v123
    %v649 = vunpack.c.h.b16 %v123
    %v650 = vunpack.c.l.b16 %v124
    %v651 = vunpack.c.h.b16 %v124
    %v652 = vunpack.c.l.b16 %v125
    %v653 = vunpack.c.h.b16 %v125
    %v654 = vunpack.c.l.b16 %v126
    %v655 = vunpack.c.h.b16 %v126
    %v656 = vunpack.c.l.b16 %v127
    %v657 = vunpack.c.h.b16 %v127
    %v658 = vunpack.c.l.b16 %v128
    %v659 = vunpack.c.h.b16 %v128
    %v660 = vunpack.c.l.b16 %v129
    %v661 = vunpack.c.h.b16 %v129
    %v662 = vunpack.c.l.b16 %v130
    %v663 = vunpack.c.h.b16 %v130
    %v664 = vunpack.c.l.b16 %v131
    %v665 = vunpack.c.h.b16 %v131
    %v666 = vunpack.c.l.b16 %v132
    %v667 = vunpack.c.h.b16 %v132
    %v668 = vunpack.c.l.b16 %v133
    %v669 = vunpack.c.h.b16 %v133
    %v670 = vunpack.c.l.b16 %v134
    %v671 = vunpack.c.h.b16 %v134
    %v672 = vunpack.c.l.b16 %v135
    %v673 = vunpack.c.h.b16 %v135
    %v674 = vunpack.c.l.b16 %v136
    %v675 = vunpack.c.h.b16 %v136
    %v676 = vunpack.c.l.b16 %v137
    %v677 = vunpack.c.h.b16 %v137
    %v678 = vunpack.c.l.b16 %v138
    %v679 = vunpack.c.h.b16 %v138
    %v680 = vunpack.c.l.b16 %v139
    %v681 = vunpack.c.h.b16 %v139
    %v682 = vunpack.c.l.b16 %v140
    %v683 = vunpack.c.h.b16 %v140
    %v684 = vunpack.c.l.b16 %v141
    %v685 = vunpack.c.h.b16 %v141
    %v686 = vunpack.c.l.b16 %v142
    %v687 = vunpack.c.h.b16 %v142
    %v688 = vunpack.c.l.b16 %v143
    %v689 = vunpack.c.h.b16 %v143
    %v690 = vunpack.c.l.b16 %v144
    %v691 = vunpack.c.h.b16 %v144
    %v692 = vunpack.c.l.b16 %v145
    %v693 = vunpack.c.h.b16 %v145
    %v694 = vunpack.c.l.b16 %v146
    %v695 = vunpack.c.h.b16 %v146
    %v696 = vunpack.c.l.b16 %v147
    %v697 = vunpack.c.h.b16 %v147
    %v698 = vunpack.c.l.b16 %v148
    %v699 = vunpack.c.h.b16 %v148
    %v700 = vunpack.c.l.b16 %v149
    %v701 = vunpack.c.h.b16 %v149
    %v702 = vunpack.c.l.b16 %v150
    %v703 = vunpack.c.h.b16 %v150
    %v704 = vunpack.c.l.b16 %v151
    %v705 = vunpack.c.h.b16 %v151
    %v706 = vunpack.c.l.b16 %v152
    %v707 = vunpack.c.h.b16 %v152
    %v708 = vunpack.c.l.b16 %v153
    %v709 = vunpack.c.h.b16 %v153
    %v710 = vunpack.c.l.b16 %v154
    %v711 = vunpack.c.h.b16 %v154
    %v712 = vunpack.c.l.b16 %v155
    %v713 = vunpack.c.h.b16 %v155
    %v714 = vunpack.c.l.b16 %v156
    %v715 = vunpack.c.h.b16 %v156
    %v716 = vunpack.c.l.b16 %v157
    %v717 = vunpack.c.h.b16 %v157
    %v718 = vunpack.c.l.b16 %v158
    %v719 = vunpack.c.h.b16 %v158
    %v720 = vunpack.c.l.b16 %v159
    %v721 = vunpack.c.h.b16 %v159
    %v722 = vunpack.c.l.b16 %v160
    %v723 = vunpack.c.h.b16 %v160
    %v724 = vunpack.c.l.b16 %v161
    %v725 = vunpack.c.h.b16 %v161
    %v726 = vunpack.c.l.b16 %v162
    %v727 = vunpack.c.h.b16 %v162
    %v728 = vunpack.c.l.b16 %v163
    %v729 = vunpack.c.h.b16 %v163
    %v730 = vunpack.c.l.b16 %v164
    %v731 = vunpack.c.h.b16 %v164
    %v732 = vunpack.c.l.b16 %v165
    %v733 = vunpack.c.h.b16 %v165
    %v734 = vunpack.c.l.b16 %v166
    %v735 = vunpack.c.h.b16 %v166
    %v736 = vunpack.c.l.b16 %v167
    %v737 = vunpack.c.h.b16 %v167
    %v738 = vunpack.c.l.b16 %v168
    %v739 = vunpack.c.h.b16 %v168
    %v740 = vunpack.c.l.b16 %v169
    %v741 = vunpack.c.h.b16 %v169
    %v742 = vunpack.c.l.b16 %v170
    %v743 = vunpack.c.h.b16 %v170
    %v744 = vunpack.c.l.b16 %v171
    %v745 = vunpack.c.h.b16 %v171
    %v746 = vunpack.c.l.b16 %v172
    %v747 = vunpack.c.h.b16 %v172
    %v748 = vunpack.c.l.b16 %v173
    %v749 = vunpack.c.h.b16 %v173
    %v750 = vunpack.c.l.b16 %v174
    %v751 = vunpack.c.h.b16 %v174
    %v752 = vunpack.c.l.b16 %v175
    %v753 = vunpack.c.h.b16 %v175
    %v754 = vunpack.c.l.b16 %v176
    %v755 = vunpack.c.h.b16 %v176
    %v756 = vunpack.c.l.b16 %v177
    %v757 = vunpack.c.h.b16 %v177
    %v758 = vunpack.c.l.b16 %v178
    %v759 = vunpack.c.h.b16 %v178
    %v760 = vunpack.c.l.b16 %v179
    %v761 = vunpack.c.h.b16 %v179
    %v762 = vunpack.c.l.b16 %v180
    %v763 = vunpack.c.h.b16 %v180
    %v764 = vunpack.c.l.b16 %v181
    %v765 = vunpack.c.h.b16 %v181
    %v766 = vunpack.c.l.b16 %v182
    %v767 = vunpack.c.h.b16 %v182
    %v768 = vunpack.c.l.b16 %v183
    %v769 = vunpack.c.h.b16 %v183
    %v770 = vunpack.c.l.b16 %v184
    %v771 = vunpack.c.h.b16 %v184
    %v772 = vunpack.c.l.b16 %v185
    %v773 = vunpack.c.h.b16 %v185
    %v774 = vunpack.c.l.b16 %v186
    %v775 = vunpack.c.h.b16 %v186
    %v776 = vunpack.c.l.b16 %v187
    %v777 = vunpack.c.h.b16 %v187
    %v778 = vunpack.c.l.b16 %v188
    %v779 = vunpack.c.h.b16 %v188
    %v780 = vunpack.c.l.b16 %v189
    %v781 = vunpack.c.h.b16 %v189
    %v782 = vunpack.c.l.b16 %v190
    %v783 = vunpack.c.h.b16 %v190
    %v784 = vunpack.c.l.b16 %v191
    %v785 = vunpack.c.h.b16 %v191
    %v786 = vunpack.c.l.b16 %v192
    %v787 = vunpack.c.h.b16 %v192
    %v788 = vunpack.c.l.b16 %v193
    %v789 = vunpack.c.h.b16 %v193
    %v790 = vunpack.c.l.b16 %v194
    %v791 = vunpack.c.h.b16 %v194
    %v792 = vunpack.c.l.b16 %v195
    %v793 = vunpack.c.h.b16 %v195
    %v794 = vunpack.c.l.b16 %v196
    %v795 = vunpack.c.h.b16 %v196
    %v796 = vunpack.c.l.b16 %v197
    %v797 = vunpack.c.h.b16 %v197
    %v798 = vunpack.c.l.b16 %v198
    %v799 = vunpack.c.h.b16 %v198
    %v800 = vunpack.c.l.b16 %v199
    %v801 = vunpack.c.h.b16 %v199
    %v802 = vunpack.c.l.b16 %v200
    %v803 = vunpack.c.h.b16 %v200
    %v804 = vunpack.c.l.b16 %v201
    %v805 = vunpack.c.h.b16 %v201
    %v806 = vunpack.c.l.b16 %v202
    %v807 = vunpack.c.h.b16 %v202
    %v808 = vunpack.c.l.b16 %v203
    %v809 = vunpack.c.h.b16 %v203
    %v810 = vunpack.c.l.b16 %v204
    %v811 = vunpack.c.h.b16 %v204
    %v812 = vunpack.c.l.b16 %v205
    %v813 = vunpack.c.h.b16 %v205
    %v814 = vunpack.c.l.b16 %v206
    %v815 = vunpack.c.h.b16 %v206
    %v816 = vunpack.c.l.b16 %v207
    %v817 = vunpack.c.h.b16 %v207
    %v818 = vunpack.c.l.b16 %v208
    %v819 = vunpack.c.h.b16 %v208
    %v820 = vunpack.c.l.b16 %v209
    %v821 = vunpack.c.h.b16 %v209
    %v822 = vunpack.c.l.b16 %v210
    %v823 = vunpack.c.h.b16 %v210
    %v824 = vunpack.c.l.b16 %v211
    %v825 = vunpack.c.h.b16 %v211
    %v826 = vunpack.c.l.b16 %v212
    %v827 = vunpack.c.h.b16 %v212
    %v828 = vunpack.c.l.b16 %v213
    %v829 = vunpack.c.h.b16 %v213
    %v830 = vunpack.c.l.b16 %v214
    %v831 = vunpack.c.h.b16 %v214
    %v832 = vunpack.c.l.b16 %v215
    %v833 = vunpack.c.h.b16 %v215
    %v834 = vunpack.c.l.b16 %v216
    %v835 = vunpack.c.h.b16 %v216
    %v836 = vunpack.c.l.b16 %v217
    %v837 = vunpack.c.h.b16 %v217
    %v838 = vunpack.c.l.b16 %v218
    %v839 = vunpack.c.h.b16 %v218
    %v840 = vunpack.c.l.b16 %v219
    %v841 = vunpack.c.h.b16 %v219
    %v842 = vunpack.c.l.b16 %v220
    %v843 = vunpack.c.h.b16 %v220
    %v844 = vunpack.c.l.b16 %v221
    %v845 = vunpack.c.h.b16 %v221
    %v846 = vunpack.c.l.b16 %v222
    %v847 = vunpack.c.h.b16 %v222
    %v848 = vpack.c.b16 %v452, %v448
    %v849 = vpack.c.b16 %v453, %v449
    %v850 = vpack.c.b16 %v454, %v450
    %v851 = vpack.c.b16 %v455, %v451
    %v852 = vpack.c.b16 %v460, %v456
    %v853 = vpack.c.b16 %v461, %v457
    %v854 = vpack.c.b16 %v462, %v458
    %v855 = vpack.c.b16 %v463, %v459
    %v856 = vpack.c.b16 %v468, %v464
    %v857 = vpack.c.b16 %v469, %v465
    %v858 = vpack.c.b16 %v470, %v466
    %v859 = vpack.c.b16 %v471, %v467
    %v860 = vpack.c.b16 %v476, %v472
    %v861 = vpack.c.b16 %v477, %v473
    %v862 = vpack.c.b16 %v478, %v474
    %v863 = vpack.c.b16 %v479, %v475
    %v864 = vpack.c.b16 %v484, %v480
    %v865 = vpack.c.b16 %v485, %v481
    %v866 = vpack.c.b16 %v486, %v482
    %v867 = vpack.c.b16 %v487, %v483
    %v868 = vpack.c.b16 %v492, %v488
    %v869 = vpack.c.b16 %v493, %v489
    %v870 = vpack.c.b16 %v494, %v490
    %v871 = vpack.c.b16 %v495, %v491
    %v872 = vpack.c.b16 %v500, %v496
    %v873 = vpack.c.b16 %v501, %v497
    %v874 = vpack.c.b16 %v502, %v498
    %v875 = vpack.c.b16 %v503, %v499
    %v876 = vpack.c.b16 %v508, %v504
    %v877 = vpack.c.b16 %v509, %v505
    %v878 = vpack.c.b16 %v510, %v506
    %v879 = vpack.c.b16 %v511, %v507
    %v880 = vpack.c.b16 %v516, %v512
    %v881 = vpack.c.b16 %v517, %v513
    %v882 = vpack.c.b16 %v518, %v514
    %v883 = vpack.c.b16 %v519, %v515
    %v884 = vpack.c.b16 %v524, %v520
    %v885 = vpack.c.b16 %v525, %v521
    %v886 = vpack.c.b16 %v526, %v522
    %v887 = vpack.c.b16 %v527, %v523
    %v888 = vpack.c.b16 %v532, %v528
    %v889 = vpack.c.b16 %v533, %v529
    %v890 = vpack.c.b16 %v534, %v530
    %v891 = vpack.c.b16 %v535, %v531
    %v892 = vpack.c.b16 %v540, %v536
    %v893 = vpack.c.b16 %v541, %v537
    %v894 = vpack.c.b16 %v542, %v538
    %v895 = vpack.c.b16 %v543, %v539
    %v896 = vpack.c.b16 %v548, %v544
    %v897 = vpack.c.b16 %v549, %v545
    %v898 = vpack.c.b16 %v550, %v546
    %v899 = vpack.c.b16 %v551, %v547
    %v900 = vpack.c.b16 %v556, %v552
    %v901 = vpack.c.b16 %v557, %v553
    %v902 = vpack.c.b16 %v558, %v554
    %v903 = vpack.c.b16 %v559, %v555
    %v904 = vpack.c.b16 %v564, %v560
    %v905 = vpack.c.b16 %v565, %v561
    %v906 = vpack.c.b16 %v566, %v562
    %v907 = vpack.c.b16 %v567, %v563
    %v908 = vpack.c.b16 %v572, %v568
    %v909 = vpack.c.b16 %v573, %v569
    %v910 = vpack.c.b16 %v574, %v570
    %v911 = vpack.c.b16 %v575, %v571
    %v912 = vpack.c.b16 %v580, %v576
    %v913 = vpack.c.b16 %v581, %v577
    %v914 = vpack.c.b16 %v582, %v578
    %v915 = vpack.c.b16 %v583, %v579
    %v916 = vpack.c.b16 %v588, %v584
    %v917 = vpack.c.b16 %v589, %v585
    %v918 = vpack.c.b16 %v590, %v586
    %v919 = vpack.c.b16 %v591, %v587
    %v920 = vpack.c.b16 %v596, %v592
    %v921 = vpack.c.b16 %v597, %v593
    %v922 = vpack.c.b16 %v598, %v594
    %v923 = vpack.c.b16 %v599, %v595
    %v924 = vpack.c.b16 %v604, %v600
    %v925 = vpack.c.b16 %v605, %v601
    %v926 = vpack.c.b16 %v606, %v602
    %v927 = vpack.c.b16 %v607, %v603
    %v928 = vpack.c.b16 %v612, %v608
    %v929 = vpack.c.b16 %v613, %v609
    %v930 = vpack.c.b16 %v614, %v610
    %v931 = vpack.c.b16 %v615, %v611
    %v932 = vpack.c.b16 %v620, %v616
    %v933 = vpack.c.b16 %v621, %v617
    %v934 = vpack.c.b16 %v622, %v618
    %v935 = vpack.c.b16 %v623, %v619
    %v936 = vpack.c.b16 %v628, %v624
    %v937 = vpack.c.b16 %v629, %v625
    %v938 = vpack.c.b16 %v630, %v626
    %v939 = vpack.c.b16 %v631, %v627
    %v940 = vpack.c.b16 %v636, %v632
    %v941 = vpack.c.b16 %v637, %v633
    %v942 = vpack.c.b16 %v638, %v634
    %v943 = vpack.c.b16 %v639, %v635
    %v944 = vpack.c.b16 %v644, %v640
    %v945 = vpack.c.b16 %v645, %v641
    %v946 = vpack.c.b16 %v646, %v642
    %v947 = vpack.c.b16 %v647, %v643
    %v948 = vpack.c.b16 %v652, %v648
    %v949 = vpack.c.b16 %v653, %v649
    %v950 = vpack.c.b16 %v654, %v650
    %v951 = vpack.c.b16 %v655, %v651
    %v952 = vpack.c.b16 %v660, %v656
    %v953 = vpack.c.b16 %v661, %v657
    %v954 = vpack.c.b16 %v662, %v658
    %v955 = vpack.c.b16 %v663, %v659
    %v956 = vpack.c.b16 %v668, %v664
    %v957 = vpack.c.b16 %v669, %v665
    %v958 = vpack.c.b16 %v670, %v666
    %v959 = vpack.c.b16 %v671, %v667
    %v960 = vpack.c.b16 %v676, %v672
    %v961 = vpack.c.b16 %v677, %v673
    %v962 = vpack.c.b16 %v678, %v674
    %v963 = vpack.c.b16 %v679, %v675
    %v964 = vpack.c.b16 %v684, %v680
    %v965 = vpack.c.b16 %v685, %v681
    %v966 = vpack.c.b16 %v686, %v682
    %v967 = vpack.c.b16 %v687, %v683
    %v968 = vpack.c.b16 %v692, %v688
    %v969 = vpack.c.b16 %v693, %v689
    %v970 = vpack.c.b16 %v694, %v690
    %v971 = vpack.c.b16 %v695, %v691
    %v972 = vpack.c.b16 %v700, %v696
    %v973 = vpack.c.b16 %v701, %v697
    %v974 = vpack.c.b16 %v702, %v698
    %v975 = vpack.c.b16 %v703, %v699
    %v976 = vpack.c.b16 %v708, %v704
    %v977 = vpack.c.b16 %v709, %v705
    %v978 = vpack.c.b16 %v710, %v706
    %v979 = vpack.c.b16 %v711, %v707
    %v980 = vpack.c.b16 %v716, %v712
    %v981 = vpack.c.b16 %v717, %v713
    %v982 = vpack.c.b16 %v718, %v714
    %v983 = vpack.c.b16 %v719, %v715
    %v984 = vpack.c.b16 %v724, %v720
    %v985 = vpack.c.b16 %v725, %v721
    %v986 = vpack.c.b16 %v726, %v722
    %v987 = vpack.c.b16 %v727, %v723
    %v988 = vpack.c.b16 %v732, %v728
    %v989 = vpack.c.b16 %v733, %v729
    %v990 = vpack.c.b16 %v734, %v730
    %v991 = vpack.c.b16 %v735, %v731
    %v992 = vpack.c.b16 %v740, %v736
    %v993 = vpack.c.b16 %v741, %v737
    %v994 = vpack.c.b16 %v742, %v738
    %v995 = vpack.c.b16 %v743, %v739
    %v996 = vpack.c.b16 %v748, %v744
    %v997 = vpack.c.b16 %v749, %v745
    %v998 = vpack.c.b16 %v750, %v746
    %v999 = vpack.c.b16 %v751, %v747
    %v1000 = vpack.c.b16 %v756, %v752
    %v1001 = vpack.c.b16 %v757, %v753
    %v1002 = vpack.c.b16 %v758, %v754
    %v1003 = vpack.c.b16 %v759, %v755
    %v1004 = vpack.c.b16 %v764, %v760
    %v1005 = vpack.c.b16 %v765, %v761
    %v1006 = vpack.c.b16 %v766, %v762
    %v1007 = vpack.c.b16 %v767, %v763
    %v1008 = vpack.c.b16 %v772, %v768
    %v1009 = vpack.c.b16 %v773, %v769
    %v1010 = vpack.c.b16 %v774, %v770
    %v1011 = vpack.c.b16 %v775, %v771
    %v1012 = vpack.c.b16 %v780, %v776
    %v1013 = vpack.c.b16 %v781, %v777
    %v1014 = vpack.c.b16 %v782, %v778
    %v1015 = vpack.c.b16 %v783, %v779
    %v1016 = vpack.c.b16 %v788, %v784
    %v1017 = vpack.c.b16 %v789, %v785
    %v1018 = vpack.c.b16 %v790, %v786
    %v1019 = vpack.c.b16 %v791, %v787
    %v1020 = vpack.c.b16 %v796, %v792
    %v1021 = vpack.c.b16 %v797, %v793
    %v1022 = vpack.c.b16 %v798, %v794
    %v1023 = vpack.c.b16 %v799, %v795
    %v1024 = vpack.c.b16 %v804, %v800
    %v1025 = vpack.c.b16 %v805, %v801
    %v1026 = vpack.c.b16 %v806, %v802
    %v1027 = vpack.c.b16 %v807, %v803
    %v1028 = vpack.c.b16 %v812, %v808
    %v1029 = vpack.c.b16 %v813, %v809
    %v1030 = vpack.c.b16 %v814, %v810
    %v1031 = vpack.c.b16 %v815, %v811
    %v1032 = vpack.c.b16 %v820, %v816
    %v1033 = vpack.c.b16 %v821, %v817
    %v1034 = vpack.c.b16 %v822, %v818
    %v1035 = vpack.c.b16 %v823, %v819
    %v1036 = vpack.c.b16 %v828, %v824
    %v1037 = vpack.c.b16 %v829, %v825
    %v1038 = vpack.c.b16 %v830, %v826
    %v1039 = vpack.c.b16 %v831, %v827
    %v1040 = vpack.c.b16 %v836, %v832
    %v1041 = vpack.c.b16 %v837, %v833
    %v1042 = vpack.c.b16 %v838, %v834
    %v1043 = vpack.c.b16 %v839, %v835
    %v1044 = vpack.c.b16 %v844, %v840
    %v1045 = vpack.c.b16 %v845, %v841
    %v1046 = vpack.c.b16 %v846, %v842
    %v1047 = vpack.c.b16 %v847, %v843
    %vm1248 = vcmask 261120
    %v1249 = vsel %vm1248, %v241, 0
    %1251 = vmatpush.bf16.msra.mxu0 %v876
    %1252 = vmatpush.bf16.msra.mxu0 %v872
    %1253 = vmatpush.bf16.msra.mxu0 %v868
    %1254 = vmatpush.bf16.msra.mxu0 %v864
    %1255 = vmatpush.bf16.msra.mxu0 %v860
    %1256 = vmatpush.bf16.msra.mxu0 %v856
    %1257 = vmatpush.bf16.msra.mxu0 %v852
    %1258 = vmatpush.bf16.msra.mxu0 %v848
    %1259 = vmatmul.bf16.gmra.mxu0 %v235
    %v1260 = vpop.f32.mrf.mxu0
    %v1261 = vadd.f32 %v225, %v1260
    %v1262 = vpop.f32.mrf.mxu0
    %1263 = vdwg.mxu0
    %1264 = vmatpush.bf16.msra.mxu0 %v908
    %1265 = vmatpush.bf16.msra.mxu0 %v904
    %1266 = vmatpush.bf16.msra.mxu0 %v900
    %1267 = vmatpush.bf16.msra.mxu0 %v896
    %1268 = vmatpush.bf16.msra.mxu0 %v892
    %1269 = vmatpush.bf16.msra.mxu0 %v888
    %1270 = vmatpush.bf16.msra.mxu0 %v884
    %1271 = vmatpush.bf16.msra.mxu0 %v880
    %1272 = vmatmul.bf16.gmra.mxu0 %v236
    %v1273 = vpop.f32.mrf.mxu0
    %v1274 = vadd.f32 %v1261, %v1273
    %v1275 = vpop.f32.mrf.mxu0
    %1276 = vdwg.mxu0
    %1277 = vmatpush.bf16.msra.mxu0 %v940
    %1278 = vmatpush.bf16.msra.mxu0 %v936
    %1279 = vmatpush.bf16.msra.mxu0 %v932
    %1280 = vmatpush.bf16.msra.mxu0 %v928
    %1281 = vmatpush.bf16.msra.mxu0 %v924
    %1282 = vmatpush.bf16.msra.mxu0 %v920
    %1283 = vmatpush.bf16.msra.mxu0 %v916
    %1284 = vmatpush.bf16.msra.mxu0 %v912
    %1285 = vmatmul.bf16.gmra.mxu0 %v237
    %v1286 = vpop.f32.mrf.mxu0
    %v1287 = vadd.f32 %v1274, %v1286
    %v1288 = vpop.f32.mrf.mxu0
    %1289 = vdwg.mxu0
    %1290 = vmatpush.bf16.msra.mxu0 %v972
    %1291 = vmatpush.bf16.msra.mxu0 %v968
    %1292 = vmatpush.bf16.msra.mxu0 %v964
    %1293 = vmatpush.bf16.msra.mxu0 %v960
    %1294 = vmatpush.bf16.msra.mxu0 %v956
    %1295 = vmatpush.bf16.msra.mxu0 %v952
    %1296 = vmatpush.bf16.msra.mxu0 %v948
    %1297 = vmatpush.bf16.msra.mxu0 %v944
    %1298 = vmatmul.bf16.gmra.mxu0 %v238
    %v1299 = vpop.f32.mrf.mxu0
    %v1300 = vadd.f32 %v1287, %v1299
    %v1301 = vpop.f32.mrf.mxu0
    %1302 = vdwg.mxu0
    %1303 = vmatpush.bf16.msra.mxu0 %v1004
    %1304 = vmatpush.bf16.msra.mxu0 %v1000
    %1305 = vmatpush.bf16.msra.mxu0 %v996
    %1306 = vmatpush.bf16.msra.mxu0 %v992
    %1307 = vmatpush.bf16.msra.mxu0 %v988
    %1308 = vmatpush.bf16.msra.mxu0 %v984
    %1309 = vmatpush.bf16.msra.mxu0 %v980
    %1310 = vmatpush.bf16.msra.mxu0 %v976
    %1311 = vmatmul.bf16.gmra.mxu0 %v239
    %v1312 = vpop.f32.mrf.mxu0
    %v1313 = vadd.f32 %v1300, %v1312
    %v1314 = vpop.f32.mrf.mxu0
    %1315 = vdwg.mxu0
    %1316 = vmatpush.bf16.msra.mxu0 %v1036
    %1317 = vmatpush.bf16.msra.mxu0 %v1032
    %1318 = vmatpush.bf16.msra.mxu0 %v1028
    %1319 = vmatpush.bf16.msra.mxu0 %v1024
    %1320 = vmatpush.bf16.msra.mxu0 %v1020
    %1321 = vmatpush.bf16.msra.mxu0 %v1016
    %1322 = vmatpush.bf16.msra.mxu0 %v1012
    %1323 = vmatpush.bf16.msra.mxu0 %v1008
    %1324 = vmatmul.bf16.gmra.mxu0 %v240
    %v1325 = vpop.f32.mrf.mxu0
    %v1326 = vadd.f32 %v1313, %v1325
    %v1327 = vpop.f32.mrf.mxu0
    %1328 = vdwg.mxu0
    %1329 = vmatpush.bf16.msra.mxu0 0
    %1330 = vmatpush.bf16.msra.mxu0 0
    %1331 = vmatpush.bf16.msra.mxu0 0
    %1332 = vmatpush.bf16.msra.mxu0 0
    %1333 = vmatpush.bf16.msra.mxu0 0
    %1334 = vmatpush.bf16.msra.mxu0 0
    %1335 = vmatpush.bf16.msra.mxu0 %v1044
    %1336 = vmatpush.bf16.msra.mxu0 %v1040
    %1337 = vmatmul.bf16.gmra.mxu0 %v1249
    %v1338 = vpop.f32.mrf.mxu0
    %v1339 = vadd.f32 %v1326, %v1338
    %v1340 = vpop.f32.mrf.mxu0
    %1341 = vdwg.mxu0
    %1342 = vmatpush.bf16.msra.mxu0 %v877
    %1343 = vmatpush.bf16.msra.mxu0 %v873
    %1344 = vmatpush.bf16.msra.mxu0 %v869
    %1345 = vmatpush.bf16.msra.mxu0 %v865
    %1346 = vmatpush.bf16.msra.mxu0 %v861
    %1347 = vmatpush.bf16.msra.mxu0 %v857
    %1348 = vmatpush.bf16.msra.mxu0 %v853
    %1349 = vmatpush.bf16.msra.mxu0 %v849
    %1350 = vmatmul.bf16.gmra.mxu0 %v235
    %v1351 = vpop.f32.mrf.mxu0
    %v1352 = vadd.f32 %v226, %v1351
    %v1353 = vpop.f32.mrf.mxu0
    %1354 = vdwg.mxu0
    %1355 = vmatpush.bf16.msra.mxu0 %v909
    %1356 = vmatpush.bf16.msra.mxu0 %v905
    %1357 = vmatpush.bf16.msra.mxu0 %v901
    %1358 = vmatpush.bf16.msra.mxu0 %v897
    %1359 = vmatpush.bf16.msra.mxu0 %v893
    %1360 = vmatpush.bf16.msra.mxu0 %v889
    %1361 = vmatpush.bf16.msra.mxu0 %v885
    %1362 = vmatpush.bf16.msra.mxu0 %v881
    %1363 = vmatmul.bf16.gmra.mxu0 %v236
    %v1364 = vpop.f32.mrf.mxu0
    %v1365 = vadd.f32 %v1352, %v1364
    %v1366 = vpop.f32.mrf.mxu0
    %1367 = vdwg.mxu0
    %1368 = vmatpush.bf16.msra.mxu0 %v941
    %1369 = vmatpush.bf16.msra.mxu0 %v937
    %1370 = vmatpush.bf16.msra.mxu0 %v933
    %1371 = vmatpush.bf16.msra.mxu0 %v929
    %1372 = vmatpush.bf16.msra.mxu0 %v925
    %1373 = vmatpush.bf16.msra.mxu0 %v921
    %1374 = vmatpush.bf16.msra.mxu0 %v917
    %1375 = vmatpush.bf16.msra.mxu0 %v913
    %1376 = vmatmul.bf16.gmra.mxu0 %v237
    %v1377 = vpop.f32.mrf.mxu0
    %v1378 = vadd.f32 %v1365, %v1377
    %v1379 = vpop.f32.mrf.mxu0
    %1380 = vdwg.mxu0
    %1381 = vmatpush.bf16.msra.mxu0 %v973
    %1382 = vmatpush.bf16.msra.mxu0 %v969
    %1383 = vmatpush.bf16.msra.mxu0 %v965
    %1384 = vmatpush.bf16.msra.mxu0 %v961
    %1385 = vmatpush.bf16.msra.mxu0 %v957
    %1386 = vmatpush.bf16.msra.mxu0 %v953
    %1387 = vmatpush.bf16.msra.mxu0 %v949
    %1388 = vmatpush.bf16.msra.mxu0 %v945
    %1389 = vmatmul.bf16.gmra.mxu0 %v238
    %v1390 = vpop.f32.mrf.mxu0
    %v1391 = vadd.f32 %v1378, %v1390
    %v1392 = vpop.f32.mrf.mxu0
    %1393 = vdwg.mxu0
    %1394 = vmatpush.bf16.msra.mxu0 %v1005
    %1395 = vmatpush.bf16.msra.mxu0 %v1001
    %1396 = vmatpush.bf16.msra.mxu0 %v997
    %1397 = vmatpush.bf16.msra.mxu0 %v993
    %1398 = vmatpush.bf16.msra.mxu0 %v989
    %1399 = vmatpush.bf16.msra.mxu0 %v985
    %1400 = vmatpush.bf16.msra.mxu0 %v981
    %1401 = vmatpush.bf16.msra.mxu0 %v977
    %1402 = vmatmul.bf16.gmra.mxu0 %v239
    %v1403 = vpop.f32.mrf.mxu0
    %v1404 = vadd.f32 %v1391, %v1403
    %v1405 = vpop.f32.mrf.mxu0
    %1406 = vdwg.mxu0
    %1407 = vmatpush.bf16.msra.mxu0 %v1037
    %1408 = vmatpush.bf16.msra.mxu0 %v1033
    %1409 = vmatpush.bf16.msra.mxu0 %v1029
    %1410 = vmatpush.bf16.msra.mxu0 %v1025
    %1411 = vmatpush.bf16.msra.mxu0 %v1021
    %1412 = vmatpush.bf16.msra.mxu0 %v1017
    %1413 = vmatpush.bf16.msra.mxu0 %v1013
    %1414 = vmatpush.bf16.msra.mxu0 %v1009
    %1415 = vmatmul.bf16.gmra.mxu0 %v240
    %v1416 = vpop.f32.mrf.mxu0
    %v1417 = vadd.f32 %v1404, %v1416
    %v1418 = vpop.f32.mrf.mxu0
    %1419 = vdwg.mxu0
    %1420 = vmatpush.bf16.msra.mxu0 0
    %1421 = vmatpush.bf16.msra.mxu0 0
    %1422 = vmatpush.bf16.msra.mxu0 0
    %1423 = vmatpush.bf16.msra.mxu0 0
    %1424 = vmatpush.bf16.msra.mxu0 0
    %1425 = vmatpush.bf16.msra.mxu0 0
    %1426 = vmatpush.bf16.msra.mxu0 %v1045
    %1427 = vmatpush.bf16.msra.mxu0 %v1041
    %1428 = vmatmul.bf16.gmra.mxu0 %v1249
    %v1429 = vpop.f32.mrf.mxu0
    %v1430 = vadd.f32 %v1417, %v1429
    %v1431 = vpop.f32.mrf.mxu0
    %1432 = vdwg.mxu0
    %1433 = vmatpush.bf16.msra.mxu0 %v878
    %1434 = vmatpush.bf16.msra.mxu0 %v874
    %1435 = vmatpush.bf16.msra.mxu0 %v870
    %1436 = vmatpush.bf16.msra.mxu0 %v866
    %1437 = vmatpush.bf16.msra.mxu0 %v862
    %1438 = vmatpush.bf16.msra.mxu0 %v858
    %1439 = vmatpush.bf16.msra.mxu0 %v854
    %1440 = vmatpush.bf16.msra.mxu0 %v850
    %1441 = vmatmul.bf16.gmra.mxu0 %v235
    %v1442 = vpop.f32.mrf.mxu0
    %v1443 = vadd.f32 %v227, %v1442
    %v1444 = vpop.f32.mrf.mxu0
    %1445 = vdwg.mxu0
    %1446 = vmatpush.bf16.msra.mxu0 %v910
    %1447 = vmatpush.bf16.msra.mxu0 %v906
    %1448 = vmatpush.bf16.msra.mxu0 %v902
    %1449 = vmatpush.bf16.msra.mxu0 %v898
    %1450 = vmatpush.bf16.msra.mxu0 %v894
    %1451 = vmatpush.bf16.msra.mxu0 %v890
    %1452 = vmatpush.bf16.msra.mxu0 %v886
    %1453 = vmatpush.bf16.msra.mxu0 %v882
    %1454 = vmatmul.bf16.gmra.mxu0 %v236
    %v1455 = vpop.f32.mrf.mxu0
    %v1456 = vadd.f32 %v1443, %v1455
    %v1457 = vpop.f32.mrf.mxu0
    %1458 = vdwg.mxu0
    %1459 = vmatpush.bf16.msra.mxu0 %v942
    %1460 = vmatpush.bf16.msra.mxu0 %v938
    %1461 = vmatpush.bf16.msra.mxu0 %v934
    %1462 = vmatpush.bf16.msra.mxu0 %v930
    %1463 = vmatpush.bf16.msra.mxu0 %v926
    %1464 = vmatpush.bf16.msra.mxu0 %v922
    %1465 = vmatpush.bf16.msra.mxu0 %v918
    %1466 = vmatpush.bf16.msra.mxu0 %v914
    %1467 = vmatmul.bf16.gmra.mxu0 %v237
    %v1468 = vpop.f32.mrf.mxu0
    %v1469 = vadd.f32 %v1456, %v1468
    %v1470 = vpop.f32.mrf.mxu0
    %1471 = vdwg.mxu0
    %1472 = vmatpush.bf16.msra.mxu0 %v974
    %1473 = vmatpush.bf16.msra.mxu0 %v970
    %1474 = vmatpush.bf16.msra.mxu0 %v966
    %1475 = vmatpush.bf16.msra.mxu0 %v962
    %1476 = vmatpush.bf16.msra.mxu0 %v958
    %1477 = vmatpush.bf16.msra.mxu0 %v954
    %1478 = vmatpush.bf16.msra.mxu0 %v950
    %1479 = vmatpush.bf16.msra.mxu0 %v946
    %1480 = vmatmul.bf16.gmra.mxu0 %v238
    %v1481 = vpop.f32.mrf.mxu0
    %v1482 = vadd.f32 %v1469, %v1481
    %v1483 = vpop.f32.mrf.mxu0
    %1484 = vdwg.mxu0
    %1485 = vmatpush.bf16.msra.mxu0 %v1006
    %1486 = vmatpush.bf16.msra.mxu0 %v1002
    %1487 = vmatpush.bf16.msra.mxu0 %v998
    %1488 = vmatpush.bf16.msra.mxu0 %v994
    %1489 = vmatpush.bf16.msra.mxu0 %v990
    %1490 = vmatpush.bf16.msra.mxu0 %v986
    %1491 = vmatpush.bf16.msra.mxu0 %v982
    %1492 = vmatpush.bf16.msra.mxu0 %v978
    %1493 = vmatmul.bf16.gmra.mxu0 %v239
    %v1494 = vpop.f32.mrf.mxu0
    %v1495 = vadd.f32 %v1482, %v1494
    %v1496 = vpop.f32.mrf.mxu0
    %1497 = vdwg.mxu0
    %1498 = vmatpush.bf16.msra.mxu0 %v1038
    %1499 = vmatpush.bf16.msra.mxu0 %v1034
    %1500 = vmatpush.bf16.msra.mxu0 %v1030
    %1501 = vmatpush.bf16.msra.mxu0 %v1026
    %1502 = vmatpush.bf16.msra.mxu0 %v1022
    %1503 = vmatpush.bf16.msra.mxu0 %v1018
    %1504 = vmatpush.bf16.msra.mxu0 %v1014
    %1505 = vmatpush.bf16.msra.mxu0 %v1010
    %1506 = vmatmul.bf16.gmra.mxu0 %v240
    %v1507 = vpop.f32.mrf.mxu0
    %v1508 = vadd.f32 %v1495, %v1507
    %v1509 = vpop.f32.mrf.mxu0
    %1510 = vdwg.mxu0
    %1511 = vmatpush.bf16.msra.mxu0 0
    %1512 = vmatpush.bf16.msra.mxu0 0
    %1513 = vmatpush.bf16.msra.mxu0 0
    %1514 = vmatpush.bf16.msra.mxu0 0
    %1515 = vmatpush.bf16.msra.mxu0 0
    %1516 = vmatpush.bf16.msra.mxu0 0
    %1517 = vmatpush.bf16.msra.mxu0 %v1046
    %1518 = vmatpush.bf16.msra.mxu0 %v1042
    %1519 = vmatmul.bf16.gmra.mxu0 %v1249
    %v1520 = vpop.f32.mrf.mxu0
    %v1521 = vadd.f32 %v1508, %v1520
    %v1522 = vpop.f32.mrf.mxu0
    %1523 = vdwg.mxu0
    %1524 = vmatpush.bf16.msra.mxu0 %v879
    %1525 = vmatpush.bf16.msra.mxu0 %v875
    %1526 = vmatpush.bf16.msra.mxu0 %v871
    %1527 = vmatpush.bf16.msra.mxu0 %v867
    %1528 = vmatpush.bf16.msra.mxu0 %v863
    %1529 = vmatpush.bf16.msra.mxu0 %v859
    %1530 = vmatpush.bf16.msra.mxu0 %v855
    %1531 = vmatpush.bf16.msra.mxu0 %v851
    %1532 = vmatmul.bf16.gmra.mxu0 %v235
    %v1533 = vpop.f32.mrf.mxu0
    %v1534 = vadd.f32 %v228, %v1533
    %v1535 = vpop.f32.mrf.mxu0
    %1536 = vdwg.mxu0
    %1537 = vmatpush.bf16.msra.mxu0 %v911
    %1538 = vmatpush.bf16.msra.mxu0 %v907
    %1539 = vmatpush.bf16.msra.mxu0 %v903
    %1540 = vmatpush.bf16.msra.mxu0 %v899
    %1541 = vmatpush.bf16.msra.mxu0 %v895
    %1542 = vmatpush.bf16.msra.mxu0 %v891
    %1543 = vmatpush.bf16.msra.mxu0 %v887
    %1544 = vmatpush.bf16.msra.mxu0 %v883
    %1545 = vmatmul.bf16.gmra.mxu0 %v236
    %v1546 = vpop.f32.mrf.mxu0
    %v1547 = vadd.f32 %v1534, %v1546
    %v1548 = vpop.f32.mrf.mxu0
    %1549 = vdwg.mxu0
    %1550 = vmatpush.bf16.msra.mxu0 %v943
    %1551 = vmatpush.bf16.msra.mxu0 %v939
    %1552 = vmatpush.bf16.msra.mxu0 %v935
    %1553 = vmatpush.bf16.msra.mxu0 %v931
    %1554 = vmatpush.bf16.msra.mxu0 %v927
    %1555 = vmatpush.bf16.msra.mxu0 %v923
    %1556 = vmatpush.bf16.msra.mxu0 %v919
    %1557 = vmatpush.bf16.msra.mxu0 %v915
    %1558 = vmatmul.bf16.gmra.mxu0 %v237
    %v1559 = vpop.f32.mrf.mxu0
    %v1560 = vadd.f32 %v1547, %v1559
    %v1561 = vpop.f32.mrf.mxu0
    %1562 = vdwg.mxu0
    %1563 = vmatpush.bf16.msra.mxu0 %v975
    %1564 = vmatpush.bf16.msra.mxu0 %v971
    %1565 = vmatpush.bf16.msra.mxu0 %v967
    %1566 = vmatpush.bf16.msra.mxu0 %v963
    %1567 = vmatpush.bf16.msra.mxu0 %v959
    %1568 = vmatpush.bf16.msra.mxu0 %v955
    %1569 = vmatpush.bf16.msra.mxu0 %v951
    %1570 = vmatpush.bf16.msra.mxu0 %v947
    %1571 = vmatmul.bf16.gmra.mxu0 %v238
    %v1572 = vpop.f32.mrf.mxu0
    %v1573 = vadd.f32 %v1560, %v1572
    %v1574 = vpop.f32.mrf.mxu0
    %1575 = vdwg.mxu0
    %1576 = vmatpush.bf16.msra.mxu0 %v1007
    %1577 = vmatpush.bf16.msra.mxu0 %v1003
    %1578 = vmatpush.bf16.msra.mxu0 %v999
    %1579 = vmatpush.bf16.msra.mxu0 %v995
    %1580 = vmatpush.bf16.msra.mxu0 %v991
    %1581 = vmatpush.bf16.msra.mxu0 %v987
    %1582 = vmatpush.bf16.msra.mxu0 %v983
    %1583 = vmatpush.bf16.msra.mxu0 %v979
    %1584 = vmatmul.bf16.gmra.mxu0 %v239
    %v1585 = vpop.f32.mrf.mxu0
    %v1586 = vadd.f32 %v1573, %v1585
    %v1587 = vpop.f32.mrf.mxu0
    %1588 = vdwg.mxu0
    %1589 = vmatpush.bf16.msra.mxu0 %v1039
    %1590 = vmatpush.bf16.msra.mxu0 %v1035
    %1591 = vmatpush.bf16.msra.mxu0 %v1031
    %1592 = vmatpush.bf16.msra.mxu0 %v1027
    %1593 = vmatpush.bf16.msra.mxu0 %v1023
    %1594 = vmatpush.bf16.msra.mxu0 %v1019
    %1595 = vmatpush.bf16.msra.mxu0 %v1015
    %1596 = vmatpush.bf16.msra.mxu0 %v1011
    %1597 = vmatmul.bf16.gmra.mxu0 %v240
    %v1598 = vpop.f32.mrf.mxu0
    %v1599 = vadd.f32 %v1586, %v1598
    %v1600 = vpop.f32.mrf.mxu0
    %1601 = vdwg.mxu0
    %1602 = vmatpush.bf16.msra.mxu0 0
    %1603 = vmatpush.bf16.msra.mxu0 0
    %1604 = vmatpush.bf16.msra.mxu0 0
    %1605 = vmatpush.bf16.msra.mxu0 0
    %1606 = vmatpush.bf16.msra.mxu0 0
    %1607 = vmatpush.bf16.msra.mxu0 0
    %1608 = vmatpush.bf16.msra.mxu0 %v1047
    %1609 = vmatpush.bf16.msra.mxu0 %v1043
    %1610 = vmatmul.bf16.gmra.mxu0 %v1249
    %v1611 = vpop.f32.mrf.mxu0
    %v1612 = vadd.f32 %v1599, %v1611
    %v1613 = vpop.f32.mrf.mxu0
    %1614 = vdwg.mxu0
    %v1615 = vmax.f32 %v1339, 0.0
    %v1616 = vmax.f32 %v1430, 0.0
    %v1617 = vmax.f32 %v1521, 0.0
    %v1618 = vmax.f32 %v1612, 0.0
    %v1619 = vpack.c.bf16 %v1615, %v1615
    %v1620 = vpack.c.bf16 %v1616, %v1616
    %v1621 = vpack.c.bf16 %v1617, %v1617
    %v1622 = vpack.c.bf16 %v1618, %v1618
    %v1623 = vld [vmem:[%s3] sm:$0xf]
    %v1624 = vld [vmem:[%s3 + $0x4] sm:$0xf]
    %v1625 = vld [vmem:[%s3 + $0x8] sm:$0xf]
    %v1626 = vld [vmem:[%s3 + $0xc] sm:$0xf]
    %v1627 = vld [vmem:[%s3 + $0x10] sm:$0xf]
    %v1628 = vld [vmem:[%s3 + $0x14] sm:$0xf]
    %v1629 = vld [vmem:[%s3 + $0x18] sm:$0xf]
    %v1630 = vld [vmem:[%s3 + $0x1c] sm:$0xf]
    %v1631 = vld [vmem:[%s3 + $0x20] sm:$0xf]
    %v1632 = vld [vmem:[%s3 + $0x24] sm:$0xf]
    %v1633 = vld [vmem:[%s3 + $0x28] sm:$0xf]
    %v1634 = vld [vmem:[%s3 + $0x2c] sm:$0xf]
    %v1635 = vld [vmem:[%s3 + $0x30] sm:$0xf]
    %v1636 = vld [vmem:[%s3 + $0x34] sm:$0xf]
    %v1637 = vld [vmem:[%s3 + $0x38] sm:$0xf]
    %v1638 = vld [vmem:[%s3 + $0x3c] sm:$0xf]
    %v1639 = vld [vmem:[%s3 + $0x40] sm:$0xf]
    %v1640 = vld [vmem:[%s3 + $0x44] sm:$0xf]
    %v1641 = vld [vmem:[%s3 + $0x48] sm:$0xf]
    %v1642 = vld [vmem:[%s3 + $0x4c] sm:$0xf]
    %v1643 = vld [vmem:[%s3 + $0x50] sm:$0xf]
    %v1644 = vld [vmem:[%s3 + $0x54] sm:$0xf]
    %v1645 = vld [vmem:[%s3 + $0x58] sm:$0xf]
    %v1646 = vld [vmem:[%s3 + $0x5c] sm:$0xf]
    %v1647 = vld [vmem:[%s3 + $0x60] sm:$0xf]
    %v1648 = vld [vmem:[%s3 + $0x64] sm:$0xf]
    %v1649 = vld [vmem:[%s3 + $0x68] sm:$0xf]
    %v1650 = vld [vmem:[%s3 + $0x6c] sm:$0xf]
    %v1651 = vld [vmem:[%s3 + $0x70] sm:$0xf]
    %v1652 = vld [vmem:[%s3 + $0x74] sm:$0xf]
    %v1653 = vld [vmem:[%s3 + $0x78] sm:$0xf]
    %v1654 = vld [vmem:[%s3 + $0x7c] sm:$0xf]
    %v1655 = vld [vmem:[%s3 + $0x80] sm:$0xf]
    %v1656 = vld [vmem:[%s3 + $0x84] sm:$0xf]
    %v1657 = vld [vmem:[%s3 + $0x88] sm:$0xf]
    %v1658 = vld [vmem:[%s3 + $0x8c] sm:$0xf]
    %v1659 = vld [vmem:[%s3 + $0x90] sm:$0xf]
    %v1660 = vld [vmem:[%s3 + $0x94] sm:$0xf]
    %v1661 = vld [vmem:[%s3 + $0x98] sm:$0xf]
    %v1662 = vld [vmem:[%s3 + $0x9c] sm:$0xf]
    %v1663 = vld [vmem:[%s3 + $0xa0] sm:$0xf]
    %v1664 = vld [vmem:[%s3 + $0xa4] sm:$0xf]
    %v1665 = vld [vmem:[%s3 + $0xa8] sm:$0xf]
    %v1666 = vld [vmem:[%s3 + $0xac] sm:$0xf]
    %v1667 = vld [vmem:[%s3 + $0xb0] sm:$0xf]
    %v1668 = vld [vmem:[%s3 + $0xb4] sm:$0xf]
    %v1669 = vld [vmem:[%s3 + $0xb8] sm:$0xf]
    %v1670 = vld [vmem:[%s3 + $0xbc] sm:$0xf]
    %v1671 = vld [vmem:[%s3 + $0xc0] sm:$0xf]
    %v1672 = vld [vmem:[%s3 + $0xc4] sm:$0xf]
    %v1673 = vld [vmem:[%s3 + $0xc8] sm:$0xf]
    %v1674 = vld [vmem:[%s3 + $0xcc] sm:$0xf]
    %v1675 = vld [vmem:[%s3 + $0xd0] sm:$0xf]
    %v1676 = vld [vmem:[%s3 + $0xd4] sm:$0xf]
    %v1677 = vld [vmem:[%s3 + $0xd8] sm:$0xf]
    %v1678 = vld [vmem:[%s3 + $0xdc] sm:$0xf]
    %v1679 = vld [vmem:[%s3 + $0xe0] sm:$0xf]
    %v1680 = vld [vmem:[%s3 + $0xe4] sm:$0xf]
    %v1681 = vld [vmem:[%s3 + $0xe8] sm:$0xf]
    %v1682 = vld [vmem:[%s3 + $0xec] sm:$0xf]
    %v1683 = vld [vmem:[%s3 + $0xf0] sm:$0xf]
    %v1684 = vld [vmem:[%s3 + $0xf4] sm:$0xf]
    %v1685 = vld [vmem:[%s3 + $0xf8] sm:$0xf]
    %v1686 = vld [vmem:[%s3 + $0xfc] sm:$0xf]
    %v1687 = vld [vmem:[%s4] sm:$0x1]
    %v1689 = vperm.slane %v1687, 0
    %v1755 = vunpack.c.l.b16 %v1623
    %v1756 = vunpack.c.l.b16 %v1624
    %v1757 = vunpack.c.l.b16 %v1625
    %v1758 = vunpack.c.l.b16 %v1626
    %v1759 = vunpack.c.l.b16 %v1627
    %v1760 = vunpack.c.l.b16 %v1628
    %v1761 = vunpack.c.l.b16 %v1629
    %v1762 = vunpack.c.l.b16 %v1630
    %v1763 = vunpack.c.l.b16 %v1631
    %v1764 = vunpack.c.l.b16 %v1632
    %v1765 = vunpack.c.l.b16 %v1633
    %v1766 = vunpack.c.l.b16 %v1634
    %v1767 = vunpack.c.l.b16 %v1635
    %v1768 = vunpack.c.l.b16 %v1636
    %v1769 = vunpack.c.l.b16 %v1637
    %v1770 = vunpack.c.l.b16 %v1638
    %v1771 = vunpack.c.l.b16 %v1639
    %v1772 = vunpack.c.l.b16 %v1640
    %v1773 = vunpack.c.l.b16 %v1641
    %v1774 = vunpack.c.l.b16 %v1642
    %v1775 = vunpack.c.l.b16 %v1643
    %v1776 = vunpack.c.l.b16 %v1644
    %v1777 = vunpack.c.l.b16 %v1645
    %v1778 = vunpack.c.l.b16 %v1646
    %v1779 = vunpack.c.l.b16 %v1647
    %v1780 = vunpack.c.l.b16 %v1648
    %v1781 = vunpack.c.l.b16 %v1649
    %v1782 = vunpack.c.l.b16 %v1650
    %v1783 = vunpack.c.l.b16 %v1651
    %v1784 = vunpack.c.l.b16 %v1652
    %v1785 = vunpack.c.l.b16 %v1653
    %v1786 = vunpack.c.l.b16 %v1654
    %v1787 = vunpack.c.l.b16 %v1655
    %v1788 = vunpack.c.l.b16 %v1656
    %v1789 = vunpack.c.l.b16 %v1657
    %v1790 = vunpack.c.l.b16 %v1658
    %v1791 = vunpack.c.l.b16 %v1659
    %v1792 = vunpack.c.l.b16 %v1660
    %v1793 = vunpack.c.l.b16 %v1661
    %v1794 = vunpack.c.l.b16 %v1662
    %v1795 = vunpack.c.l.b16 %v1663
    %v1796 = vunpack.c.l.b16 %v1664
    %v1797 = vunpack.c.l.b16 %v1665
    %v1798 = vunpack.c.l.b16 %v1666
    %v1799 = vunpack.c.l.b16 %v1667
    %v1800 = vunpack.c.l.b16 %v1668
    %v1801 = vunpack.c.l.b16 %v1669
    %v1802 = vunpack.c.l.b16 %v1670
    %v1803 = vunpack.c.l.b16 %v1671
    %v1804 = vunpack.c.l.b16 %v1672
    %v1805 = vunpack.c.l.b16 %v1673
    %v1806 = vunpack.c.l.b16 %v1674
    %v1807 = vunpack.c.l.b16 %v1675
    %v1808 = vunpack.c.l.b16 %v1676
    %v1809 = vunpack.c.l.b16 %v1677
    %v1810 = vunpack.c.l.b16 %v1678
    %v1811 = vunpack.c.l.b16 %v1679
    %v1812 = vunpack.c.l.b16 %v1680
    %v1813 = vunpack.c.l.b16 %v1681
    %v1814 = vunpack.c.l.b16 %v1682
    %v1815 = vunpack.c.l.b16 %v1683
    %v1816 = vunpack.c.l.b16 %v1684
    %v1817 = vunpack.c.l.b16 %v1685
    %v1818 = vunpack.c.l.b16 %v1686
    %v1819 = vpack.c.b16 %v1756, %v1755
    %v1820 = vpack.c.b16 %v1758, %v1757
    %v1821 = vpack.c.b16 %v1760, %v1759
    %v1822 = vpack.c.b16 %v1762, %v1761
    %v1823 = vpack.c.b16 %v1764, %v1763
    %v1824 = vpack.c.b16 %v1766, %v1765
    %v1825 = vpack.c.b16 %v1768, %v1767
    %v1826 = vpack.c.b16 %v1770, %v1769
    %v1827 = vpack.c.b16 %v1772, %v1771
    %v1828 = vpack.c.b16 %v1774, %v1773
    %v1829 = vpack.c.b16 %v1776, %v1775
    %v1830 = vpack.c.b16 %v1778, %v1777
    %v1831 = vpack.c.b16 %v1780, %v1779
    %v1832 = vpack.c.b16 %v1782, %v1781
    %v1833 = vpack.c.b16 %v1784, %v1783
    %v1834 = vpack.c.b16 %v1786, %v1785
    %v1835 = vpack.c.b16 %v1788, %v1787
    %v1836 = vpack.c.b16 %v1790, %v1789
    %v1837 = vpack.c.b16 %v1792, %v1791
    %v1838 = vpack.c.b16 %v1794, %v1793
    %v1839 = vpack.c.b16 %v1796, %v1795
    %v1840 = vpack.c.b16 %v1798, %v1797
    %v1841 = vpack.c.b16 %v1800, %v1799
    %v1842 = vpack.c.b16 %v1802, %v1801
    %v1843 = vpack.c.b16 %v1804, %v1803
    %v1844 = vpack.c.b16 %v1806, %v1805
    %v1845 = vpack.c.b16 %v1808, %v1807
    %v1846 = vpack.c.b16 %v1810, %v1809
    %v1847 = vpack.c.b16 %v1812, %v1811
    %v1848 = vpack.c.b16 %v1814, %v1813
    %v1849 = vpack.c.b16 %v1816, %v1815
    %v1850 = vpack.c.b16 %v1818, %v1817
    %1883 = vmatpush.bf16.msra.mxu0 %v1826
    %1884 = vmatpush.bf16.msra.mxu0 %v1825
    %1885 = vmatpush.bf16.msra.mxu0 %v1824
    %1886 = vmatpush.bf16.msra.mxu0 %v1823
    %1887 = vmatpush.bf16.msra.mxu0 %v1822
    %1888 = vmatpush.bf16.msra.mxu0 %v1821
    %1889 = vmatpush.bf16.msra.mxu0 %v1820
    %1890 = vmatpush.bf16.msra.mxu0 %v1819
    %1891 = vmatmul.bf16.gmra.mxu0 %v1619
    %v1892 = vpop.f32.mrf.mxu0
    %v1893 = vadd.f32 %v1689, %v1892
    %v1894 = vpop.f32.mrf.mxu0
    %1895 = vdwg.mxu0
    %1896 = vmatpush.bf16.msra.mxu0 %v1834
    %1897 = vmatpush.bf16.msra.mxu0 %v1833
    %1898 = vmatpush.bf16.msra.mxu0 %v1832
    %1899 = vmatpush.bf16.msra.mxu0 %v1831
    %1900 = vmatpush.bf16.msra.mxu0 %v1830
    %1901 = vmatpush.bf16.msra.mxu0 %v1829
    %1902 = vmatpush.bf16.msra.mxu0 %v1828
    %1903 = vmatpush.bf16.msra.mxu0 %v1827
    %1904 = vmatmul.bf16.gmra.mxu0 %v1620
    %v1905 = vpop.f32.mrf.mxu0
    %v1906 = vadd.f32 %v1893, %v1905
    %v1907 = vpop.f32.mrf.mxu0
    %1908 = vdwg.mxu0
    %1909 = vmatpush.bf16.msra.mxu0 %v1842
    %1910 = vmatpush.bf16.msra.mxu0 %v1841
    %1911 = vmatpush.bf16.msra.mxu0 %v1840
    %1912 = vmatpush.bf16.msra.mxu0 %v1839
    %1913 = vmatpush.bf16.msra.mxu0 %v1838
    %1914 = vmatpush.bf16.msra.mxu0 %v1837
    %1915 = vmatpush.bf16.msra.mxu0 %v1836
    %1916 = vmatpush.bf16.msra.mxu0 %v1835
    %1917 = vmatmul.bf16.gmra.mxu0 %v1621
    %v1918 = vpop.f32.mrf.mxu0
    %v1919 = vadd.f32 %v1906, %v1918
    %v1920 = vpop.f32.mrf.mxu0
    %1921 = vdwg.mxu0
    %1922 = vmatpush.bf16.msra.mxu0 %v1850
    %1923 = vmatpush.bf16.msra.mxu0 %v1849
    %1924 = vmatpush.bf16.msra.mxu0 %v1848
    %1925 = vmatpush.bf16.msra.mxu0 %v1847
    %1926 = vmatpush.bf16.msra.mxu0 %v1846
    %1927 = vmatpush.bf16.msra.mxu0 %v1845
    %1928 = vmatpush.bf16.msra.mxu0 %v1844
    %1929 = vmatpush.bf16.msra.mxu0 %v1843
    %1930 = vmatmul.bf16.gmra.mxu0 %v1622
    %v1931 = vpop.f32.mrf.mxu0
    %v1932 = vadd.f32 %v1919, %v1931
    %v1933 = vpop.f32.mrf.mxu0
    %1934 = vdwg.mxu0
    %vm1935 = vcmask 1041408
    %v1936 = vsel %vm1935, %v1932, -inf
    %1937 = vmax.xlane.f32.xlu0 %v1936
    %v1938 = vpop.xlane.xlu0 %1937
    %v1939 = vsub.f32 %v1932, %v1938
    %v1940 = vmul.f32 %v1939, 1.442695
    %v1941 = vpow.pop %v1940
    %v1942 = vsel %vm1935, %v1941, 0.0
    %1943 = vadd.xlane.f32.xlu0 %v1942
    %v1944 = vpop.xlane.xlu0 %1943
    %v1945 = vlog2.pop %v1944
    %v1946 = vmul.f32 %v1945, 0.6931472
    %v1947 = vsub.f32 %v1939, %v1946
    %1948 = vst [vmem:[#allocation2] sm:$0x3] %v1947
    // Predicated region
    $region22: #{lenet_forward.5} parent=1 // pred_check
      _
    $region23: #{lenet_forward.5} parent=1 // pred_check_branch
      %1950 = sbr.rel (0) target = $region25
    $region24: #{lenet_forward.5} parent=1 // pred_region
      %1952 = vsyncadd [#allocation3], 0
      %s1954 = sshll.u32 [#allocation2], 4
      %s1955 = int_to_ptr.vmem [resolvable:$true] %s1954
      %s1956 = sshll.u32 %s5, 4
      %s1957 = int_to_ptr.hbm [resolvable:$true] %s1956
      %1959 = dma.vmem_to_hbm [thread:$0]  %s1955, 32, %s1957, [#allocation3]
    $region25: #{lenet_forward.5} parent=1 // pred_fallthru
      _
    // Predicated region
    $region26: #{lenet_forward.5} parent=1 // pred_check
      _
    $region27: #{lenet_forward.5} parent=1 // pred_check_branch
      %1961 = sbr.rel (0) target = $region29
    $region28: #{lenet_forward.5} parent=1 // pred_region
      %1963 = dma.done [#allocation3], 32
    $region29: #{lenet_forward.5} parent=1 // pred_fallthru
      _
    %1964 = vsyncpa [#allocation3], 1

</llo_original>
